<compile_context>
chip_gen: v6e
topology: v6e:2x2x1
jax: 0.10.0
libtpu: 0.0.40
codegen_flags: <defaults>
</compile_context>

<pallas_src>
import functools

import jax
import jax.numpy as jnp
from jax.experimental import pallas as pl
from jax.experimental.pallas import tpu as pltpu


# -----------------------------------------------------------------------------
# Fused Pallas kernel
# -----------------------------------------------------------------------------
def _lstm_cell(gates, c_prev, h_dim):
    """PyTorch-order (i, f, g, o) LSTM cell update from pre-activation gates [B, 4H]."""
    sg = jax.nn.sigmoid(gates)            # full-vreg EUP op
    th = jnp.tanh(gates)                  # full-vreg EUP op
    i_g = sg[:, 0 * h_dim:1 * h_dim]
    f_g = sg[:, 1 * h_dim:2 * h_dim]
    g_g = th[:, 2 * h_dim:3 * h_dim]
    o_g = sg[:, 3 * h_dim:4 * h_dim]
    c_new = f_g * c_prev + i_g * g_g
    h_new = o_g * jnp.tanh(c_new)
    return h_new, c_new


def _fused_lstm_kernel(x_ref,
                       wih1_ref, whh1_ref, b1_ref,
                       w2_ref, b2_ref,
                       w3_ref, b3_ref,
                       projwt_ref, projb_ref,
                       out_ref,
                       *, t_steps, batch, h1_dim, h2_dim, h3_dim):
    f32 = jnp.float32

    # Layer-1 input projection hoisted out of the recurrence: one big matmul + bias.
    gx1 = jnp.dot(x_ref[...], wih1_ref[...], preferred_element_type=f32) + b1_ref[...]
    whh1 = whh1_ref[...]
    w2, b2 = w2_ref[...], b2_ref[...]      # stacked [W_ih2; W_hh2], folded bias
    w3, b3 = w3_ref[...], b3_ref[...]      # stacked [W_ih3; W_hh3], folded bias
    projwt = projwt_ref[...]               # [E, Vp] pre-transposed tied table
    pb = projb_ref[...]
    projb = jnp.broadcast_to(pb, (batch, pb.shape[1]))   # hoisted (no per-step broadcast)

    h1 = jnp.zeros((batch, h1_dim), f32); c1 = jnp.zeros((batch, h1_dim), f32)
    h2 = jnp.zeros((batch, h2_dim), f32); c2 = jnp.zeros((batch, h2_dim), f32)
    h3 = jnp.zeros((batch, h3_dim), f32); c3 = jnp.zeros((batch, h3_dim), f32)

    # Wavefront over the 3 layers: at step s, layer1 does t=s, layer2 t=s-1, layer3 t=s-2.
    # All gate matmuls are computed BEFORE any state update, so each reads only
    # previous-step values -> the three MXU pushes of a step are independent; the serial
    # chain is T+2 dependent steps instead of 3*T.
    # T is small & static -> full unroll; see TODO for larger T (lax.fori_loop + pl.ds).
    for s in range(t_steps + 2):
        l1_act = s < t_steps
        l2_act = 1 <= s <= t_steps
        l3_act = 2 <= s <= t_steps + 1

        if l1_act:
            row = s * batch
            g1 = gx1[row:row + batch, :] + jnp.dot(h1, whh1,
                                                   preferred_element_type=f32)
        if l2_act:
            # layer-2 input = h1 at time s-1 (previous-step value), own state h2 at s-2;
            # fused [x, h] @ [W_ih; W_hh] -> one MXU push.
            g2 = jnp.dot(jnp.concatenate([h1, h2], axis=1), w2,
                         preferred_element_type=f32) + b2
        if l3_act:
            # layer-3 input = h2 at time s-2 (previous-step value), own state h3 at s-3.
            g3 = jnp.dot(jnp.concatenate([h2, h3], axis=1), w3,
                         preferred_element_type=f32) + b3

        if l1_act:
            h1, c1 = _lstm_cell(g1, c1, h1_dim)
        if l2_act:
            h2, c2 = _lstm_cell(g2, c2, h2_dim)
        if l3_act:
            h3, c3 = _lstm_cell(g3, c3, h3_dim)
            # Tied projection for time t = s-2: off the serial chain, lane-dense 128-wide
            # store, written batch-major so the wrapper never transposes the logits.
            t = s - 2
            logits_t = jnp.dot(h3, projwt, preferred_element_type=f32) + projb
            out_ref[:, t, :] = logits_t


def _full_spec(shape):
    return pl.BlockSpec(shape, lambda *_: (0,) * len(shape))


def fused_lstm_forward(x_tm, layers, emb_padded, proj_b, *, t_steps, batch):
    """x_tm: time-major [T*B, E] f32; emb_padded: [Vp, E]; proj_b: [1, Vp].

    Returns batch-major logits [B, T, Vp] f32 (Vp = lane-padded vocab).
    """
    vp = emb_padded.shape[0]
    h1_dim = layers[0]["w_hh"].shape[0]
    h2_dim = layers[1]["w_hh"].shape[0]
    h3_dim = layers[2]["w_hh"].shape[0]

    # Stacked weights for the fused [x, h] @ [W_ih; W_hh] matmuls of layers 2/3.
    w2 = jnp.concatenate([layers[1]["w_ih"], layers[1]["w_hh"]], axis=0)
    w3 = jnp.concatenate([layers[2]["w_ih"], layers[2]["w_hh"]], axis=0)
    # Tied projection table pre-transposed to [E, Vp] so the kernel does a plain dot and
    # never transposes the table in-kernel.  16 KiB here; at production vocab keep this
    # resident as a parameter instead of transposing per call.
    proj_w_t = jnp.transpose(emb_padded)

    args = [x_tm,
            layers[0]["w_ih"], layers[0]["w_hh"], layers[0]["b"],
            w2, layers[1]["b"],
            w3, layers[2]["b"],
            proj_w_t, proj_b]
    in_specs = [_full_spec(a.shape) for a in args]

    kernel = functools.partial(_fused_lstm_kernel, t_steps=t_steps, batch=batch,
                               h1_dim=h1_dim, h2_dim=h2_dim, h3_dim=h3_dim)
    return pl.pallas_call(
        kernel,
        out_shape=jax.ShapeDtypeStruct((batch, t_steps, vp), jnp.float32),
        grid_spec=pltpu.PrefetchScalarGridSpec(
            num_scalar_prefetch=0,
            grid=(1,),
            in_specs=in_specs,
            out_specs=_full_spec((batch, t_steps, vp))),
        compiler_params=pltpu.CompilerParams(
            dimension_semantics=("arbitrary",)),
    )(*args)


# -----------------------------------------------------------------------------
# Model wrapper (glue)
# -----------------------------------------------------------------------------
def init_params(key, word_count, embedding_dim, hidden_dim):
    v_pad = ((word_count + 127) // 128) * 128          # lane-dense padded vocab
    keys = jax.random.split(key, 8)
    # nn.Embedding weight, tied with projection weight: uniform(-0.1, 0.1); pad rows = 0.
    emb = jax.random.uniform(keys[0], (word_count, embedding_dim),
                             jnp.float32, -0.1, 0.1)
    emb_padded = jnp.zeros((v_pad, embedding_dim), jnp.float32).at[:word_count].set(emb)

    layer_sizes = [(embedding_dim, hidden_dim),
                   (hidden_dim, hidden_dim),
                   (hidden_dim, embedding_dim)]
    layers = []
    for li, (d_in, h) in enumerate(layer_sizes):
        k = 1.0 / jnp.sqrt(h)
        kw = jax.random.split(keys[1 + li], 4)
        w_ih = jax.random.uniform(kw[0], (d_in, 4 * h), jnp.float32, -k, k)
        w_hh = jax.random.uniform(kw[1], (h, 4 * h), jnp.float32, -k, k)
        b_ih = jax.random.uniform(kw[2], (4 * h,), jnp.float32, -k, k)
        b_hh = jax.random.uniform(kw[3], (4 * h,), jnp.float32, -k, k)
        layers.append(dict(w_ih=w_ih, w_hh=w_hh,
                           b=(b_ih + b_hh).reshape(1, 4 * h)))
    proj_b = jnp.zeros((1, v_pad), jnp.float32)        # projection bias filled with 0
    return dict(embedding=emb_padded, layers=layers, proj_b=proj_b)


@functools.partial(jax.jit, static_argnames=("word_count",))
def lstm_model_forward(tokens, params, word_count):
    """tokens: [B, T] int32 -> logits [B, T, V] f32 (forward=0, eval mode)."""
    emb_p = params["embedding"]                        # [Vp, E] tied table (padded rows 0)
    batch, t_steps = tokens.shape
    # TODO(synk): fuse this gather into the kernel via scalar-prefetched token ids.
    x = emb_p[tokens]                                  # embedding lookup [B, T, E]
    # dropout: identity in eval mode
    x_tm = jnp.transpose(x, (1, 0, 2)).reshape(t_steps * batch, -1)   # tiny time-major input
    logits = fused_lstm_forward(x_tm, params["layers"], emb_p, params["proj_b"],
                                t_steps=t_steps, batch=batch)         # [B, T, Vp] batch-major
    return logits[:, :, :word_count]                   # drop lane-padding columns only


# -----------------------------------------------------------------------------
# Pure-JAX reference (for correctness check)
# -----------------------------------------------------------------------------
def _lstm_layer_ref(x_tm, w_ih, w_hh, b):
    h_dim = w_hh.shape[0]
    batch = x_tm.shape[1]

    def step(carry, x_t):
        h, c = carry
        gates = x_t @ w_ih + h @ w_hh + b
        i = jax.nn.sigmoid(gates[:, :h_dim])
        f = jax.nn.sigmoid(gates[:, h_dim:2 * h_dim])
        g = jnp.tanh(gates[:, 2 * h_dim:3 * h_dim])
        o = jax.nn.sigmoid(gates[:, 3 * h_dim:])
        c = f * c + i * g
        h = o * jnp.tanh(c)
        return (h, c), h

    init = (jnp.zeros((batch, h_dim), jnp.float32),
            jnp.zeros((batch, h_dim), jnp.float32))
    _, ys = jax.lax.scan(step, init, x_tm)
    return ys


def lstm_model_forward_ref(tokens, params, word_count):
    emb = params["embedding"][:word_count]
    h = emb[tokens]
    h = jnp.transpose(h, (1, 0, 2))
    for layer in params["layers"]:
        h = _lstm_layer_ref(h, layer["w_ih"], layer["w_hh"], layer["b"])
    logits = jnp.einsum("tbe,ve->tbv", h, emb) + params["proj_b"][0, :word_count]
    return jnp.transpose(logits, (1, 0, 2))


# -----------------------------------------------------------------------------
# Main
# -----------------------------------------------------------------------------
if __name__ == "__main__":
    WORD_COUNT = 50      # vocab size
    EMBED_DIM = 32       # args.embedding_dim
    HIDDEN_DIM = 32      # args.hidden_dim
    B, T = 2, 8          # batch, sequence length

    root = jax.random.PRNGKey(0)
    k_params, k_tokens = jax.random.split(root)
    params = init_params(k_params, WORD_COUNT, EMBED_DIM, HIDDEN_DIM)
    tokens = jax.random.randint(k_tokens, (B, T), 0, WORD_COUNT, jnp.int32)

    logits = lstm_model_forward(tokens, params, WORD_COUNT)
    logits = jax.block_until_ready(logits)

    assert logits.shape == (B, T, WORD_COUNT), logits.shape
    assert jnp.all(jnp.isfinite(logits)), "non-finite logits"

    ref = lstm_model_forward_ref(tokens, params, WORD_COUNT)
    assert jnp.allclose(logits, ref, atol=1e-4, rtol=1e-4), (
        float(jnp.max(jnp.abs(logits - ref))))

    print("KERNEL_OK")
</pallas_src>

<mosaic_0001>
module attributes {stable_mosaic.version = 11 : i64} {
  func.func @_fused_lstm_kernel(%arg0: i32, %arg1: memref<16x32xf32, #tpu.memory_space<vmem>>, %arg2: memref<32x128xf32, #tpu.memory_space<vmem>>, %arg3: memref<32x128xf32, #tpu.memory_space<vmem>>, %arg4: memref<1x128xf32, #tpu.memory_space<vmem>>, %arg5: memref<64x128xf32, #tpu.memory_space<vmem>>, %arg6: memref<1x128xf32, #tpu.memory_space<vmem>>, %arg7: memref<64x128xf32, #tpu.memory_space<vmem>>, %arg8: memref<1x128xf32, #tpu.memory_space<vmem>>, %arg9: memref<32x128xf32, #tpu.memory_space<vmem>>, %arg10: memref<1x128xf32, #tpu.memory_space<vmem>>, %arg11: memref<2x8x128xf32, #tpu.memory_space<vmem>>) attributes {dimension_semantics = [#tpu.dimension_semantics<arbitrary>], iteration_bounds = array<i64: 1>, scalar_prefetch = 0 : i64, scratch_operands = 0 : i64, tpu.core_type = #tpu.core_type<tc>, window_params = [{pipeline_mode = #tpu.pipeline_mode<synchronous>, transform_indices = @transform_0, window_bounds = array<i64: 16, 32>}, {pipeline_mode = #tpu.pipeline_mode<synchronous>, transform_indices = @transform_1, window_bounds = array<i64: 32, 128>}, {pipeline_mode = #tpu.pipeline_mode<synchronous>, transform_indices = @transform_2, window_bounds = array<i64: 32, 128>}, {pipeline_mode = #tpu.pipeline_mode<synchronous>, transform_indices = @transform_3, window_bounds = array<i64: 1, 128>}, {pipeline_mode = #tpu.pipeline_mode<synchronous>, transform_indices = @transform_4, window_bounds = array<i64: 64, 128>}, {pipeline_mode = #tpu.pipeline_mode<synchronous>, transform_indices = @transform_5, window_bounds = array<i64: 1, 128>}, {pipeline_mode = #tpu.pipeline_mode<synchronous>, transform_indices = @transform_6, window_bounds = array<i64: 64, 128>}, {pipeline_mode = #tpu.pipeline_mode<synchronous>, transform_indices = @transform_7, window_bounds = array<i64: 1, 128>}, {pipeline_mode = #tpu.pipeline_mode<synchronous>, transform_indices = @transform_8, window_bounds = array<i64: 32, 128>}, {pipeline_mode = #tpu.pipeline_mode<synchronous>, transform_indices = @transform_9, window_bounds = array<i64: 1, 128>}, {pipeline_mode = #tpu.pipeline_mode<synchronous>, transform_indices = @transform_10, window_bounds = array<i64: 2, 8, 128>}]} {
    %c0 = arith.constant 0 : index
    %c0_0 = arith.constant 0 : index
    %0 = vector.load %arg1[%c0, %c0_0] : memref<16x32xf32, #tpu.memory_space<vmem>>, vector<16x32xf32>
    %c0_1 = arith.constant 0 : index
    %c0_2 = arith.constant 0 : index
    %1 = vector.load %arg2[%c0_1, %c0_2] : memref<32x128xf32, #tpu.memory_space<vmem>>, vector<32x128xf32>
    %cst = arith.constant dense<0.000000e+00> : vector<16x128xf32>
    %2 = tpu.matmul %0, %1, %cst {dimension_numbers = #tpu.dot_dimension_numbers<[1], [0], [0], [1], [0, 0, 1, 1], [], []>} : vector<16x32xf32>, vector<32x128xf32>, vector<16x128xf32> -> vector<16x128xf32>
    %c0_3 = arith.constant 0 : index
    %c0_4 = arith.constant 0 : index
    %3 = vector.load %arg4[%c0_3, %c0_4] : memref<1x128xf32, #tpu.memory_space<vmem>>, vector<1x128xf32>
    %4 = vector.broadcast %3 : vector<1x128xf32> to vector<16x128xf32>
    %5 = arith.addf %2, %4 : vector<16x128xf32>
    %c0_5 = arith.constant 0 : index
    %c0_6 = arith.constant 0 : index
    %6 = vector.load %arg3[%c0_5, %c0_6] : memref<32x128xf32, #tpu.memory_space<vmem>>, vector<32x128xf32>
    %c0_7 = arith.constant 0 : index
    %c0_8 = arith.constant 0 : index
    %7 = vector.load %arg5[%c0_7, %c0_8] : memref<64x128xf32, #tpu.memory_space<vmem>>, vector<64x128xf32>
    %c0_9 = arith.constant 0 : index
    %c0_10 = arith.constant 0 : index
    %8 = vector.load %arg6[%c0_9, %c0_10] : memref<1x128xf32, #tpu.memory_space<vmem>>, vector<1x128xf32>
    %c0_11 = arith.constant 0 : index
    %c0_12 = arith.constant 0 : index
    %9 = vector.load %arg7[%c0_11, %c0_12] : memref<64x128xf32, #tpu.memory_space<vmem>>, vector<64x128xf32>
    %c0_13 = arith.constant 0 : index
    %c0_14 = arith.constant 0 : index
    %10 = vector.load %arg8[%c0_13, %c0_14] : memref<1x128xf32, #tpu.memory_space<vmem>>, vector<1x128xf32>
    %c0_15 = arith.constant 0 : index
    %c0_16 = arith.constant 0 : index
    %11 = vector.load %arg9[%c0_15, %c0_16] : memref<32x128xf32, #tpu.memory_space<vmem>>, vector<32x128xf32>
    %c0_17 = arith.constant 0 : index
    %c0_18 = arith.constant 0 : index
    %12 = vector.load %arg10[%c0_17, %c0_18] : memref<1x128xf32, #tpu.memory_space<vmem>>, vector<1x128xf32>
    %13 = vector.shape_cast %12 : vector<1x128xf32> to vector<1x128xf32>
    %14 = vector.broadcast %13 : vector<1x128xf32> to vector<2x128xf32>
    %cst_19 = arith.constant 0.000000e+00 : f32
    %15 = vector.broadcast %cst_19 : f32 to vector<2x32xf32>
    %cst_20 = arith.constant 0.000000e+00 : f32
    %16 = vector.broadcast %cst_20 : f32 to vector<2x32xf32>
    %cst_21 = arith.constant 0.000000e+00 : f32
    %17 = vector.broadcast %cst_21 : f32 to vector<2x32xf32>
    %cst_22 = arith.constant 0.000000e+00 : f32
    %18 = vector.broadcast %cst_22 : f32 to vector<2x32xf32>
    %cst_23 = arith.constant 0.000000e+00 : f32
    %19 = vector.broadcast %cst_23 : f32 to vector<2x32xf32>
    %cst_24 = arith.constant 0.000000e+00 : f32
    %20 = vector.broadcast %cst_24 : f32 to vector<2x32xf32>
    %21 = vector.extract_strided_slice %5 {offsets = [0, 0], sizes = [2, 128], strides = [1, 1]} : vector<16x128xf32> to vector<2x128xf32>
    %cst_25 = arith.constant dense<0.000000e+00> : vector<2x128xf32>
    %22 = tpu.matmul %15, %6, %cst_25 {dimension_numbers = #tpu.dot_dimension_numbers<[1], [0], [0], [1], [0, 0, 1, 1], [], []>} : vector<2x32xf32>, vector<32x128xf32>, vector<2x128xf32> -> vector<2x128xf32>
    %23 = arith.addf %21, %22 : vector<2x128xf32>
    %24 = arith.negf %23 : vector<2x128xf32>
    %25 = math.exp %24 : vector<2x128xf32>
    %cst_26 = arith.constant 1.000000e+00 : f32
    %26 = vector.broadcast %cst_26 : f32 to vector<2x128xf32>
    %27 = arith.addf %26, %25 : vector<2x128xf32>
    %28 = arith.divf %26, %27 : vector<2x128xf32>
    %29 = math.tanh %23 : vector<2x128xf32>
    %30 = vector.extract_strided_slice %28 {offsets = [0, 0], sizes = [2, 32], strides = [1, 1]} : vector<2x128xf32> to vector<2x32xf32>
    %31 = vector.extract_strided_slice %28 {offsets = [0, 32], sizes = [2, 32], strides = [1, 1]} : vector<2x128xf32> to vector<2x32xf32>
    %32 = vector.extract_strided_slice %29 {offsets = [0, 64], sizes = [2, 32], strides = [1, 1]} : vector<2x128xf32> to vector<2x32xf32>
    %33 = vector.extract_strided_slice %28 {offsets = [0, 96], sizes = [2, 32], strides = [1, 1]} : vector<2x128xf32> to vector<2x32xf32>
    %34 = arith.mulf %31, %16 : vector<2x32xf32>
    %35 = arith.mulf %30, %32 : vector<2x32xf32>
    %36 = arith.addf %34, %35 : vector<2x32xf32>
    %37 = math.tanh %36 : vector<2x32xf32>
    %38 = arith.mulf %33, %37 : vector<2x32xf32>
    %39 = vector.extract_strided_slice %5 {offsets = [2, 0], sizes = [2, 128], strides = [1, 1]} : vector<16x128xf32> to vector<2x128xf32>
    %cst_27 = arith.constant dense<0.000000e+00> : vector<2x128xf32>
    %40 = tpu.matmul %38, %6, %cst_27 {dimension_numbers = #tpu.dot_dimension_numbers<[1], [0], [0], [1], [0, 0, 1, 1], [], []>} : vector<2x32xf32>, vector<32x128xf32>, vector<2x128xf32> -> vector<2x128xf32>
    %41 = arith.addf %39, %40 : vector<2x128xf32>
    %42 = tpu.concatenate %38, %17 in 1 : vector<2x32xf32>, vector<2x32xf32> -> vector<2x64xf32>
    %cst_28 = arith.constant dense<0.000000e+00> : vector<2x128xf32>
    %43 = tpu.matmul %42, %7, %cst_28 {dimension_numbers = #tpu.dot_dimension_numbers<[1], [0], [0], [1], [0, 0, 1, 1], [], []>} : vector<2x64xf32>, vector<64x128xf32>, vector<2x128xf32> -> vector<2x128xf32>
    %44 = vector.broadcast %8 : vector<1x128xf32> to vector<2x128xf32>
    %45 = arith.addf %43, %44 : vector<2x128xf32>
    %46 = arith.negf %41 : vector<2x128xf32>
    %47 = math.exp %46 : vector<2x128xf32>
    %cst_29 = arith.constant 1.000000e+00 : f32
    %48 = vector.broadcast %cst_29 : f32 to vector<2x128xf32>
    %49 = arith.addf %48, %47 : vector<2x128xf32>
    %50 = arith.divf %48, %49 : vector<2x128xf32>
    %51 = math.tanh %41 : vector<2x128xf32>
    %52 = vector.extract_strided_slice %50 {offsets = [0, 0], sizes = [2, 32], strides = [1, 1]} : vector<2x128xf32> to vector<2x32xf32>
    %53 = vector.extract_strided_slice %50 {offsets = [0, 32], sizes = [2, 32], strides = [1, 1]} : vector<2x128xf32> to vector<2x32xf32>
    %54 = vector.extract_strided_slice %51 {offsets = [0, 64], sizes = [2, 32], strides = [1, 1]} : vector<2x128xf32> to vector<2x32xf32>
    %55 = vector.extract_strided_slice %50 {offsets = [0, 96], sizes = [2, 32], strides = [1, 1]} : vector<2x128xf32> to vector<2x32xf32>
    %56 = arith.mulf %53, %36 : vector<2x32xf32>
    %57 = arith.mulf %52, %54 : vector<2x32xf32>
    %58 = arith.addf %56, %57 : vector<2x32xf32>
    %59 = math.tanh %58 : vector<2x32xf32>
    %60 = arith.mulf %55, %59 : vector<2x32xf32>
    %61 = arith.negf %45 : vector<2x128xf32>
    %62 = math.exp %61 : vector<2x128xf32>
    %cst_30 = arith.constant 1.000000e+00 : f32
    %63 = vector.broadcast %cst_30 : f32 to vector<2x128xf32>
    %64 = arith.addf %63, %62 : vector<2x128xf32>
    %65 = arith.divf %63, %64 : vector<2x128xf32>
    %66 = math.tanh %45 : vector<2x128xf32>
    %67 = vector.extract_strided_slice %65 {offsets = [0, 0], sizes = [2, 32], strides = [1, 1]} : vector<2x128xf32> to vector<2x32xf32>
    %68 = vector.extract_strided_slice %65 {offsets = [0, 32], sizes = [2, 32], strides = [1, 1]} : vector<2x128xf32> to vector<2x32xf32>
    %69 = vector.extract_strided_slice %66 {offsets = [0, 64], sizes = [2, 32], strides = [1, 1]} : vector<2x128xf32> to vector<2x32xf32>
    %70 = vector.extract_strided_slice %65 {offsets = [0, 96], sizes = [2, 32], strides = [1, 1]} : vector<2x128xf32> to vector<2x32xf32>
    %71 = arith.mulf %68, %18 : vector<2x32xf32>
    %72 = arith.mulf %67, %69 : vector<2x32xf32>
    %73 = arith.addf %71, %72 : vector<2x32xf32>
    %74 = math.tanh %73 : vector<2x32xf32>
    %75 = arith.mulf %70, %74 : vector<2x32xf32>
    %76 = vector.extract_strided_slice %5 {offsets = [4, 0], sizes = [2, 128], strides = [1, 1]} : vector<16x128xf32> to vector<2x128xf32>
    %cst_31 = arith.constant dense<0.000000e+00> : vector<2x128xf32>
    %77 = tpu.matmul %60, %6, %cst_31 {dimension_numbers = #tpu.dot_dimension_numbers<[1], [0], [0], [1], [0, 0, 1, 1], [], []>} : vector<2x32xf32>, vector<32x128xf32>, vector<2x128xf32> -> vector<2x128xf32>
    %78 = arith.addf %76, %77 : vector<2x128xf32>
    %79 = tpu.concatenate %60, %75 in 1 : vector<2x32xf32>, vector<2x32xf32> -> vector<2x64xf32>
    %cst_32 = arith.constant dense<0.000000e+00> : vector<2x128xf32>
    %80 = tpu.matmul %79, %7, %cst_32 {dimension_numbers = #tpu.dot_dimension_numbers<[1], [0], [0], [1], [0, 0, 1, 1], [], []>} : vector<2x64xf32>, vector<64x128xf32>, vector<2x128xf32> -> vector<2x128xf32>
    %81 = vector.broadcast %8 : vector<1x128xf32> to vector<2x128xf32>
    %82 = arith.addf %80, %81 : vector<2x128xf32>
    %83 = tpu.concatenate %75, %19 in 1 : vector<2x32xf32>, vector<2x32xf32> -> vector<2x64xf32>
    %cst_33 = arith.constant dense<0.000000e+00> : vector<2x128xf32>
    %84 = tpu.matmul %83, %9, %cst_33 {dimension_numbers = #tpu.dot_dimension_numbers<[1], [0], [0], [1], [0, 0, 1, 1], [], []>} : vector<2x64xf32>, vector<64x128xf32>, vector<2x128xf32> -> vector<2x128xf32>
    %85 = vector.broadcast %10 : vector<1x128xf32> to vector<2x128xf32>
    %86 = arith.addf %84, %85 : vector<2x128xf32>
    %87 = arith.negf %78 : vector<2x128xf32>
    %88 = math.exp %87 : vector<2x128xf32>
    %cst_34 = arith.constant 1.000000e+00 : f32
    %89 = vector.broadcast %cst_34 : f32 to vector<2x128xf32>
    %90 = arith.addf %89, %88 : vector<2x128xf32>
    %91 = arith.divf %89, %90 : vector<2x128xf32>
    %92 = math.tanh %78 : vector<2x128xf32>
    %93 = vector.extract_strided_slice %91 {offsets = [0, 0], sizes = [2, 32], strides = [1, 1]} : vector<2x128xf32> to vector<2x32xf32>
    %94 = vector.extract_strided_slice %91 {offsets = [0, 32], sizes = [2, 32], strides = [1, 1]} : vector<2x128xf32> to vector<2x32xf32>
    %95 = vector.extract_strided_slice %92 {offsets = [0, 64], sizes = [2, 32], strides = [1, 1]} : vector<2x128xf32> to vector<2x32xf32>
    %96 = vector.extract_strided_slice %91 {offsets = [0, 96], sizes = [2, 32], strides = [1, 1]} : vector<2x128xf32> to vector<2x32xf32>
    %97 = arith.mulf %94, %58 : vector<2x32xf32>
    %98 = arith.mulf %93, %95 : vector<2x32xf32>
    %99 = arith.addf %97, %98 : vector<2x32xf32>
    %100 = math.tanh %99 : vector<2x32xf32>
    %101 = arith.mulf %96, %100 : vector<2x32xf32>
    %102 = arith.negf %82 : vector<2x128xf32>
    %103 = math.exp %102 : vector<2x128xf32>
    %cst_35 = arith.constant 1.000000e+00 : f32
    %104 = vector.broadcast %cst_35 : f32 to vector<2x128xf32>
    %105 = arith.addf %104, %103 : vector<2x128xf32>
    %106 = arith.divf %104, %105 : vector<2x128xf32>
    %107 = math.tanh %82 : vector<2x128xf32>
    %108 = vector.extract_strided_slice %106 {offsets = [0, 0], sizes = [2, 32], strides = [1, 1]} : vector<2x128xf32> to vector<2x32xf32>
    %109 = vector.extract_strided_slice %106 {offsets = [0, 32], sizes = [2, 32], strides = [1, 1]} : vector<2x128xf32> to vector<2x32xf32>
    %110 = vector.extract_strided_slice %107 {offsets = [0, 64], sizes = [2, 32], strides = [1, 1]} : vector<2x128xf32> to vector<2x32xf32>
    %111 = vector.extract_strided_slice %106 {offsets = [0, 96], sizes = [2, 32], strides = [1, 1]} : vector<2x128xf32> to vector<2x32xf32>
    %112 = arith.mulf %109, %73 : vector<2x32xf32>
    %113 = arith.mulf %108, %110 : vector<2x32xf32>
    %114 = arith.addf %112, %113 : vector<2x32xf32>
    %115 = math.tanh %114 : vector<2x32xf32>
    %116 = arith.mulf %111, %115 : vector<2x32xf32>
    %117 = arith.negf %86 : vector<2x128xf32>
    %118 = math.exp %117 : vector<2x128xf32>
    %cst_36 = arith.constant 1.000000e+00 : f32
    %119 = vector.broadcast %cst_36 : f32 to vector<2x128xf32>
    %120 = arith.addf %119, %118 : vector<2x128xf32>
    %121 = arith.divf %119, %120 : vector<2x128xf32>
    %122 = math.tanh %86 : vector<2x128xf32>
    %123 = vector.extract_strided_slice %121 {offsets = [0, 0], sizes = [2, 32], strides = [1, 1]} : vector<2x128xf32> to vector<2x32xf32>
    %124 = vector.extract_strided_slice %121 {offsets = [0, 32], sizes = [2, 32], strides = [1, 1]} : vector<2x128xf32> to vector<2x32xf32>
    %125 = vector.extract_strided_slice %122 {offsets = [0, 64], sizes = [2, 32], strides = [1, 1]} : vector<2x128xf32> to vector<2x32xf32>
    %126 = vector.extract_strided_slice %121 {offsets = [0, 96], sizes = [2, 32], strides = [1, 1]} : vector<2x128xf32> to vector<2x32xf32>
    %127 = arith.mulf %124, %20 : vector<2x32xf32>
    %128 = arith.mulf %123, %125 : vector<2x32xf32>
    %129 = arith.addf %127, %128 : vector<2x32xf32>
    %130 = math.tanh %129 : vector<2x32xf32>
    %131 = arith.mulf %126, %130 : vector<2x32xf32>
    %cst_37 = arith.constant dense<0.000000e+00> : vector<2x128xf32>
    %132 = tpu.matmul %131, %11, %cst_37 {dimension_numbers = #tpu.dot_dimension_numbers<[1], [0], [0], [1], [0, 0, 1, 1], [], []>} : vector<2x32xf32>, vector<32x128xf32>, vector<2x128xf32> -> vector<2x128xf32>
    %133 = arith.addf %132, %14 : vector<2x128xf32>
    %c0_38 = arith.constant 0 : index
    %c0_39 = arith.constant 0 : index
    %c0_40 = arith.constant 0 : index
    %134 = vector.load %arg11[%c0_38, %c0_39, %c0_40] : memref<2x8x128xf32, #tpu.memory_space<vmem>>, vector<2x1x128xf32>
    %135 = vector.shape_cast %134 : vector<2x1x128xf32> to vector<2x128xf32>
    %136 = vector.shape_cast %133 : vector<2x128xf32> to vector<2x1x128xf32>
    tpu.vector_store %arg11[%c0_38, %c0_39, %c0_40], %136 {strides = array<i32>} : memref<2x8x128xf32, #tpu.memory_space<vmem>>, vector<2x1x128xf32>,
    %137 = vector.extract_strided_slice %5 {offsets = [6, 0], sizes = [2, 128], strides = [1, 1]} : vector<16x128xf32> to vector<2x128xf32>
    %cst_41 = arith.constant dense<0.000000e+00> : vector<2x128xf32>
    %138 = tpu.matmul %101, %6, %cst_41 {dimension_numbers = #tpu.dot_dimension_numbers<[1], [0], [0], [1], [0, 0, 1, 1], [], []>} : vector<2x32xf32>, vector<32x128xf32>, vector<2x128xf32> -> vector<2x128xf32>
    %139 = arith.addf %137, %138 : vector<2x128xf32>
    %140 = tpu.concatenate %101, %116 in 1 : vector<2x32xf32>, vector<2x32xf32> -> vector<2x64xf32>
    %cst_42 = arith.constant dense<0.000000e+00> : vector<2x128xf32>
    %141 = tpu.matmul %140, %7, %cst_42 {dimension_numbers = #tpu.dot_dimension_numbers<[1], [0], [0], [1], [0, 0, 1, 1], [], []>} : vector<2x64xf32>, vector<64x128xf32>, vector<2x128xf32> -> vector<2x128xf32>
    %142 = vector.broadcast %8 : vector<1x128xf32> to vector<2x128xf32>
    %143 = arith.addf %141, %142 : vector<2x128xf32>
    %144 = tpu.concatenate %116, %131 in 1 : vector<2x32xf32>, vector<2x32xf32> -> vector<2x64xf32>
    %cst_43 = arith.constant dense<0.000000e+00> : vector<2x128xf32>
    %145 = tpu.matmul %144, %9, %cst_43 {dimension_numbers = #tpu.dot_dimension_numbers<[1], [0], [0], [1], [0, 0, 1, 1], [], []>} : vector<2x64xf32>, vector<64x128xf32>, vector<2x128xf32> -> vector<2x128xf32>
    %146 = vector.broadcast %10 : vector<1x128xf32> to vector<2x128xf32>
    %147 = arith.addf %145, %146 : vector<2x128xf32>
    %148 = arith.negf %139 : vector<2x128xf32>
    %149 = math.exp %148 : vector<2x128xf32>
    %cst_44 = arith.constant 1.000000e+00 : f32
    %150 = vector.broadcast %cst_44 : f32 to vector<2x128xf32>
    %151 = arith.addf %150, %149 : vector<2x128xf32>
    %152 = arith.divf %150, %151 : vector<2x128xf32>
    %153 = math.tanh %139 : vector<2x128xf32>
    %154 = vector.extract_strided_slice %152 {offsets = [0, 0], sizes = [2, 32], strides = [1, 1]} : vector<2x128xf32> to vector<2x32xf32>
    %155 = vector.extract_strided_slice %152 {offsets = [0, 32], sizes = [2, 32], strides = [1, 1]} : vector<2x128xf32> to vector<2x32xf32>
    %156 = vector.extract_strided_slice %153 {offsets = [0, 64], sizes = [2, 32], strides = [1, 1]} : vector<2x128xf32> to vector<2x32xf32>
    %157 = vector.extract_strided_slice %152 {offsets = [0, 96], sizes = [2, 32], strides = [1, 1]} : vector<2x128xf32> to vector<2x32xf32>
    %158 = arith.mulf %155, %99 : vector<2x32xf32>
    %159 = arith.mulf %154, %156 : vector<2x32xf32>
    %160 = arith.addf %158, %159 : vector<2x32xf32>
    %161 = math.tanh %160 : vector<2x32xf32>
    %162 = arith.mulf %157, %161 : vector<2x32xf32>
    %163 = arith.negf %143 : vector<2x128xf32>
    %164 = math.exp %163 : vector<2x128xf32>
    %cst_45 = arith.constant 1.000000e+00 : f32
    %165 = vector.broadcast %cst_45 : f32 to vector<2x128xf32>
    %166 = arith.addf %165, %164 : vector<2x128xf32>
    %167 = arith.divf %165, %166 : vector<2x128xf32>
    %168 = math.tanh %143 : vector<2x128xf32>
    %169 = vector.extract_strided_slice %167 {offsets = [0, 0], sizes = [2, 32], strides = [1, 1]} : vector<2x128xf32> to vector<2x32xf32>
    %170 = vector.extract_strided_slice %167 {offsets = [0, 32], sizes = [2, 32], strides = [1, 1]} : vector<2x128xf32> to vector<2x32xf32>
    %171 = vector.extract_strided_slice %168 {offsets = [0, 64], sizes = [2, 32], strides = [1, 1]} : vector<2x128xf32> to vector<2x32xf32>
    %172 = vector.extract_strided_slice %167 {offsets = [0, 96], sizes = [2, 32], strides = [1, 1]} : vector<2x128xf32> to vector<2x32xf32>
    %173 = arith.mulf %170, %114 : vector<2x32xf32>
    %174 = arith.mulf %169, %171 : vector<2x32xf32>
    %175 = arith.addf %173, %174 : vector<2x32xf32>
    %176 = math.tanh %175 : vector<2x32xf32>
    %177 = arith.mulf %172, %176 : vector<2x32xf32>
    %178 = arith.negf %147 : vector<2x128xf32>
    %179 = math.exp %178 : vector<2x128xf32>
    %cst_46 = arith.constant 1.000000e+00 : f32
    %180 = vector.broadcast %cst_46 : f32 to vector<2x128xf32>
    %181 = arith.addf %180, %179 : vector<2x128xf32>
    %182 = arith.divf %180, %181 : vector<2x128xf32>
    %183 = math.tanh %147 : vector<2x128xf32>
    %184 = vector.extract_strided_slice %182 {offsets = [0, 0], sizes = [2, 32], strides = [1, 1]} : vector<2x128xf32> to vector<2x32xf32>
    %185 = vector.extract_strided_slice %182 {offsets = [0, 32], sizes = [2, 32], strides = [1, 1]} : vector<2x128xf32> to vector<2x32xf32>
    %186 = vector.extract_strided_slice %183 {offsets = [0, 64], sizes = [2, 32], strides = [1, 1]} : vector<2x128xf32> to vector<2x32xf32>
    %187 = vector.extract_strided_slice %182 {offsets = [0, 96], sizes = [2, 32], strides = [1, 1]} : vector<2x128xf32> to vector<2x32xf32>
    %188 = arith.mulf %185, %129 : vector<2x32xf32>
    %189 = arith.mulf %184, %186 : vector<2x32xf32>
    %190 = arith.addf %188, %189 : vector<2x32xf32>
    %191 = math.tanh %190 : vector<2x32xf32>
    %192 = arith.mulf %187, %191 : vector<2x32xf32>
    %cst_47 = arith.constant dense<0.000000e+00> : vector<2x128xf32>
    %193 = tpu.matmul %192, %11, %cst_47 {dimension_numbers = #tpu.dot_dimension_numbers<[1], [0], [0], [1], [0, 0, 1, 1], [], []>} : vector<2x32xf32>, vector<32x128xf32>, vector<2x128xf32> -> vector<2x128xf32>
    %194 = arith.addf %193, %14 : vector<2x128xf32>
    %c0_48 = arith.constant 0 : index
    %c1 = arith.constant 1 : index
    %c0_49 = arith.constant 0 : index
    %195 = vector.load %arg11[%c0_48, %c1, %c0_49] : memref<2x8x128xf32, #tpu.memory_space<vmem>>, vector<2x1x128xf32>
    %196 = vector.shape_cast %195 : vector<2x1x128xf32> to vector<2x128xf32>
    %197 = vector.shape_cast %194 : vector<2x128xf32> to vector<2x1x128xf32>
    tpu.vector_store %arg11[%c0_48, %c1, %c0_49], %197 {strides = array<i32>} : memref<2x8x128xf32, #tpu.memory_space<vmem>>, vector<2x1x128xf32>,
    %198 = vector.extract_strided_slice %5 {offsets = [8, 0], sizes = [2, 128], strides = [1, 1]} : vector<16x128xf32> to vector<2x128xf32>
    %cst_50 = arith.constant dense<0.000000e+00> : vector<2x128xf32>
    %199 = tpu.matmul %162, %6, %cst_50 {dimension_numbers = #tpu.dot_dimension_numbers<[1], [0], [0], [1], [0, 0, 1, 1], [], []>} : vector<2x32xf32>, vector<32x128xf32>, vector<2x128xf32> -> vector<2x128xf32>
    %200 = arith.addf %198, %199 : vector<2x128xf32>
    %201 = tpu.concatenate %162, %177 in 1 : vector<2x32xf32>, vector<2x32xf32> -> vector<2x64xf32>
    %cst_51 = arith.constant dense<0.000000e+00> : vector<2x128xf32>
    %202 = tpu.matmul %201, %7, %cst_51 {dimension_numbers = #tpu.dot_dimension_numbers<[1], [0], [0], [1], [0, 0, 1, 1], [], []>} : vector<2x64xf32>, vector<64x128xf32>, vector<2x128xf32> -> vector<2x128xf32>
    %203 = vector.broadcast %8 : vector<1x128xf32> to vector<2x128xf32>
    %204 = arith.addf %202, %203 : vector<2x128xf32>
    %205 = tpu.concatenate %177, %192 in 1 : vector<2x32xf32>, vector<2x32xf32> -> vector<2x64xf32>
    %cst_52 = arith.constant dense<0.000000e+00> : vector<2x128xf32>
    %206 = tpu.matmul %205, %9, %cst_52 {dimension_numbers = #tpu.dot_dimension_numbers<[1], [0], [0], [1], [0, 0, 1, 1], [], []>} : vector<2x64xf32>, vector<64x128xf32>, vector<2x128xf32> -> vector<2x128xf32>
    %207 = vector.broadcast %10 : vector<1x128xf32> to vector<2x128xf32>
    %208 = arith.addf %206, %207 : vector<2x128xf32>
    %209 = arith.negf %200 : vector<2x128xf32>
    %210 = math.exp %209 : vector<2x128xf32>
    %cst_53 = arith.constant 1.000000e+00 : f32
    %211 = vector.broadcast %cst_53 : f32 to vector<2x128xf32>
    %212 = arith.addf %211, %210 : vector<2x128xf32>
    %213 = arith.divf %211, %212 : vector<2x128xf32>
    %214 = math.tanh %200 : vector<2x128xf32>
    %215 = vector.extract_strided_slice %213 {offsets = [0, 0], sizes = [2, 32], strides = [1, 1]} : vector<2x128xf32> to vector<2x32xf32>
    %216 = vector.extract_strided_slice %213 {offsets = [0, 32], sizes = [2, 32], strides = [1, 1]} : vector<2x128xf32> to vector<2x32xf32>
    %217 = vector.extract_strided_slice %214 {offsets = [0, 64], sizes = [2, 32], strides = [1, 1]} : vector<2x128xf32> to vector<2x32xf32>
    %218 = vector.extract_strided_slice %213 {offsets = [0, 96], sizes = [2, 32], strides = [1, 1]} : vector<2x128xf32> to vector<2x32xf32>
    %219 = arith.mulf %216, %160 : vector<2x32xf32>
    %220 = arith.mulf %215, %217 : vector<2x32xf32>
    %221 = arith.addf %219, %220 : vector<2x32xf32>
    %222 = math.tanh %221 : vector<2x32xf32>
    %223 = arith.mulf %218, %222 : vector<2x32xf32>
    %224 = arith.negf %204 : vector<2x128xf32>
    %225 = math.exp %224 : vector<2x128xf32>
    %cst_54 = arith.constant 1.000000e+00 : f32
    %226 = vector.broadcast %cst_54 : f32 to vector<2x128xf32>
    %227 = arith.addf %226, %225 : vector<2x128xf32>
    %228 = arith.divf %226, %227 : vector<2x128xf32>
    %229 = math.tanh %204 : vector<2x128xf32>
    %230 = vector.extract_strided_slice %228 {offsets = [0, 0], sizes = [2, 32], strides = [1, 1]} : vector<2x128xf32> to vector<2x32xf32>
    %231 = vector.extract_strided_slice %228 {offsets = [0, 32], sizes = [2, 32], strides = [1, 1]} : vector<2x128xf32> to vector<2x32xf32>
    %232 = vector.extract_strided_slice %229 {offsets = [0, 64], sizes = [2, 32], strides = [1, 1]} : vector<2x128xf32> to vector<2x32xf32>
    %233 = vector.extract_strided_slice %228 {offsets = [0, 96], sizes = [2, 32], strides = [1, 1]} : vector<2x128xf32> to vector<2x32xf32>
    %234 = arith.mulf %231, %175 : vector<2x32xf32>
    %235 = arith.mulf %230, %232 : vector<2x32xf32>
    %236 = arith.addf %234, %235 : vector<2x32xf32>
    %237 = math.tanh %236 : vector<2x32xf32>
    %238 = arith.mulf %233, %237 : vector<2x32xf32>
    %239 = arith.negf %208 : vector<2x128xf32>
    %240 = math.exp %239 : vector<2x128xf32>
    %cst_55 = arith.constant 1.000000e+00 : f32
    %241 = vector.broadcast %cst_55 : f32 to vector<2x128xf32>
    %242 = arith.addf %241, %240 : vector<2x128xf32>
    %243 = arith.divf %241, %242 : vector<2x128xf32>
    %244 = math.tanh %208 : vector<2x128xf32>
    %245 = vector.extract_strided_slice %243 {offsets = [0, 0], sizes = [2, 32], strides = [1, 1]} : vector<2x128xf32> to vector<2x32xf32>
    %246 = vector.extract_strided_slice %243 {offsets = [0, 32], sizes = [2, 32], strides = [1, 1]} : vector<2x128xf32> to vector<2x32xf32>
    %247 = vector.extract_strided_slice %244 {offsets = [0, 64], sizes = [2, 32], strides = [1, 1]} : vector<2x128xf32> to vector<2x32xf32>
    %248 = vector.extract_strided_slice %243 {offsets = [0, 96], sizes = [2, 32], strides = [1, 1]} : vector<2x128xf32> to vector<2x32xf32>
    %249 = arith.mulf %246, %190 : vector<2x32xf32>
    %250 = arith.mulf %245, %247 : vector<2x32xf32>
    %251 = arith.addf %249, %250 : vector<2x32xf32>
    %252 = math.tanh %251 : vector<2x32xf32>
    %253 = arith.mulf %248, %252 : vector<2x32xf32>
    %cst_56 = arith.constant dense<0.000000e+00> : vector<2x128xf32>
    %254 = tpu.matmul %253, %11, %cst_56 {dimension_numbers = #tpu.dot_dimension_numbers<[1], [0], [0], [1], [0, 0, 1, 1], [], []>} : vector<2x32xf32>, vector<32x128xf32>, vector<2x128xf32> -> vector<2x128xf32>
    %255 = arith.addf %254, %14 : vector<2x128xf32>
    %c0_57 = arith.constant 0 : index
    %c2 = arith.constant 2 : index
    %c0_58 = arith.constant 0 : index
    %256 = vector.load %arg11[%c0_57, %c2, %c0_58] : memref<2x8x128xf32, #tpu.memory_space<vmem>>, vector<2x1x128xf32>
    %257 = vector.shape_cast %256 : vector<2x1x128xf32> to vector<2x128xf32>
    %258 = vector.shape_cast %255 : vector<2x128xf32> to vector<2x1x128xf32>
    tpu.vector_store %arg11[%c0_57, %c2, %c0_58], %258 {strides = array<i32>} : memref<2x8x128xf32, #tpu.memory_space<vmem>>, vector<2x1x128xf32>,
    %259 = vector.extract_strided_slice %5 {offsets = [10, 0], sizes = [2, 128], strides = [1, 1]} : vector<16x128xf32> to vector<2x128xf32>
    %cst_59 = arith.constant dense<0.000000e+00> : vector<2x128xf32>
    %260 = tpu.matmul %223, %6, %cst_59 {dimension_numbers = #tpu.dot_dimension_numbers<[1], [0], [0], [1], [0, 0, 1, 1], [], []>} : vector<2x32xf32>, vector<32x128xf32>, vector<2x128xf32> -> vector<2x128xf32>
    %261 = arith.addf %259, %260 : vector<2x128xf32>
    %262 = tpu.concatenate %223, %238 in 1 : vector<2x32xf32>, vector<2x32xf32> -> vector<2x64xf32>
    %cst_60 = arith.constant dense<0.000000e+00> : vector<2x128xf32>
    %263 = tpu.matmul %262, %7, %cst_60 {dimension_numbers = #tpu.dot_dimension_numbers<[1], [0], [0], [1], [0, 0, 1, 1], [], []>} : vector<2x64xf32>, vector<64x128xf32>, vector<2x128xf32> -> vector<2x128xf32>
    %264 = vector.broadcast %8 : vector<1x128xf32> to vector<2x128xf32>
    %265 = arith.addf %263, %264 : vector<2x128xf32>
    %266 = tpu.concatenate %238, %253 in 1 : vector<2x32xf32>, vector<2x32xf32> -> vector<2x64xf32>
    %cst_61 = arith.constant dense<0.000000e+00> : vector<2x128xf32>
    %267 = tpu.matmul %266, %9, %cst_61 {dimension_numbers = #tpu.dot_dimension_numbers<[1], [0], [0], [1], [0, 0, 1, 1], [], []>} : vector<2x64xf32>, vector<64x128xf32>, vector<2x128xf32> -> vector<2x128xf32>
    %268 = vector.broadcast %10 : vector<1x128xf32> to vector<2x128xf32>
    %269 = arith.addf %267, %268 : vector<2x128xf32>
    %270 = arith.negf %261 : vector<2x128xf32>
    %271 = math.exp %270 : vector<2x128xf32>
    %cst_62 = arith.constant 1.000000e+00 : f32
    %272 = vector.broadcast %cst_62 : f32 to vector<2x128xf32>
    %273 = arith.addf %272, %271 : vector<2x128xf32>
    %274 = arith.divf %272, %273 : vector<2x128xf32>
    %275 = math.tanh %261 : vector<2x128xf32>
    %276 = vector.extract_strided_slice %274 {offsets = [0, 0], sizes = [2, 32], strides = [1, 1]} : vector<2x128xf32> to vector<2x32xf32>
    %277 = vector.extract_strided_slice %274 {offsets = [0, 32], sizes = [2, 32], strides = [1, 1]} : vector<2x128xf32> to vector<2x32xf32>
    %278 = vector.extract_strided_slice %275 {offsets = [0, 64], sizes = [2, 32], strides = [1, 1]} : vector<2x128xf32> to vector<2x32xf32>
    %279 = vector.extract_strided_slice %274 {offsets = [0, 96], sizes = [2, 32], strides = [1, 1]} : vector<2x128xf32> to vector<2x32xf32>
    %280 = arith.mulf %277, %221 : vector<2x32xf32>
    %281 = arith.mulf %276, %278 : vector<2x32xf32>
    %282 = arith.addf %280, %281 : vector<2x32xf32>
    %283 = math.tanh %282 : vector<2x32xf32>
    %284 = arith.mulf %279, %283 : vector<2x32xf32>
    %285 = arith.negf %265 : vector<2x128xf32>
    %286 = math.exp %285 : vector<2x128xf32>
    %cst_63 = arith.constant 1.000000e+00 : f32
    %287 = vector.broadcast %cst_63 : f32 to vector<2x128xf32>
    %288 = arith.addf %287, %286 : vector<2x128xf32>
    %289 = arith.divf %287, %288 : vector<2x128xf32>
    %290 = math.tanh %265 : vector<2x128xf32>
    %291 = vector.extract_strided_slice %289 {offsets = [0, 0], sizes = [2, 32], strides = [1, 1]} : vector<2x128xf32> to vector<2x32xf32>
    %292 = vector.extract_strided_slice %289 {offsets = [0, 32], sizes = [2, 32], strides = [1, 1]} : vector<2x128xf32> to vector<2x32xf32>
    %293 = vector.extract_strided_slice %290 {offsets = [0, 64], sizes = [2, 32], strides = [1, 1]} : vector<2x128xf32> to vector<2x32xf32>
    %294 = vector.extract_strided_slice %289 {offsets = [0, 96], sizes = [2, 32], strides = [1, 1]} : vector<2x128xf32> to vector<2x32xf32>
    %295 = arith.mulf %292, %236 : vector<2x32xf32>
    %296 = arith.mulf %291, %293 : vector<2x32xf32>
    %297 = arith.addf %295, %296 : vector<2x32xf32>
    %298 = math.tanh %297 : vector<2x32xf32>
    %299 = arith.mulf %294, %298 : vector<2x32xf32>
    %300 = arith.negf %269 : vector<2x128xf32>
    %301 = math.exp %300 : vector<2x128xf32>
    %cst_64 = arith.constant 1.000000e+00 : f32
    %302 = vector.broadcast %cst_64 : f32 to vector<2x128xf32>
    %303 = arith.addf %302, %301 : vector<2x128xf32>
    %304 = arith.divf %302, %303 : vector<2x128xf32>
    %305 = math.tanh %269 : vector<2x128xf32>
    %306 = vector.extract_strided_slice %304 {offsets = [0, 0], sizes = [2, 32], strides = [1, 1]} : vector<2x128xf32> to vector<2x32xf32>
    %307 = vector.extract_strided_slice %304 {offsets = [0, 32], sizes = [2, 32], strides = [1, 1]} : vector<2x128xf32> to vector<2x32xf32>
    %308 = vector.extract_strided_slice %305 {offsets = [0, 64], sizes = [2, 32], strides = [1, 1]} : vector<2x128xf32> to vector<2x32xf32>
    %309 = vector.extract_strided_slice %304 {offsets = [0, 96], sizes = [2, 32], strides = [1, 1]} : vector<2x128xf32> to vector<2x32xf32>
    %310 = arith.mulf %307, %251 : vector<2x32xf32>
    %311 = arith.mulf %306, %308 : vector<2x32xf32>
    %312 = arith.addf %310, %311 : vector<2x32xf32>
    %313 = math.tanh %312 : vector<2x32xf32>
    %314 = arith.mulf %309, %313 : vector<2x32xf32>
    %cst_65 = arith.constant dense<0.000000e+00> : vector<2x128xf32>
    %315 = tpu.matmul %314, %11, %cst_65 {dimension_numbers = #tpu.dot_dimension_numbers<[1], [0], [0], [1], [0, 0, 1, 1], [], []>} : vector<2x32xf32>, vector<32x128xf32>, vector<2x128xf32> -> vector<2x128xf32>
    %316 = arith.addf %315, %14 : vector<2x128xf32>
    %c0_66 = arith.constant 0 : index
    %c3 = arith.constant 3 : index
    %c0_67 = arith.constant 0 : index
    %317 = vector.load %arg11[%c0_66, %c3, %c0_67] : memref<2x8x128xf32, #tpu.memory_space<vmem>>, vector<2x1x128xf32>
    %318 = vector.shape_cast %317 : vector<2x1x128xf32> to vector<2x128xf32>
    %319 = vector.shape_cast %316 : vector<2x128xf32> to vector<2x1x128xf32>
    tpu.vector_store %arg11[%c0_66, %c3, %c0_67], %319 {strides = array<i32>} : memref<2x8x128xf32, #tpu.memory_space<vmem>>, vector<2x1x128xf32>,
    %320 = vector.extract_strided_slice %5 {offsets = [12, 0], sizes = [2, 128], strides = [1, 1]} : vector<16x128xf32> to vector<2x128xf32>
    %cst_68 = arith.constant dense<0.000000e+00> : vector<2x128xf32>
    %321 = tpu.matmul %284, %6, %cst_68 {dimension_numbers = #tpu.dot_dimension_numbers<[1], [0], [0], [1], [0, 0, 1, 1], [], []>} : vector<2x32xf32>, vector<32x128xf32>, vector<2x128xf32> -> vector<2x128xf32>
    %322 = arith.addf %320, %321 : vector<2x128xf32>
    %323 = tpu.concatenate %284, %299 in 1 : vector<2x32xf32>, vector<2x32xf32> -> vector<2x64xf32>
    %cst_69 = arith.constant dense<0.000000e+00> : vector<2x128xf32>
    %324 = tpu.matmul %323, %7, %cst_69 {dimension_numbers = #tpu.dot_dimension_numbers<[1], [0], [0], [1], [0, 0, 1, 1], [], []>} : vector<2x64xf32>, vector<64x128xf32>, vector<2x128xf32> -> vector<2x128xf32>
    %325 = vector.broadcast %8 : vector<1x128xf32> to vector<2x128xf32>
    %326 = arith.addf %324, %325 : vector<2x128xf32>
    %327 = tpu.concatenate %299, %314 in 1 : vector<2x32xf32>, vector<2x32xf32> -> vector<2x64xf32>
    %cst_70 = arith.constant dense<0.000000e+00> : vector<2x128xf32>
    %328 = tpu.matmul %327, %9, %cst_70 {dimension_numbers = #tpu.dot_dimension_numbers<[1], [0], [0], [1], [0, 0, 1, 1], [], []>} : vector<2x64xf32>, vector<64x128xf32>, vector<2x128xf32> -> vector<2x128xf32>
    %329 = vector.broadcast %10 : vector<1x128xf32> to vector<2x128xf32>
    %330 = arith.addf %328, %329 : vector<2x128xf32>
    %331 = arith.negf %322 : vector<2x128xf32>
    %332 = math.exp %331 : vector<2x128xf32>
    %cst_71 = arith.constant 1.000000e+00 : f32
    %333 = vector.broadcast %cst_71 : f32 to vector<2x128xf32>
    %334 = arith.addf %333, %332 : vector<2x128xf32>
    %335 = arith.divf %333, %334 : vector<2x128xf32>
    %336 = math.tanh %322 : vector<2x128xf32>
    %337 = vector.extract_strided_slice %335 {offsets = [0, 0], sizes = [2, 32], strides = [1, 1]} : vector<2x128xf32> to vector<2x32xf32>
    %338 = vector.extract_strided_slice %335 {offsets = [0, 32], sizes = [2, 32], strides = [1, 1]} : vector<2x128xf32> to vector<2x32xf32>
    %339 = vector.extract_strided_slice %336 {offsets = [0, 64], sizes = [2, 32], strides = [1, 1]} : vector<2x128xf32> to vector<2x32xf32>
    %340 = vector.extract_strided_slice %335 {offsets = [0, 96], sizes = [2, 32], strides = [1, 1]} : vector<2x128xf32> to vector<2x32xf32>
    %341 = arith.mulf %338, %282 : vector<2x32xf32>
    %342 = arith.mulf %337, %339 : vector<2x32xf32>
    %343 = arith.addf %341, %342 : vector<2x32xf32>
    %344 = math.tanh %343 : vector<2x32xf32>
    %345 = arith.mulf %340, %344 : vector<2x32xf32>
    %346 = arith.negf %326 : vector<2x128xf32>
    %347 = math.exp %346 : vector<2x128xf32>
    %cst_72 = arith.constant 1.000000e+00 : f32
    %348 = vector.broadcast %cst_72 : f32 to vector<2x128xf32>
    %349 = arith.addf %348, %347 : vector<2x128xf32>
    %350 = arith.divf %348, %349 : vector<2x128xf32>
    %351 = math.tanh %326 : vector<2x128xf32>
    %352 = vector.extract_strided_slice %350 {offsets = [0, 0], sizes = [2, 32], strides = [1, 1]} : vector<2x128xf32> to vector<2x32xf32>
    %353 = vector.extract_strided_slice %350 {offsets = [0, 32], sizes = [2, 32], strides = [1, 1]} : vector<2x128xf32> to vector<2x32xf32>
    %354 = vector.extract_strided_slice %351 {offsets = [0, 64], sizes = [2, 32], strides = [1, 1]} : vector<2x128xf32> to vector<2x32xf32>
    %355 = vector.extract_strided_slice %350 {offsets = [0, 96], sizes = [2, 32], strides = [1, 1]} : vector<2x128xf32> to vector<2x32xf32>
    %356 = arith.mulf %353, %297 : vector<2x32xf32>
    %357 = arith.mulf %352, %354 : vector<2x32xf32>
    %358 = arith.addf %356, %357 : vector<2x32xf32>
    %359 = math.tanh %358 : vector<2x32xf32>
    %360 = arith.mulf %355, %359 : vector<2x32xf32>
    %361 = arith.negf %330 : vector<2x128xf32>
    %362 = math.exp %361 : vector<2x128xf32>
    %cst_73 = arith.constant 1.000000e+00 : f32
    %363 = vector.broadcast %cst_73 : f32 to vector<2x128xf32>
    %364 = arith.addf %363, %362 : vector<2x128xf32>
    %365 = arith.divf %363, %364 : vector<2x128xf32>
    %366 = math.tanh %330 : vector<2x128xf32>
    %367 = vector.extract_strided_slice %365 {offsets = [0, 0], sizes = [2, 32], strides = [1, 1]} : vector<2x128xf32> to vector<2x32xf32>
    %368 = vector.extract_strided_slice %365 {offsets = [0, 32], sizes = [2, 32], strides = [1, 1]} : vector<2x128xf32> to vector<2x32xf32>
    %369 = vector.extract_strided_slice %366 {offsets = [0, 64], sizes = [2, 32], strides = [1, 1]} : vector<2x128xf32> to vector<2x32xf32>
    %370 = vector.extract_strided_slice %365 {offsets = [0, 96], sizes = [2, 32], strides = [1, 1]} : vector<2x128xf32> to vector<2x32xf32>
    %371 = arith.mulf %368, %312 : vector<2x32xf32>
    %372 = arith.mulf %367, %369 : vector<2x32xf32>
    %373 = arith.addf %371, %372 : vector<2x32xf32>
    %374 = math.tanh %373 : vector<2x32xf32>
    %375 = arith.mulf %370, %374 : vector<2x32xf32>
    %cst_74 = arith.constant dense<0.000000e+00> : vector<2x128xf32>
    %376 = tpu.matmul %375, %11, %cst_74 {dimension_numbers = #tpu.dot_dimension_numbers<[1], [0], [0], [1], [0, 0, 1, 1], [], []>} : vector<2x32xf32>, vector<32x128xf32>, vector<2x128xf32> -> vector<2x128xf32>
    %377 = arith.addf %376, %14 : vector<2x128xf32>
    %c0_75 = arith.constant 0 : index
    %c4 = arith.constant 4 : index
    %c0_76 = arith.constant 0 : index
    %378 = vector.load %arg11[%c0_75, %c4, %c0_76] : memref<2x8x128xf32, #tpu.memory_space<vmem>>, vector<2x1x128xf32>
    %379 = vector.shape_cast %378 : vector<2x1x128xf32> to vector<2x128xf32>
    %380 = vector.shape_cast %377 : vector<2x128xf32> to vector<2x1x128xf32>
    tpu.vector_store %arg11[%c0_75, %c4, %c0_76], %380 {strides = array<i32>} : memref<2x8x128xf32, #tpu.memory_space<vmem>>, vector<2x1x128xf32>,
    %381 = vector.extract_strided_slice %5 {offsets = [14, 0], sizes = [2, 128], strides = [1, 1]} : vector<16x128xf32> to vector<2x128xf32>
    %cst_77 = arith.constant dense<0.000000e+00> : vector<2x128xf32>
    %382 = tpu.matmul %345, %6, %cst_77 {dimension_numbers = #tpu.dot_dimension_numbers<[1], [0], [0], [1], [0, 0, 1, 1], [], []>} : vector<2x32xf32>, vector<32x128xf32>, vector<2x128xf32> -> vector<2x128xf32>
    %383 = arith.addf %381, %382 : vector<2x128xf32>
    %384 = tpu.concatenate %345, %360 in 1 : vector<2x32xf32>, vector<2x32xf32> -> vector<2x64xf32>
    %cst_78 = arith.constant dense<0.000000e+00> : vector<2x128xf32>
    %385 = tpu.matmul %384, %7, %cst_78 {dimension_numbers = #tpu.dot_dimension_numbers<[1], [0], [0], [1], [0, 0, 1, 1], [], []>} : vector<2x64xf32>, vector<64x128xf32>, vector<2x128xf32> -> vector<2x128xf32>
    %386 = vector.broadcast %8 : vector<1x128xf32> to vector<2x128xf32>
    %387 = arith.addf %385, %386 : vector<2x128xf32>
    %388 = tpu.concatenate %360, %375 in 1 : vector<2x32xf32>, vector<2x32xf32> -> vector<2x64xf32>
    %cst_79 = arith.constant dense<0.000000e+00> : vector<2x128xf32>
    %389 = tpu.matmul %388, %9, %cst_79 {dimension_numbers = #tpu.dot_dimension_numbers<[1], [0], [0], [1], [0, 0, 1, 1], [], []>} : vector<2x64xf32>, vector<64x128xf32>, vector<2x128xf32> -> vector<2x128xf32>
    %390 = vector.broadcast %10 : vector<1x128xf32> to vector<2x128xf32>
    %391 = arith.addf %389, %390 : vector<2x128xf32>
    %392 = arith.negf %383 : vector<2x128xf32>
    %393 = math.exp %392 : vector<2x128xf32>
    %cst_80 = arith.constant 1.000000e+00 : f32
    %394 = vector.broadcast %cst_80 : f32 to vector<2x128xf32>
    %395 = arith.addf %394, %393 : vector<2x128xf32>
    %396 = arith.divf %394, %395 : vector<2x128xf32>
    %397 = math.tanh %383 : vector<2x128xf32>
    %398 = vector.extract_strided_slice %396 {offsets = [0, 0], sizes = [2, 32], strides = [1, 1]} : vector<2x128xf32> to vector<2x32xf32>
    %399 = vector.extract_strided_slice %396 {offsets = [0, 32], sizes = [2, 32], strides = [1, 1]} : vector<2x128xf32> to vector<2x32xf32>
    %400 = vector.extract_strided_slice %397 {offsets = [0, 64], sizes = [2, 32], strides = [1, 1]} : vector<2x128xf32> to vector<2x32xf32>
    %401 = vector.extract_strided_slice %396 {offsets = [0, 96], sizes = [2, 32], strides = [1, 1]} : vector<2x128xf32> to vector<2x32xf32>
    %402 = arith.mulf %399, %343 : vector<2x32xf32>
    %403 = arith.mulf %398, %400 : vector<2x32xf32>
    %404 = arith.addf %402, %403 : vector<2x32xf32>
    %405 = math.tanh %404 : vector<2x32xf32>
    %406 = arith.mulf %401, %405 : vector<2x32xf32>
    %407 = arith.negf %387 : vector<2x128xf32>
    %408 = math.exp %407 : vector<2x128xf32>
    %cst_81 = arith.constant 1.000000e+00 : f32
    %409 = vector.broadcast %cst_81 : f32 to vector<2x128xf32>
    %410 = arith.addf %409, %408 : vector<2x128xf32>
    %411 = arith.divf %409, %410 : vector<2x128xf32>
    %412 = math.tanh %387 : vector<2x128xf32>
    %413 = vector.extract_strided_slice %411 {offsets = [0, 0], sizes = [2, 32], strides = [1, 1]} : vector<2x128xf32> to vector<2x32xf32>
    %414 = vector.extract_strided_slice %411 {offsets = [0, 32], sizes = [2, 32], strides = [1, 1]} : vector<2x128xf32> to vector<2x32xf32>
    %415 = vector.extract_strided_slice %412 {offsets = [0, 64], sizes = [2, 32], strides = [1, 1]} : vector<2x128xf32> to vector<2x32xf32>
    %416 = vector.extract_strided_slice %411 {offsets = [0, 96], sizes = [2, 32], strides = [1, 1]} : vector<2x128xf32> to vector<2x32xf32>
    %417 = arith.mulf %414, %358 : vector<2x32xf32>
    %418 = arith.mulf %413, %415 : vector<2x32xf32>
    %419 = arith.addf %417, %418 : vector<2x32xf32>
    %420 = math.tanh %419 : vector<2x32xf32>
    %421 = arith.mulf %416, %420 : vector<2x32xf32>
    %422 = arith.negf %391 : vector<2x128xf32>
    %423 = math.exp %422 : vector<2x128xf32>
    %cst_82 = arith.constant 1.000000e+00 : f32
    %424 = vector.broadcast %cst_82 : f32 to vector<2x128xf32>
    %425 = arith.addf %424, %423 : vector<2x128xf32>
    %426 = arith.divf %424, %425 : vector<2x128xf32>
    %427 = math.tanh %391 : vector<2x128xf32>
    %428 = vector.extract_strided_slice %426 {offsets = [0, 0], sizes = [2, 32], strides = [1, 1]} : vector<2x128xf32> to vector<2x32xf32>
    %429 = vector.extract_strided_slice %426 {offsets = [0, 32], sizes = [2, 32], strides = [1, 1]} : vector<2x128xf32> to vector<2x32xf32>
    %430 = vector.extract_strided_slice %427 {offsets = [0, 64], sizes = [2, 32], strides = [1, 1]} : vector<2x128xf32> to vector<2x32xf32>
    %431 = vector.extract_strided_slice %426 {offsets = [0, 96], sizes = [2, 32], strides = [1, 1]} : vector<2x128xf32> to vector<2x32xf32>
    %432 = arith.mulf %429, %373 : vector<2x32xf32>
    %433 = arith.mulf %428, %430 : vector<2x32xf32>
    %434 = arith.addf %432, %433 : vector<2x32xf32>
    %435 = math.tanh %434 : vector<2x32xf32>
    %436 = arith.mulf %431, %435 : vector<2x32xf32>
    %cst_83 = arith.constant dense<0.000000e+00> : vector<2x128xf32>
    %437 = tpu.matmul %436, %11, %cst_83 {dimension_numbers = #tpu.dot_dimension_numbers<[1], [0], [0], [1], [0, 0, 1, 1], [], []>} : vector<2x32xf32>, vector<32x128xf32>, vector<2x128xf32> -> vector<2x128xf32>
    %438 = arith.addf %437, %14 : vector<2x128xf32>
    %c0_84 = arith.constant 0 : index
    %c5 = arith.constant 5 : index
    %c0_85 = arith.constant 0 : index
    %439 = vector.load %arg11[%c0_84, %c5, %c0_85] : memref<2x8x128xf32, #tpu.memory_space<vmem>>, vector<2x1x128xf32>
    %440 = vector.shape_cast %439 : vector<2x1x128xf32> to vector<2x128xf32>
    %441 = vector.shape_cast %438 : vector<2x128xf32> to vector<2x1x128xf32>
    tpu.vector_store %arg11[%c0_84, %c5, %c0_85], %441 {strides = array<i32>} : memref<2x8x128xf32, #tpu.memory_space<vmem>>, vector<2x1x128xf32>,
    %442 = tpu.concatenate %406, %421 in 1 : vector<2x32xf32>, vector<2x32xf32> -> vector<2x64xf32>
    %cst_86 = arith.constant dense<0.000000e+00> : vector<2x128xf32>
    %443 = tpu.matmul %442, %7, %cst_86 {dimension_numbers = #tpu.dot_dimension_numbers<[1], [0], [0], [1], [0, 0, 1, 1], [], []>} : vector<2x64xf32>, vector<64x128xf32>, vector<2x128xf32> -> vector<2x128xf32>
    %444 = vector.broadcast %8 : vector<1x128xf32> to vector<2x128xf32>
    %445 = arith.addf %443, %444 : vector<2x128xf32>
    %446 = tpu.concatenate %421, %436 in 1 : vector<2x32xf32>, vector<2x32xf32> -> vector<2x64xf32>
    %cst_87 = arith.constant dense<0.000000e+00> : vector<2x128xf32>
    %447 = tpu.matmul %446, %9, %cst_87 {dimension_numbers = #tpu.dot_dimension_numbers<[1], [0], [0], [1], [0, 0, 1, 1], [], []>} : vector<2x64xf32>, vector<64x128xf32>, vector<2x128xf32> -> vector<2x128xf32>
    %448 = vector.broadcast %10 : vector<1x128xf32> to vector<2x128xf32>
    %449 = arith.addf %447, %448 : vector<2x128xf32>
    %450 = arith.negf %445 : vector<2x128xf32>
    %451 = math.exp %450 : vector<2x128xf32>
    %cst_88 = arith.constant 1.000000e+00 : f32
    %452 = vector.broadcast %cst_88 : f32 to vector<2x128xf32>
    %453 = arith.addf %452, %451 : vector<2x128xf32>
    %454 = arith.divf %452, %453 : vector<2x128xf32>
    %455 = math.tanh %445 : vector<2x128xf32>
    %456 = vector.extract_strided_slice %454 {offsets = [0, 0], sizes = [2, 32], strides = [1, 1]} : vector<2x128xf32> to vector<2x32xf32>
    %457 = vector.extract_strided_slice %454 {offsets = [0, 32], sizes = [2, 32], strides = [1, 1]} : vector<2x128xf32> to vector<2x32xf32>
    %458 = vector.extract_strided_slice %455 {offsets = [0, 64], sizes = [2, 32], strides = [1, 1]} : vector<2x128xf32> to vector<2x32xf32>
    %459 = vector.extract_strided_slice %454 {offsets = [0, 96], sizes = [2, 32], strides = [1, 1]} : vector<2x128xf32> to vector<2x32xf32>
    %460 = arith.mulf %457, %419 : vector<2x32xf32>
    %461 = arith.mulf %456, %458 : vector<2x32xf32>
    %462 = arith.addf %460, %461 : vector<2x32xf32>
    %463 = math.tanh %462 : vector<2x32xf32>
    %464 = arith.mulf %459, %463 : vector<2x32xf32>
    %465 = arith.negf %449 : vector<2x128xf32>
    %466 = math.exp %465 : vector<2x128xf32>
    %cst_89 = arith.constant 1.000000e+00 : f32
    %467 = vector.broadcast %cst_89 : f32 to vector<2x128xf32>
    %468 = arith.addf %467, %466 : vector<2x128xf32>
    %469 = arith.divf %467, %468 : vector<2x128xf32>
    %470 = math.tanh %449 : vector<2x128xf32>
    %471 = vector.extract_strided_slice %469 {offsets = [0, 0], sizes = [2, 32], strides = [1, 1]} : vector<2x128xf32> to vector<2x32xf32>
    %472 = vector.extract_strided_slice %469 {offsets = [0, 32], sizes = [2, 32], strides = [1, 1]} : vector<2x128xf32> to vector<2x32xf32>
    %473 = vector.extract_strided_slice %470 {offsets = [0, 64], sizes = [2, 32], strides = [1, 1]} : vector<2x128xf32> to vector<2x32xf32>
    %474 = vector.extract_strided_slice %469 {offsets = [0, 96], sizes = [2, 32], strides = [1, 1]} : vector<2x128xf32> to vector<2x32xf32>
    %475 = arith.mulf %472, %434 : vector<2x32xf32>
    %476 = arith.mulf %471, %473 : vector<2x32xf32>
    %477 = arith.addf %475, %476 : vector<2x32xf32>
    %478 = math.tanh %477 : vector<2x32xf32>
    %479 = arith.mulf %474, %478 : vector<2x32xf32>
    %cst_90 = arith.constant dense<0.000000e+00> : vector<2x128xf32>
    %480 = tpu.matmul %479, %11, %cst_90 {dimension_numbers = #tpu.dot_dimension_numbers<[1], [0], [0], [1], [0, 0, 1, 1], [], []>} : vector<2x32xf32>, vector<32x128xf32>, vector<2x128xf32> -> vector<2x128xf32>
    %481 = arith.addf %480, %14 : vector<2x128xf32>
    %c0_91 = arith.constant 0 : index
    %c6 = arith.constant 6 : index
    %c0_92 = arith.constant 0 : index
    %482 = vector.load %arg11[%c0_91, %c6, %c0_92] : memref<2x8x128xf32, #tpu.memory_space<vmem>>, vector<2x1x128xf32>
    %483 = vector.shape_cast %482 : vector<2x1x128xf32> to vector<2x128xf32>
    %484 = vector.shape_cast %481 : vector<2x128xf32> to vector<2x1x128xf32>
    tpu.vector_store %arg11[%c0_91, %c6, %c0_92], %484 {strides = array<i32>} : memref<2x8x128xf32, #tpu.memory_space<vmem>>, vector<2x1x128xf32>,
    %485 = tpu.concatenate %464, %479 in 1 : vector<2x32xf32>, vector<2x32xf32> -> vector<2x64xf32>
    %cst_93 = arith.constant dense<0.000000e+00> : vector<2x128xf32>
    %486 = tpu.matmul %485, %9, %cst_93 {dimension_numbers = #tpu.dot_dimension_numbers<[1], [0], [0], [1], [0, 0, 1, 1], [], []>} : vector<2x64xf32>, vector<64x128xf32>, vector<2x128xf32> -> vector<2x128xf32>
    %487 = vector.broadcast %10 : vector<1x128xf32> to vector<2x128xf32>
    %488 = arith.addf %486, %487 : vector<2x128xf32>
    %489 = arith.negf %488 : vector<2x128xf32>
    %490 = math.exp %489 : vector<2x128xf32>
    %cst_94 = arith.constant 1.000000e+00 : f32
    %491 = vector.broadcast %cst_94 : f32 to vector<2x128xf32>
    %492 = arith.addf %491, %490 : vector<2x128xf32>
    %493 = arith.divf %491, %492 : vector<2x128xf32>
    %494 = math.tanh %488 : vector<2x128xf32>
    %495 = vector.extract_strided_slice %493 {offsets = [0, 0], sizes = [2, 32], strides = [1, 1]} : vector<2x128xf32> to vector<2x32xf32>
    %496 = vector.extract_strided_slice %493 {offsets = [0, 32], sizes = [2, 32], strides = [1, 1]} : vector<2x128xf32> to vector<2x32xf32>
    %497 = vector.extract_strided_slice %494 {offsets = [0, 64], sizes = [2, 32], strides = [1, 1]} : vector<2x128xf32> to vector<2x32xf32>
    %498 = vector.extract_strided_slice %493 {offsets = [0, 96], sizes = [2, 32], strides = [1, 1]} : vector<2x128xf32> to vector<2x32xf32>
    %499 = arith.mulf %496, %477 : vector<2x32xf32>
    %500 = arith.mulf %495, %497 : vector<2x32xf32>
    %501 = arith.addf %499, %500 : vector<2x32xf32>
    %502 = math.tanh %501 : vector<2x32xf32>
    %503 = arith.mulf %498, %502 : vector<2x32xf32>
    %cst_95 = arith.constant dense<0.000000e+00> : vector<2x128xf32>
    %504 = tpu.matmul %503, %11, %cst_95 {dimension_numbers = #tpu.dot_dimension_numbers<[1], [0], [0], [1], [0, 0, 1, 1], [], []>} : vector<2x32xf32>, vector<32x128xf32>, vector<2x128xf32> -> vector<2x128xf32>
    %505 = arith.addf %504, %14 : vector<2x128xf32>
    %c0_96 = arith.constant 0 : index
    %c7 = arith.constant 7 : index
    %c0_97 = arith.constant 0 : index
    %506 = vector.load %arg11[%c0_96, %c7, %c0_97] : memref<2x8x128xf32, #tpu.memory_space<vmem>>, vector<2x1x128xf32>
    %507 = vector.shape_cast %506 : vector<2x1x128xf32> to vector<2x128xf32>
    %508 = vector.shape_cast %505 : vector<2x128xf32> to vector<2x1x128xf32>
    tpu.vector_store %arg11[%c0_96, %c7, %c0_97], %508 {strides = array<i32>} : memref<2x8x128xf32, #tpu.memory_space<vmem>>, vector<2x1x128xf32>,
    return
  }
  func.func @transform_0(%arg0: i32) -> (i32, i32) {
    %c0_i32 = arith.constant 0 : i32
    %c0_i32_0 = arith.constant 0 : i32
    %c0_i32_1 = arith.constant 0 : i32
    return %c0_i32, %c0_i32_0 : i32, i32
  }
  func.func @transform_1(%arg0: i32) -> (i32, i32) {
    %c0_i32 = arith.constant 0 : i32
    %c0_i32_0 = arith.constant 0 : i32
    %c0_i32_1 = arith.constant 0 : i32
    return %c0_i32, %c0_i32_0 : i32, i32
  }
  func.func @transform_2(%arg0: i32) -> (i32, i32) {
    %c0_i32 = arith.constant 0 : i32
    %c0_i32_0 = arith.constant 0 : i32
    %c0_i32_1 = arith.constant 0 : i32
    return %c0_i32, %c0_i32_0 : i32, i32
  }
  func.func @transform_3(%arg0: i32) -> (i32, i32) {
    %c0_i32 = arith.constant 0 : i32
    %c0_i32_0 = arith.constant 0 : i32
    %c0_i32_1 = arith.constant 0 : i32
    return %c0_i32, %c0_i32_0 : i32, i32
  }
  func.func @transform_4(%arg0: i32) -> (i32, i32) {
    %c0_i32 = arith.constant 0 : i32
    %c0_i32_0 = arith.constant 0 : i32
    %c0_i32_1 = arith.constant 0 : i32
    return %c0_i32, %c0_i32_0 : i32, i32
  }
  func.func @transform_5(%arg0: i32) -> (i32, i32) {
    %c0_i32 = arith.constant 0 : i32
    %c0_i32_0 = arith.constant 0 : i32
    %c0_i32_1 = arith.constant 0 : i32
    return %c0_i32, %c0_i32_0 : i32, i32
  }
  func.func @transform_6(%arg0: i32) -> (i32, i32) {
    %c0_i32 = arith.constant 0 : i32
    %c0_i32_0 = arith.constant 0 : i32
    %c0_i32_1 = arith.constant 0 : i32
    return %c0_i32, %c0_i32_0 : i32, i32
  }
  func.func @transform_7(%arg0: i32) -> (i32, i32) {
    %c0_i32 = arith.constant 0 : i32
    %c0_i32_0 = arith.constant 0 : i32
    %c0_i32_1 = arith.constant 0 : i32
    return %c0_i32, %c0_i32_0 : i32, i32
  }
  func.func @transform_8(%arg0: i32) -> (i32, i32) {
    %c0_i32 = arith.constant 0 : i32
    %c0_i32_0 = arith.constant 0 : i32
    %c0_i32_1 = arith.constant 0 : i32
    return %c0_i32, %c0_i32_0 : i32, i32
  }
  func.func @transform_9(%arg0: i32) -> (i32, i32) {
    %c0_i32 = arith.constant 0 : i32
    %c0_i32_0 = arith.constant 0 : i32
    %c0_i32_1 = arith.constant 0 : i32
    return %c0_i32, %c0_i32_0 : i32, i32
  }
  func.func @transform_10(%arg0: i32) -> (i32, i32, i32) {
    %c0_i32 = arith.constant 0 : i32
    %c0_i32_0 = arith.constant 0 : i32
    %c0_i32_1 = arith.constant 0 : i32
    %c0_i32_2 = arith.constant 0 : i32
    return %c0_i32, %c0_i32_0, %c0_i32_1 : i32, i32, i32
  }
}

</mosaic_0001>

<llo_original>
// kernel: lstm_model_forward.1
$region0: #{lstm_model_forward.1}
  #allocation0 [shape = 'u32[]', space=smem, size = 0x4, offset = 0x4, fixed_abs, tag = 'smem constant byte address 0x4 - core index']
  #allocation1 [shape = 'u32[144,128]{1,0:T(1,128)}', space=vmem, size = 0x12000, scoped, tag = 'internal scratch']
  %s0 = inlined_call_operand.vmem [shape: f32[16,32], index: 0, kind: input, shape index: {}]
  %s1 = inlined_call_operand.vmem [shape: f32[32,128], index: 1, kind: input, shape index: {}]
  %s2 = inlined_call_operand.vmem [shape: f32[32,128], index: 2, kind: input, shape index: {}]
  %s3 = inlined_call_operand.vmem [shape: f32[1,128], index: 3, kind: input, shape index: {}]
  %s4 = inlined_call_operand.vmem [shape: f32[64,128], index: 4, kind: input, shape index: {}]
  %s5 = inlined_call_operand.vmem [shape: f32[1,128], index: 5, kind: input, shape index: {}]
  %s6 = inlined_call_operand.vmem [shape: f32[64,128], index: 6, kind: input, shape index: {}]
  %s7 = inlined_call_operand.vmem [shape: f32[1,128], index: 7, kind: input, shape index: {}]
  %s8 = inlined_call_operand.vmem [shape: f32[32,128], index: 8, kind: input, shape index: {}]
  %s9 = inlined_call_operand.vmem [shape: f32[1,128], index: 9, kind: input, shape index: {}]
  %s10 = inlined_call_operand.hbm [shape: f32[2,8,128], index: 10, kind: output, shape index: {}]
  %s11 = sld [smem:[#allocation0]]
  $region50: #{lstm_model_forward.1} parent=0
    _
  %s13 = ssub.s32 1, %s11
  %s14 = scalar_select 0, %s13, %s11
  $region1: #{lstm_model_forward.1} parent=0
    #allocation2 [shape = 'u8[8192]{0}', space=vmem, size = 0x2000, scoped, tag = 'output window, operand 0, single buffered']
    #allocation3 [shape = 's32[1]{0}', space=sflag, size = 0x4, scoped, tag = 'scoped memory for lstm_model_forward.1']
    %15 = vsyncpa [#allocation3], 0
    // Predicated region
    $region2: #{lstm_model_forward.1} parent=1 // pred_check
      _
    $region3: #{lstm_model_forward.1} parent=1 // pred_check_branch
      %17 = sbr.rel (0) target = $region5
    $region4: #{lstm_model_forward.1} parent=1 // pred_region
      _
    $region5: #{lstm_model_forward.1} parent=1 // pred_fallthru
      _
    // Predicated region
    $region6: #{lstm_model_forward.1} parent=1 // pred_check
      _
    $region7: #{lstm_model_forward.1} parent=1 // pred_check_branch
      %19 = sbr.rel (0) target = $region9
    $region8: #{lstm_model_forward.1} parent=1 // pred_region
      _
    $region9: #{lstm_model_forward.1} parent=1 // pred_fallthru
      _
    // Predicated region
    $region10: #{lstm_model_forward.1} parent=1 // pred_check
      _
    $region11: #{lstm_model_forward.1} parent=1 // pred_check_branch
      %21 = sbr.rel (0) target = $region13
    $region12: #{lstm_model_forward.1} parent=1 // pred_region
      _
    $region13: #{lstm_model_forward.1} parent=1 // pred_fallthru
      _
    // Predicated region
    $region14: #{lstm_model_forward.1} parent=1 // pred_check
      _
    $region15: #{lstm_model_forward.1} parent=1 // pred_check_branch
      %23 = sbr.rel (0) target = $region17
    $region16: #{lstm_model_forward.1} parent=1 // pred_region
      _
    $region17: #{lstm_model_forward.1} parent=1 // pred_fallthru
      _
    // Predicated region
    $region18: #{lstm_model_forward.1} parent=1 // pred_check
      _
    $region19: #{lstm_model_forward.1} parent=1 // pred_check_branch
      %25 = sbr.rel (0) target = $region21
    $region20: #{lstm_model_forward.1} parent=1 // pred_region
      _
    $region21: #{lstm_model_forward.1} parent=1 // pred_fallthru
      _
    // Predicated region
    $region22: #{lstm_model_forward.1} parent=1 // pred_check
      _
    $region23: #{lstm_model_forward.1} parent=1 // pred_check_branch
      %27 = sbr.rel (0) target = $region25
    $region24: #{lstm_model_forward.1} parent=1 // pred_region
      _
    $region25: #{lstm_model_forward.1} parent=1 // pred_fallthru
      _
    // Predicated region
    $region26: #{lstm_model_forward.1} parent=1 // pred_check
      _
    $region27: #{lstm_model_forward.1} parent=1 // pred_check_branch
      %29 = sbr.rel (0) target = $region29
    $region28: #{lstm_model_forward.1} parent=1 // pred_region
      _
    $region29: #{lstm_model_forward.1} parent=1 // pred_fallthru
      _
    // Predicated region
    $region30: #{lstm_model_forward.1} parent=1 // pred_check
      _
    $region31: #{lstm_model_forward.1} parent=1 // pred_check_branch
      %31 = sbr.rel (0) target = $region33
    $region32: #{lstm_model_forward.1} parent=1 // pred_region
      _
    $region33: #{lstm_model_forward.1} parent=1 // pred_fallthru
      _
    // Predicated region
    $region34: #{lstm_model_forward.1} parent=1 // pred_check
      _
    $region35: #{lstm_model_forward.1} parent=1 // pred_check_branch
      %33 = sbr.rel (0) target = $region37
    $region36: #{lstm_model_forward.1} parent=1 // pred_region
      _
    $region37: #{lstm_model_forward.1} parent=1 // pred_fallthru
      _
    // Predicated region
    $region38: #{lstm_model_forward.1} parent=1 // pred_check
      _
    $region39: #{lstm_model_forward.1} parent=1 // pred_check_branch
      %35 = sbr.rel (0) target = $region41
    $region40: #{lstm_model_forward.1} parent=1 // pred_region
      _
    $region41: #{lstm_model_forward.1} parent=1 // pred_fallthru
      _
    %v36 = vld [vmem:[%s0] sm:$0xff]
    %v37 = vld [vmem:[%s0 + $0x8] sm:$0xff]
    %v38 = vld [vmem:[%s1] sm:$0xff]
    %v39 = vld [vmem:[%s1 + $0x8] sm:$0xff]
    %v40 = vld [vmem:[%s1 + $0x10] sm:$0xff]
    %v41 = vld [vmem:[%s1 + $0x18] sm:$0xff]
    %v42 = vld [vmem:[%s3] sm:$0x1]
    %v44 = vlaneseq
    %v45 = vshrl.u32 %v44, 7
    %v46 = vsub.s32 0, %v45
    %v47 = vrot.slane %v42, %v46
    %vm49 = vcmask 261120
    %v51 = vsel %vm49, %v36, 0
    %v54 = vsel %vm49, %v37, 0
    %56 = vmatprep.subr.mxu0 0.0
    %57 = vmatpush1.msra.mxu0 0.0
    %58 = vmatprep.subr.mxu0 0.0
    %59 = vmatpush1.msra.mxu0 0.0
    %60 = vmatprep.subr.mxu0 0.0
    %61 = vmatpush1.msra.mxu0 0.0
    %62 = vmatprep.subr.mxu0 0.0
    %63 = vmatpush1.msra.mxu0 0.0
    %64 = vmatprep.subr.mxu0 0.0
    %65 = vmatpush1.msra.mxu0 0.0
    %66 = vmatprep.subr.mxu0 0.0
    %67 = vmatpush1.msra.mxu0 0.0
    %68 = vmatprep.subr.mxu0 0.0
    %69 = vmatpush1.msra.mxu0 0.0
    %70 = vmatprep.subr.mxu0 0.0
    %71 = vmatpush1.msra.mxu0 0.0
    %72 = vmatprep.subr.mxu0 0.0
    %73 = vmatpush1.msra.mxu0 0.0
    %74 = vmatprep.subr.mxu0 0.0
    %75 = vmatpush1.msra.mxu0 0.0
    %76 = vmatprep.subr.mxu0 0.0
    %77 = vmatpush1.msra.mxu0 0.0
    %78 = vmatprep.subr.mxu0 0.0
    %79 = vmatpush1.msra.mxu0 0.0
    %80 = vmatprep.subr.mxu0 0.0
    %81 = vmatpush1.msra.mxu0 %v41
    %82 = vmatprep.subr.mxu0 0.0
    %83 = vmatpush1.msra.mxu0 %v40
    %84 = vmatprep.subr.mxu0 0.0
    %85 = vmatpush1.msra.mxu0 %v39
    %86 = vmatprep.subr.mxu0 0.0
    %87 = vmatpush1.msra.mxu0 %v38
    %88 = vmatprep.subr.mxu0 0.0
    %89 = vmatpush2.msra.mxu0 0.0
    %90 = vmatprep.subr.mxu0 0.0
    %91 = vmatpush2.msra.mxu0 0.0
    %92 = vmatprep.subr.mxu0 0.0
    %93 = vmatpush2.msra.mxu0 0.0
    %94 = vmatprep.subr.mxu0 0.0
    %95 = vmatpush2.msra.mxu0 0.0
    %96 = vmatprep.subr.mxu0 0.0
    %97 = vmatpush2.msra.mxu0 0.0
    %98 = vmatprep.subr.mxu0 0.0
    %99 = vmatpush2.msra.mxu0 0.0
    %100 = vmatprep.subr.mxu0 0.0
    %101 = vmatpush2.msra.mxu0 0.0
    %102 = vmatprep.subr.mxu0 0.0
    %103 = vmatpush2.msra.mxu0 0.0
    %104 = vmatprep.subr.mxu0 0.0
    %105 = vmatpush2.msra.mxu0 0.0
    %106 = vmatprep.subr.mxu0 0.0
    %107 = vmatpush2.msra.mxu0 0.0
    %108 = vmatprep.subr.mxu0 0.0
    %109 = vmatpush2.msra.mxu0 0.0
    %110 = vmatprep.subr.mxu0 0.0
    %111 = vmatpush2.msra.mxu0 0.0
    %112 = vmatprep.subr.mxu0 0.0
    %113 = vmatpush2.msra.mxu0 0.0
    %114 = vmatprep.subr.mxu0 0.0
    %115 = vmatpush2.msra.mxu0 0.0
    %116 = vmatprep.subr.mxu0 0.0
    %117 = vmatpush2.msra.mxu0 0.0
    %118 = vmatprep.subr.mxu0 0.0
    %119 = vmatpush2.msra.mxu0 0.0
    %120 = vmatprep.mubr.f32.mxu0 0.0
    %121 = vmatmul.mubr.f32.gmra.mxu0 %v51
    %v122 = vpop.f32.mrf.mxu0
    %v123 = vadd.f32 %v47, %v122
    %v124 = vpop.f32.mrf.mxu0
    %125 = vmatprep.mubr.f32.mxu0 0.0
    %126 = vmatmul.mubr.f32.gmra.mxu0 %v54
    %v127 = vpop.f32.mrf.mxu0
    %v128 = vadd.f32 %v47, %v127
    %v129 = vpop.f32.mrf.mxu0
    %130 = vdwg.mxu0
    %v131 = vld [vmem:[%s2] sm:$0xff]
    %v132 = vld [vmem:[%s2 + $0x8] sm:$0xff]
    %v133 = vld [vmem:[%s2 + $0x10] sm:$0xff]
    %v134 = vld [vmem:[%s2 + $0x18] sm:$0xff]
    %v135 = vld [vmem:[%s4] sm:$0xff]
    %v136 = vld [vmem:[%s4 + $0x8] sm:$0xff]
    %v137 = vld [vmem:[%s4 + $0x10] sm:$0xff]
    %v138 = vld [vmem:[%s4 + $0x18] sm:$0xff]
    %v139 = vld [vmem:[%s4 + $0x20] sm:$0xff]
    %v140 = vld [vmem:[%s4 + $0x28] sm:$0xff]
    %v141 = vld [vmem:[%s4 + $0x30] sm:$0xff]
    %v142 = vld [vmem:[%s4 + $0x38] sm:$0xff]
    %v143 = vld [vmem:[%s5] sm:$0x1]
    %v144 = vld [vmem:[%s6] sm:$0xff]
    %v145 = vld [vmem:[%s6 + $0x8] sm:$0xff]
    %v146 = vld [vmem:[%s6 + $0x10] sm:$0xff]
    %v147 = vld [vmem:[%s6 + $0x18] sm:$0xff]
    %v148 = vld [vmem:[%s6 + $0x20] sm:$0xff]
    %v149 = vld [vmem:[%s6 + $0x28] sm:$0xff]
    %v150 = vld [vmem:[%s6 + $0x30] sm:$0xff]
    %v151 = vld [vmem:[%s6 + $0x38] sm:$0xff]
    %v152 = vld [vmem:[%s7] sm:$0x1]
    %v153 = vld [vmem:[%s8] sm:$0xff]
    %v154 = vld [vmem:[%s8 + $0x8] sm:$0xff]
    %v155 = vld [vmem:[%s8 + $0x10] sm:$0xff]
    %v156 = vld [vmem:[%s8 + $0x18] sm:$0xff]
    %v157 = vld [vmem:[%s9] sm:$0x1]
    %v159 = vlaneseq
    %v160 = vshrl.u32 %v159, 7
    %v161 = vsub.s32 0, %v160
    %v162 = vrot.slane %v157, %v161
    %v165 = vsel %vm49, 0.0, 0
    %167 = vmatprep.subr.mxu0 0.0
    %168 = vmatpush1.msra.mxu0 0.0
    %169 = vmatprep.subr.mxu0 0.0
    %170 = vmatpush1.msra.mxu0 0.0
    %171 = vmatprep.subr.mxu0 0.0
    %172 = vmatpush1.msra.mxu0 0.0
    %173 = vmatprep.subr.mxu0 0.0
    %174 = vmatpush1.msra.mxu0 0.0
    %175 = vmatprep.subr.mxu0 0.0
    %176 = vmatpush1.msra.mxu0 0.0
    %177 = vmatprep.subr.mxu0 0.0
    %178 = vmatpush1.msra.mxu0 0.0
    %179 = vmatprep.subr.mxu0 0.0
    %180 = vmatpush1.msra.mxu0 0.0
    %181 = vmatprep.subr.mxu0 0.0
    %182 = vmatpush1.msra.mxu0 0.0
    %183 = vmatprep.subr.mxu0 0.0
    %184 = vmatpush1.msra.mxu0 0.0
    %185 = vmatprep.subr.mxu0 0.0
    %186 = vmatpush1.msra.mxu0 0.0
    %187 = vmatprep.subr.mxu0 0.0
    %188 = vmatpush1.msra.mxu0 0.0
    %189 = vmatprep.subr.mxu0 0.0
    %190 = vmatpush1.msra.mxu0 0.0
    %191 = vmatprep.subr.mxu0 0.0
    %192 = vmatpush1.msra.mxu0 %v134
    %193 = vmatprep.subr.mxu0 0.0
    %194 = vmatpush1.msra.mxu0 %v133
    %195 = vmatprep.subr.mxu0 0.0
    %196 = vmatpush1.msra.mxu0 %v132
    %197 = vmatprep.subr.mxu0 0.0
    %198 = vmatpush1.msra.mxu0 %v131
    %199 = vmatprep.subr.mxu0 0.0
    %200 = vmatpush2.msra.mxu0 0.0
    %201 = vmatprep.subr.mxu0 0.0
    %202 = vmatpush2.msra.mxu0 0.0
    %203 = vmatprep.subr.mxu0 0.0
    %204 = vmatpush2.msra.mxu0 0.0
    %205 = vmatprep.subr.mxu0 0.0
    %206 = vmatpush2.msra.mxu0 0.0
    %207 = vmatprep.subr.mxu0 0.0
    %208 = vmatpush2.msra.mxu0 0.0
    %209 = vmatprep.subr.mxu0 0.0
    %210 = vmatpush2.msra.mxu0 0.0
    %211 = vmatprep.subr.mxu0 0.0
    %212 = vmatpush2.msra.mxu0 0.0
    %213 = vmatprep.subr.mxu0 0.0
    %214 = vmatpush2.msra.mxu0 0.0
    %215 = vmatprep.subr.mxu0 0.0
    %216 = vmatpush2.msra.mxu0 0.0
    %217 = vmatprep.subr.mxu0 0.0
    %218 = vmatpush2.msra.mxu0 0.0
    %219 = vmatprep.subr.mxu0 0.0
    %220 = vmatpush2.msra.mxu0 0.0
    %221 = vmatprep.subr.mxu0 0.0
    %222 = vmatpush2.msra.mxu0 0.0
    %223 = vmatprep.subr.mxu0 0.0
    %224 = vmatpush2.msra.mxu0 0.0
    %225 = vmatprep.subr.mxu0 0.0
    %226 = vmatpush2.msra.mxu0 0.0
    %227 = vmatprep.subr.mxu0 0.0
    %228 = vmatpush2.msra.mxu0 0.0
    %229 = vmatprep.subr.mxu0 0.0
    %230 = vmatpush2.msra.mxu0 0.0
    %231 = vmatprep.mubr.f32.mxu0 0.0
    %232 = vmatmul.mubr.f32.gmra.mxu0 %v165
    %v233 = vpop.f32.mrf.mxu0
    %v234 = vadd.f32 0.0, %v233
    %v235 = vpop.f32.mrf.mxu0
    %236 = vdwg.mxu0
    %v237 = vadd.f32 %v123, %v234
    %v238 = vxor.u32 %v237, 2147483648
    %v239 = vmul.f32 %v238, 1.442695
    %v240 = vpow.pop %v239
    %v241 = vadd.f32 %v240, 1.0
    %v242 = vrcp.pop %v241
    %v243 = vmul.f32 1.0, %v242
    %v244 = vtanh.pop %v237
    %v245 = vmul.f32 %v243, 0.0
    %247 = vrot.lane.b32.xlu0 %v244, 64
    %v248 = vpop.permute.xlu0 %247
    %v250 = vmul.f32 %v243, %v248
    %252 = vrot.lane.b32.xlu0 %v250, 32
    %v253 = vpop.permute.xlu0 %252
    %v255 = vadd.f32 %v245, %v253
    %v256 = vtanh.pop %v255
    %258 = vrot.lane.b32.xlu0 %v256, 64
    %v259 = vpop.permute.xlu0 %258
    %v261 = vmul.f32 %v243, %v259
    %263 = vrot.lane.b32.xlu0 %v261, 32
    %v264 = vpop.permute.xlu0 %263
    %v265 = vsel %vm49, %v264, 0
    %267 = vmatprep.subr.mxu0 0.0
    %268 = vmatpush1.msra.mxu0 0.0
    %269 = vmatprep.subr.mxu0 0.0
    %270 = vmatpush1.msra.mxu0 0.0
    %271 = vmatprep.subr.mxu0 0.0
    %272 = vmatpush1.msra.mxu0 0.0
    %273 = vmatprep.subr.mxu0 0.0
    %274 = vmatpush1.msra.mxu0 0.0
    %275 = vmatprep.subr.mxu0 0.0
    %276 = vmatpush1.msra.mxu0 0.0
    %277 = vmatprep.subr.mxu0 0.0
    %278 = vmatpush1.msra.mxu0 0.0
    %279 = vmatprep.subr.mxu0 0.0
    %280 = vmatpush1.msra.mxu0 0.0
    %281 = vmatprep.subr.mxu0 0.0
    %282 = vmatpush1.msra.mxu0 0.0
    %283 = vmatprep.subr.mxu0 0.0
    %284 = vmatpush1.msra.mxu0 0.0
    %285 = vmatprep.subr.mxu0 0.0
    %286 = vmatpush1.msra.mxu0 0.0
    %287 = vmatprep.subr.mxu0 0.0
    %288 = vmatpush1.msra.mxu0 0.0
    %289 = vmatprep.subr.mxu0 0.0
    %290 = vmatpush1.msra.mxu0 0.0
    %291 = vmatprep.subr.mxu0 0.0
    %292 = vmatpush1.msra.mxu0 %v134
    %293 = vmatprep.subr.mxu0 0.0
    %294 = vmatpush1.msra.mxu0 %v133
    %295 = vmatprep.subr.mxu0 0.0
    %296 = vmatpush1.msra.mxu0 %v132
    %297 = vmatprep.subr.mxu0 0.0
    %298 = vmatpush1.msra.mxu0 %v131
    %299 = vmatprep.subr.mxu0 0.0
    %300 = vmatpush2.msra.mxu0 0.0
    %301 = vmatprep.subr.mxu0 0.0
    %302 = vmatpush2.msra.mxu0 0.0
    %303 = vmatprep.subr.mxu0 0.0
    %304 = vmatpush2.msra.mxu0 0.0
    %305 = vmatprep.subr.mxu0 0.0
    %306 = vmatpush2.msra.mxu0 0.0
    %307 = vmatprep.subr.mxu0 0.0
    %308 = vmatpush2.msra.mxu0 0.0
    %309 = vmatprep.subr.mxu0 0.0
    %310 = vmatpush2.msra.mxu0 0.0
    %311 = vmatprep.subr.mxu0 0.0
    %312 = vmatpush2.msra.mxu0 0.0
    %313 = vmatprep.subr.mxu0 0.0
    %314 = vmatpush2.msra.mxu0 0.0
    %315 = vmatprep.subr.mxu0 0.0
    %316 = vmatpush2.msra.mxu0 0.0
    %317 = vmatprep.subr.mxu0 0.0
    %318 = vmatpush2.msra.mxu0 0.0
    %319 = vmatprep.subr.mxu0 0.0
    %320 = vmatpush2.msra.mxu0 0.0
    %321 = vmatprep.subr.mxu0 0.0
    %322 = vmatpush2.msra.mxu0 0.0
    %323 = vmatprep.subr.mxu0 0.0
    %324 = vmatpush2.msra.mxu0 0.0
    %325 = vmatprep.subr.mxu0 0.0
    %326 = vmatpush2.msra.mxu0 0.0
    %327 = vmatprep.subr.mxu0 0.0
    %328 = vmatpush2.msra.mxu0 0.0
    %329 = vmatprep.subr.mxu0 0.0
    %330 = vmatpush2.msra.mxu0 0.0
    %331 = vmatprep.mubr.f32.mxu0 0.0
    %332 = vmatmul.mubr.f32.gmra.mxu0 %v265
    %v333 = vpop.f32.mrf.mxu0
    %v334 = vadd.f32 0.0, %v333
    %v335 = vpop.f32.mrf.mxu0
    %336 = vdwg.mxu0
    %v338 = vrot.slane %v334, 6
    %v340 = vadd.f32 %v123, %v338
    %v342 = vsel %vm49, %v264, 0.0
    %v344 = vlaneseq
    %v345 = vshrl.u32 %v344, 7
    %v346 = vsub.s32 0, %v345
    %v347 = vrot.slane %v143, %v346
    %vm349 = vcmask 523264
    %v351 = vsel %vm349, %v342, 0
    %353 = vmatprep.subr.mxu0 0.0
    %354 = vmatpush1.msra.mxu0 0.0
    %355 = vmatprep.subr.mxu0 0.0
    %356 = vmatpush1.msra.mxu0 0.0
    %357 = vmatprep.subr.mxu0 0.0
    %358 = vmatpush1.msra.mxu0 0.0
    %359 = vmatprep.subr.mxu0 0.0
    %360 = vmatpush1.msra.mxu0 0.0
    %361 = vmatprep.subr.mxu0 0.0
    %362 = vmatpush1.msra.mxu0 0.0
    %363 = vmatprep.subr.mxu0 0.0
    %364 = vmatpush1.msra.mxu0 0.0
    %365 = vmatprep.subr.mxu0 0.0
    %366 = vmatpush1.msra.mxu0 0.0
    %367 = vmatprep.subr.mxu0 0.0
    %368 = vmatpush1.msra.mxu0 0.0
    %369 = vmatprep.subr.mxu0 0.0
    %370 = vmatpush1.msra.mxu0 %v142
    %371 = vmatprep.subr.mxu0 0.0
    %372 = vmatpush1.msra.mxu0 %v141
    %373 = vmatprep.subr.mxu0 0.0
    %374 = vmatpush1.msra.mxu0 %v140
    %375 = vmatprep.subr.mxu0 0.0
    %376 = vmatpush1.msra.mxu0 %v139
    %377 = vmatprep.subr.mxu0 0.0
    %378 = vmatpush1.msra.mxu0 %v138
    %379 = vmatprep.subr.mxu0 0.0
    %380 = vmatpush1.msra.mxu0 %v137
    %381 = vmatprep.subr.mxu0 0.0
    %382 = vmatpush1.msra.mxu0 %v136
    %383 = vmatprep.subr.mxu0 0.0
    %384 = vmatpush1.msra.mxu0 %v135
    %385 = vmatprep.subr.mxu0 0.0
    %386 = vmatpush2.msra.mxu0 0.0
    %387 = vmatprep.subr.mxu0 0.0
    %388 = vmatpush2.msra.mxu0 0.0
    %389 = vmatprep.subr.mxu0 0.0
    %390 = vmatpush2.msra.mxu0 0.0
    %391 = vmatprep.subr.mxu0 0.0
    %392 = vmatpush2.msra.mxu0 0.0
    %393 = vmatprep.subr.mxu0 0.0
    %394 = vmatpush2.msra.mxu0 0.0
    %395 = vmatprep.subr.mxu0 0.0
    %396 = vmatpush2.msra.mxu0 0.0
    %397 = vmatprep.subr.mxu0 0.0
    %398 = vmatpush2.msra.mxu0 0.0
    %399 = vmatprep.subr.mxu0 0.0
    %400 = vmatpush2.msra.mxu0 0.0
    %401 = vmatprep.subr.mxu0 0.0
    %402 = vmatpush2.msra.mxu0 0.0
    %403 = vmatprep.subr.mxu0 0.0
    %404 = vmatpush2.msra.mxu0 0.0
    %405 = vmatprep.subr.mxu0 0.0
    %406 = vmatpush2.msra.mxu0 0.0
    %407 = vmatprep.subr.mxu0 0.0
    %408 = vmatpush2.msra.mxu0 0.0
    %409 = vmatprep.subr.mxu0 0.0
    %410 = vmatpush2.msra.mxu0 0.0
    %411 = vmatprep.subr.mxu0 0.0
    %412 = vmatpush2.msra.mxu0 0.0
    %413 = vmatprep.subr.mxu0 0.0
    %414 = vmatpush2.msra.mxu0 0.0
    %415 = vmatprep.subr.mxu0 0.0
    %416 = vmatpush2.msra.mxu0 0.0
    %417 = vmatprep.mubr.f32.mxu0 0.0
    %418 = vmatmul.mubr.f32.gmra.mxu0 %v351
    %v419 = vpop.f32.mrf.mxu0
    %v420 = vadd.f32 %v347, %v419
    %v421 = vpop.f32.mrf.mxu0
    %422 = vdwg.mxu0
    %v423 = vxor.u32 %v340, 2147483648
    %v424 = vmul.f32 %v423, 1.442695
    %v425 = vpow.pop %v424
    %v426 = vadd.f32 %v425, 1.0
    %v427 = vrcp.pop %v426
    %v428 = vmul.f32 1.0, %v427
    %v429 = vtanh.pop %v340
    %v431 = vrot.slane %v255, 6
    %v433 = vmul.f32 %v428, %v431
    %435 = vrot.lane.b32.xlu0 %v429, 64
    %v436 = vpop.permute.xlu0 %435
    %v438 = vmul.f32 %v428, %v436
    %440 = vrot.lane.b32.xlu0 %v438, 32
    %v441 = vpop.permute.xlu0 %440
    %v443 = vadd.f32 %v433, %v441
    %v444 = vtanh.pop %v443
    %446 = vrot.lane.b32.xlu0 %v444, 64
    %v447 = vpop.permute.xlu0 %446
    %v449 = vmul.f32 %v428, %v447
    %v450 = vxor.u32 %v420, 2147483648
    %v451 = vmul.f32 %v450, 1.442695
    %v452 = vpow.pop %v451
    %v453 = vadd.f32 %v452, 1.0
    %v454 = vrcp.pop %v453
    %v455 = vmul.f32 1.0, %v454
    %v456 = vtanh.pop %v420
    %v457 = vmul.f32 %v455, 0.0
    %459 = vrot.lane.b32.xlu0 %v456, 64
    %v460 = vpop.permute.xlu0 %459
    %v462 = vmul.f32 %v455, %v460
    %464 = vrot.lane.b32.xlu0 %v462, 32
    %v465 = vpop.permute.xlu0 %464
    %v467 = vadd.f32 %v457, %v465
    %v468 = vtanh.pop %v467
    %470 = vrot.lane.b32.xlu0 %v468, 64
    %v471 = vpop.permute.xlu0 %470
    %v473 = vmul.f32 %v455, %v471
    %v475 = vrot.slane %v449, 2
    %476 = vrot.lane.b32.xlu0 %v475, 32
    %v477 = vpop.permute.xlu0 %476
    %v478 = vsel %vm49, %v477, 0
    %480 = vmatprep.subr.mxu0 0.0
    %481 = vmatpush1.msra.mxu0 0.0
    %482 = vmatprep.subr.mxu0 0.0
    %483 = vmatpush1.msra.mxu0 0.0
    %484 = vmatprep.subr.mxu0 0.0
    %485 = vmatpush1.msra.mxu0 0.0
    %486 = vmatprep.subr.mxu0 0.0
    %487 = vmatpush1.msra.mxu0 0.0
    %488 = vmatprep.subr.mxu0 0.0
    %489 = vmatpush1.msra.mxu0 0.0
    %490 = vmatprep.subr.mxu0 0.0
    %491 = vmatpush1.msra.mxu0 0.0
    %492 = vmatprep.subr.mxu0 0.0
    %493 = vmatpush1.msra.mxu0 0.0
    %494 = vmatprep.subr.mxu0 0.0
    %495 = vmatpush1.msra.mxu0 0.0
    %496 = vmatprep.subr.mxu0 0.0
    %497 = vmatpush1.msra.mxu0 0.0
    %498 = vmatprep.subr.mxu0 0.0
    %499 = vmatpush1.msra.mxu0 0.0
    %500 = vmatprep.subr.mxu0 0.0
    %501 = vmatpush1.msra.mxu0 0.0
    %502 = vmatprep.subr.mxu0 0.0
    %503 = vmatpush1.msra.mxu0 0.0
    %504 = vmatprep.subr.mxu0 0.0
    %505 = vmatpush1.msra.mxu0 %v134
    %506 = vmatprep.subr.mxu0 0.0
    %507 = vmatpush1.msra.mxu0 %v133
    %508 = vmatprep.subr.mxu0 0.0
    %509 = vmatpush1.msra.mxu0 %v132
    %510 = vmatprep.subr.mxu0 0.0
    %511 = vmatpush1.msra.mxu0 %v131
    %512 = vmatprep.subr.mxu0 0.0
    %513 = vmatpush2.msra.mxu0 0.0
    %514 = vmatprep.subr.mxu0 0.0
    %515 = vmatpush2.msra.mxu0 0.0
    %516 = vmatprep.subr.mxu0 0.0
    %517 = vmatpush2.msra.mxu0 0.0
    %518 = vmatprep.subr.mxu0 0.0
    %519 = vmatpush2.msra.mxu0 0.0
    %520 = vmatprep.subr.mxu0 0.0
    %521 = vmatpush2.msra.mxu0 0.0
    %522 = vmatprep.subr.mxu0 0.0
    %523 = vmatpush2.msra.mxu0 0.0
    %524 = vmatprep.subr.mxu0 0.0
    %525 = vmatpush2.msra.mxu0 0.0
    %526 = vmatprep.subr.mxu0 0.0
    %527 = vmatpush2.msra.mxu0 0.0
    %528 = vmatprep.subr.mxu0 0.0
    %529 = vmatpush2.msra.mxu0 0.0
    %530 = vmatprep.subr.mxu0 0.0
    %531 = vmatpush2.msra.mxu0 0.0
    %532 = vmatprep.subr.mxu0 0.0
    %533 = vmatpush2.msra.mxu0 0.0
    %534 = vmatprep.subr.mxu0 0.0
    %535 = vmatpush2.msra.mxu0 0.0
    %536 = vmatprep.subr.mxu0 0.0
    %537 = vmatpush2.msra.mxu0 0.0
    %538 = vmatprep.subr.mxu0 0.0
    %539 = vmatpush2.msra.mxu0 0.0
    %540 = vmatprep.subr.mxu0 0.0
    %541 = vmatpush2.msra.mxu0 0.0
    %542 = vmatprep.subr.mxu0 0.0
    %543 = vmatpush2.msra.mxu0 0.0
    %544 = vmatprep.mubr.f32.mxu0 0.0
    %545 = vmatmul.mubr.f32.gmra.mxu0 %v478
    %v546 = vpop.f32.mrf.mxu0
    %v547 = vadd.f32 0.0, %v546
    %v548 = vpop.f32.mrf.mxu0
    %549 = vdwg.mxu0
    %v551 = vrot.slane %v547, 4
    %v553 = vadd.f32 %v123, %v551
    %554 = vrot.lane.b32.xlu0 %v449, 32
    %v555 = vpop.permute.xlu0 %554
    %v558 = vrot.slane %v473, 6
    %559 = vrot.lane.b32.xlu0 %v558, 64
    %v560 = vpop.permute.xlu0 %559
    %v562 = vsel %vm49, %v555, %v560
    %v564 = vrot.slane %v562, 2
    %v565 = vsel %vm349, %v564, 0
    %567 = vmatprep.subr.mxu0 0.0
    %568 = vmatpush1.msra.mxu0 0.0
    %569 = vmatprep.subr.mxu0 0.0
    %570 = vmatpush1.msra.mxu0 0.0
    %571 = vmatprep.subr.mxu0 0.0
    %572 = vmatpush1.msra.mxu0 0.0
    %573 = vmatprep.subr.mxu0 0.0
    %574 = vmatpush1.msra.mxu0 0.0
    %575 = vmatprep.subr.mxu0 0.0
    %576 = vmatpush1.msra.mxu0 0.0
    %577 = vmatprep.subr.mxu0 0.0
    %578 = vmatpush1.msra.mxu0 0.0
    %579 = vmatprep.subr.mxu0 0.0
    %580 = vmatpush1.msra.mxu0 0.0
    %581 = vmatprep.subr.mxu0 0.0
    %582 = vmatpush1.msra.mxu0 0.0
    %583 = vmatprep.subr.mxu0 0.0
    %584 = vmatpush1.msra.mxu0 %v142
    %585 = vmatprep.subr.mxu0 0.0
    %586 = vmatpush1.msra.mxu0 %v141
    %587 = vmatprep.subr.mxu0 0.0
    %588 = vmatpush1.msra.mxu0 %v140
    %589 = vmatprep.subr.mxu0 0.0
    %590 = vmatpush1.msra.mxu0 %v139
    %591 = vmatprep.subr.mxu0 0.0
    %592 = vmatpush1.msra.mxu0 %v138
    %593 = vmatprep.subr.mxu0 0.0
    %594 = vmatpush1.msra.mxu0 %v137
    %595 = vmatprep.subr.mxu0 0.0
    %596 = vmatpush1.msra.mxu0 %v136
    %597 = vmatprep.subr.mxu0 0.0
    %598 = vmatpush1.msra.mxu0 %v135
    %599 = vmatprep.subr.mxu0 0.0
    %600 = vmatpush2.msra.mxu0 0.0
    %601 = vmatprep.subr.mxu0 0.0
    %602 = vmatpush2.msra.mxu0 0.0
    %603 = vmatprep.subr.mxu0 0.0
    %604 = vmatpush2.msra.mxu0 0.0
    %605 = vmatprep.subr.mxu0 0.0
    %606 = vmatpush2.msra.mxu0 0.0
    %607 = vmatprep.subr.mxu0 0.0
    %608 = vmatpush2.msra.mxu0 0.0
    %609 = vmatprep.subr.mxu0 0.0
    %610 = vmatpush2.msra.mxu0 0.0
    %611 = vmatprep.subr.mxu0 0.0
    %612 = vmatpush2.msra.mxu0 0.0
    %613 = vmatprep.subr.mxu0 0.0
    %614 = vmatpush2.msra.mxu0 0.0
    %615 = vmatprep.subr.mxu0 0.0
    %616 = vmatpush2.msra.mxu0 0.0
    %617 = vmatprep.subr.mxu0 0.0
    %618 = vmatpush2.msra.mxu0 0.0
    %619 = vmatprep.subr.mxu0 0.0
    %620 = vmatpush2.msra.mxu0 0.0
    %621 = vmatprep.subr.mxu0 0.0
    %622 = vmatpush2.msra.mxu0 0.0
    %623 = vmatprep.subr.mxu0 0.0
    %624 = vmatpush2.msra.mxu0 0.0
    %625 = vmatprep.subr.mxu0 0.0
    %626 = vmatpush2.msra.mxu0 0.0
    %627 = vmatprep.subr.mxu0 0.0
    %628 = vmatpush2.msra.mxu0 0.0
    %629 = vmatprep.subr.mxu0 0.0
    %630 = vmatpush2.msra.mxu0 0.0
    %631 = vmatprep.mubr.f32.mxu0 0.0
    %632 = vmatmul.mubr.f32.gmra.mxu0 %v565
    %v633 = vpop.f32.mrf.mxu0
    %v634 = vadd.f32 %v347, %v633
    %v635 = vpop.f32.mrf.mxu0
    %636 = vdwg.mxu0
    %637 = vrot.lane.b32.xlu0 %v473, 32
    %v638 = vpop.permute.xlu0 %637
    %v640 = vsel %vm49, %v638, 0.0
    %v642 = vlaneseq
    %v643 = vshrl.u32 %v642, 7
    %v644 = vsub.s32 0, %v643
    %v645 = vrot.slane %v152, %v644
    %v648 = vsel %vm349, %v640, 0
    %650 = vmatprep.subr.mxu0 0.0
    %651 = vmatpush1.msra.mxu0 0.0
    %652 = vmatprep.subr.mxu0 0.0
    %653 = vmatpush1.msra.mxu0 0.0
    %654 = vmatprep.subr.mxu0 0.0
    %655 = vmatpush1.msra.mxu0 0.0
    %656 = vmatprep.subr.mxu0 0.0
    %657 = vmatpush1.msra.mxu0 0.0
    %658 = vmatprep.subr.mxu0 0.0
    %659 = vmatpush1.msra.mxu0 0.0
    %660 = vmatprep.subr.mxu0 0.0
    %661 = vmatpush1.msra.mxu0 0.0
    %662 = vmatprep.subr.mxu0 0.0
    %663 = vmatpush1.msra.mxu0 0.0
    %664 = vmatprep.subr.mxu0 0.0
    %665 = vmatpush1.msra.mxu0 0.0
    %666 = vmatprep.subr.mxu0 0.0
    %667 = vmatpush1.msra.mxu0 %v151
    %668 = vmatprep.subr.mxu0 0.0
    %669 = vmatpush1.msra.mxu0 %v150
    %670 = vmatprep.subr.mxu0 0.0
    %671 = vmatpush1.msra.mxu0 %v149
    %672 = vmatprep.subr.mxu0 0.0
    %673 = vmatpush1.msra.mxu0 %v148
    %674 = vmatprep.subr.mxu0 0.0
    %675 = vmatpush1.msra.mxu0 %v147
    %676 = vmatprep.subr.mxu0 0.0
    %677 = vmatpush1.msra.mxu0 %v146
    %678 = vmatprep.subr.mxu0 0.0
    %679 = vmatpush1.msra.mxu0 %v145
    %680 = vmatprep.subr.mxu0 0.0
    %681 = vmatpush1.msra.mxu0 %v144
    %682 = vmatprep.subr.mxu0 0.0
    %683 = vmatpush2.msra.mxu0 0.0
    %684 = vmatprep.subr.mxu0 0.0
    %685 = vmatpush2.msra.mxu0 0.0
    %686 = vmatprep.subr.mxu0 0.0
    %687 = vmatpush2.msra.mxu0 0.0
    %688 = vmatprep.subr.mxu0 0.0
    %689 = vmatpush2.msra.mxu0 0.0
    %690 = vmatprep.subr.mxu0 0.0
    %691 = vmatpush2.msra.mxu0 0.0
    %692 = vmatprep.subr.mxu0 0.0
    %693 = vmatpush2.msra.mxu0 0.0
    %694 = vmatprep.subr.mxu0 0.0
    %695 = vmatpush2.msra.mxu0 0.0
    %696 = vmatprep.subr.mxu0 0.0
    %697 = vmatpush2.msra.mxu0 0.0
    %698 = vmatprep.subr.mxu0 0.0
    %699 = vmatpush2.msra.mxu0 0.0
    %700 = vmatprep.subr.mxu0 0.0
    %701 = vmatpush2.msra.mxu0 0.0
    %702 = vmatprep.subr.mxu0 0.0
    %703 = vmatpush2.msra.mxu0 0.0
    %704 = vmatprep.subr.mxu0 0.0
    %705 = vmatpush2.msra.mxu0 0.0
    %706 = vmatprep.subr.mxu0 0.0
    %707 = vmatpush2.msra.mxu0 0.0
    %708 = vmatprep.subr.mxu0 0.0
    %709 = vmatpush2.msra.mxu0 0.0
    %710 = vmatprep.subr.mxu0 0.0
    %711 = vmatpush2.msra.mxu0 0.0
    %712 = vmatprep.subr.mxu0 0.0
    %713 = vmatpush2.msra.mxu0 0.0
    %714 = vmatprep.mubr.f32.mxu0 0.0
    %715 = vmatmul.mubr.f32.gmra.mxu0 %v648
    %v716 = vpop.f32.mrf.mxu0
    %v717 = vadd.f32 %v645, %v716
    %v718 = vpop.f32.mrf.mxu0
    %719 = vdwg.mxu0
    %v720 = vxor.u32 %v553, 2147483648
    %v721 = vmul.f32 %v720, 1.442695
    %v722 = vpow.pop %v721
    %v723 = vadd.f32 %v722, 1.0
    %v724 = vrcp.pop %v723
    %v725 = vmul.f32 1.0, %v724
    %v726 = vtanh.pop %v553
    %v728 = vrot.slane %v443, 6
    %v730 = vmul.f32 %v725, %v728
    %732 = vrot.lane.b32.xlu0 %v726, 64
    %v733 = vpop.permute.xlu0 %732
    %v735 = vmul.f32 %v725, %v733
    %737 = vrot.lane.b32.xlu0 %v735, 32
    %v738 = vpop.permute.xlu0 %737
    %v740 = vadd.f32 %v730, %v738
    %v741 = vtanh.pop %v740
    %743 = vrot.lane.b32.xlu0 %v741, 64
    %v744 = vpop.permute.xlu0 %743
    %v746 = vmul.f32 %v725, %v744
    %v747 = vxor.u32 %v634, 2147483648
    %v748 = vmul.f32 %v747, 1.442695
    %v749 = vpow.pop %v748
    %v750 = vadd.f32 %v749, 1.0
    %v751 = vrcp.pop %v750
    %v752 = vmul.f32 1.0, %v751
    %v753 = vtanh.pop %v634
    %v754 = vmul.f32 %v752, %v467
    %756 = vrot.lane.b32.xlu0 %v753, 64
    %v757 = vpop.permute.xlu0 %756
    %v759 = vmul.f32 %v752, %v757
    %761 = vrot.lane.b32.xlu0 %v759, 32
    %v762 = vpop.permute.xlu0 %761
    %v764 = vadd.f32 %v754, %v762
    %v765 = vtanh.pop %v764
    %767 = vrot.lane.b32.xlu0 %v765, 64
    %v768 = vpop.permute.xlu0 %767
    %v770 = vmul.f32 %v752, %v768
    %v771 = vxor.u32 %v717, 2147483648
    %v772 = vmul.f32 %v771, 1.442695
    %v773 = vpow.pop %v772
    %v774 = vadd.f32 %v773, 1.0
    %v775 = vrcp.pop %v774
    %v776 = vmul.f32 1.0, %v775
    %v777 = vtanh.pop %v717
    %v778 = vmul.f32 %v776, 0.0
    %780 = vrot.lane.b32.xlu0 %v777, 64
    %v781 = vpop.permute.xlu0 %780
    %v783 = vmul.f32 %v776, %v781
    %785 = vrot.lane.b32.xlu0 %v783, 32
    %v786 = vpop.permute.xlu0 %785
    %v788 = vadd.f32 %v778, %v786
    %v789 = vtanh.pop %v788
    %791 = vrot.lane.b32.xlu0 %v789, 64
    %v792 = vpop.permute.xlu0 %791
    %v794 = vmul.f32 %v776, %v792
    %796 = vrot.lane.b32.xlu0 %v794, 32
    %v797 = vpop.permute.xlu0 %796
    %v798 = vsel %vm49, %v797, 0
    %800 = vmatprep.subr.mxu0 0.0
    %801 = vmatpush1.msra.mxu0 0.0
    %802 = vmatprep.subr.mxu0 0.0
    %803 = vmatpush1.msra.mxu0 0.0
    %804 = vmatprep.subr.mxu0 0.0
    %805 = vmatpush1.msra.mxu0 0.0
    %806 = vmatprep.subr.mxu0 0.0
    %807 = vmatpush1.msra.mxu0 0.0
    %808 = vmatprep.subr.mxu0 0.0
    %809 = vmatpush1.msra.mxu0 0.0
    %810 = vmatprep.subr.mxu0 0.0
    %811 = vmatpush1.msra.mxu0 0.0
    %812 = vmatprep.subr.mxu0 0.0
    %813 = vmatpush1.msra.mxu0 0.0
    %814 = vmatprep.subr.mxu0 0.0
    %815 = vmatpush1.msra.mxu0 0.0
    %816 = vmatprep.subr.mxu0 0.0
    %817 = vmatpush1.msra.mxu0 0.0
    %818 = vmatprep.subr.mxu0 0.0
    %819 = vmatpush1.msra.mxu0 0.0
    %820 = vmatprep.subr.mxu0 0.0
    %821 = vmatpush1.msra.mxu0 0.0
    %822 = vmatprep.subr.mxu0 0.0
    %823 = vmatpush1.msra.mxu0 0.0
    %824 = vmatprep.subr.mxu0 0.0
    %825 = vmatpush1.msra.mxu0 %v156
    %826 = vmatprep.subr.mxu0 0.0
    %827 = vmatpush1.msra.mxu0 %v155
    %828 = vmatprep.subr.mxu0 0.0
    %829 = vmatpush1.msra.mxu0 %v154
    %830 = vmatprep.subr.mxu0 0.0
    %831 = vmatpush1.msra.mxu0 %v153
    %832 = vmatprep.subr.mxu0 0.0
    %833 = vmatpush2.msra.mxu0 0.0
    %834 = vmatprep.subr.mxu0 0.0
    %835 = vmatpush2.msra.mxu0 0.0
    %836 = vmatprep.subr.mxu0 0.0
    %837 = vmatpush2.msra.mxu0 0.0
    %838 = vmatprep.subr.mxu0 0.0
    %839 = vmatpush2.msra.mxu0 0.0
    %840 = vmatprep.subr.mxu0 0.0
    %841 = vmatpush2.msra.mxu0 0.0
    %842 = vmatprep.subr.mxu0 0.0
    %843 = vmatpush2.msra.mxu0 0.0
    %844 = vmatprep.subr.mxu0 0.0
    %845 = vmatpush2.msra.mxu0 0.0
    %846 = vmatprep.subr.mxu0 0.0
    %847 = vmatpush2.msra.mxu0 0.0
    %848 = vmatprep.subr.mxu0 0.0
    %849 = vmatpush2.msra.mxu0 0.0
    %850 = vmatprep.subr.mxu0 0.0
    %851 = vmatpush2.msra.mxu0 0.0
    %852 = vmatprep.subr.mxu0 0.0
    %853 = vmatpush2.msra.mxu0 0.0
    %854 = vmatprep.subr.mxu0 0.0
    %855 = vmatpush2.msra.mxu0 0.0
    %856 = vmatprep.subr.mxu0 0.0
    %857 = vmatpush2.msra.mxu0 0.0
    %858 = vmatprep.subr.mxu0 0.0
    %859 = vmatpush2.msra.mxu0 0.0
    %860 = vmatprep.subr.mxu0 0.0
    %861 = vmatpush2.msra.mxu0 0.0
    %862 = vmatprep.subr.mxu0 0.0
    %863 = vmatpush2.msra.mxu0 0.0
    %864 = vmatprep.mubr.f32.mxu0 0.0
    %865 = vmatmul.mubr.f32.gmra.mxu0 %v798
    %v866 = vpop.f32.mrf.mxu0
    %v867 = vadd.f32 %v162, %v866
    %v868 = vpop.f32.mrf.mxu0
    %869 = vdwg.mxu0
    %v872 = vunpack.c.l.s4 1966171168
    %v873 = vunpack.c.0.s8 %v872
    %v874 = vlaneseq
    %v875 = vshrl.u32 %v874, 7
    %v876 = vsub.s32 %v873, %v875
    %v877 = vrot.slane %v867, %v876
    %v878 = vcombine.high %v877, %v877
    %v880 = vunpack.c.l.s4 1966171168
    %v881 = vunpack.c.0.s8 %v880
    %v882 = vlaneseq
    %v883 = vshrl.u32 %v882, 7
    %v884 = vsub.s32 %v881, %v883
    %v885 = vrot.slane %v877, %v884
    %v887 = vunpack.c.l.s4 1966171168
    %v888 = vunpack.c.0.s8 %v887
    %v889 = vlaneseq
    %v890 = vshrl.u32 %v889, 7
    %v891 = vsub.s32 %v888, %v890
    %v892 = vrot.slane %v878, %v891
    %895 = vst [vmem:[#allocation2] sm:$0x1] %v885
    %896 = vst [vmem:[#allocation2 + $0x8] sm:$0x1] %v892
    %v898 = vrot.slane %v746, 4
    %899 = vrot.lane.b32.xlu0 %v898, 32
    %v900 = vpop.permute.xlu0 %899
    %v901 = vsel %vm49, %v900, 0
    %903 = vmatprep.subr.mxu0 0.0
    %904 = vmatpush1.msra.mxu0 0.0
    %905 = vmatprep.subr.mxu0 0.0
    %906 = vmatpush1.msra.mxu0 0.0
    %907 = vmatprep.subr.mxu0 0.0
    %908 = vmatpush1.msra.mxu0 0.0
    %909 = vmatprep.subr.mxu0 0.0
    %910 = vmatpush1.msra.mxu0 0.0
    %911 = vmatprep.subr.mxu0 0.0
    %912 = vmatpush1.msra.mxu0 0.0
    %913 = vmatprep.subr.mxu0 0.0
    %914 = vmatpush1.msra.mxu0 0.0
    %915 = vmatprep.subr.mxu0 0.0
    %916 = vmatpush1.msra.mxu0 0.0
    %917 = vmatprep.subr.mxu0 0.0
    %918 = vmatpush1.msra.mxu0 0.0
    %919 = vmatprep.subr.mxu0 0.0
    %920 = vmatpush1.msra.mxu0 0.0
    %921 = vmatprep.subr.mxu0 0.0
    %922 = vmatpush1.msra.mxu0 0.0
    %923 = vmatprep.subr.mxu0 0.0
    %924 = vmatpush1.msra.mxu0 0.0
    %925 = vmatprep.subr.mxu0 0.0
    %926 = vmatpush1.msra.mxu0 0.0
    %927 = vmatprep.subr.mxu0 0.0
    %928 = vmatpush1.msra.mxu0 %v134
    %929 = vmatprep.subr.mxu0 0.0
    %930 = vmatpush1.msra.mxu0 %v133
    %931 = vmatprep.subr.mxu0 0.0
    %932 = vmatpush1.msra.mxu0 %v132
    %933 = vmatprep.subr.mxu0 0.0
    %934 = vmatpush1.msra.mxu0 %v131
    %935 = vmatprep.subr.mxu0 0.0
    %936 = vmatpush2.msra.mxu0 0.0
    %937 = vmatprep.subr.mxu0 0.0
    %938 = vmatpush2.msra.mxu0 0.0
    %939 = vmatprep.subr.mxu0 0.0
    %940 = vmatpush2.msra.mxu0 0.0
    %941 = vmatprep.subr.mxu0 0.0
    %942 = vmatpush2.msra.mxu0 0.0
    %943 = vmatprep.subr.mxu0 0.0
    %944 = vmatpush2.msra.mxu0 0.0
    %945 = vmatprep.subr.mxu0 0.0
    %946 = vmatpush2.msra.mxu0 0.0
    %947 = vmatprep.subr.mxu0 0.0
    %948 = vmatpush2.msra.mxu0 0.0
    %949 = vmatprep.subr.mxu0 0.0
    %950 = vmatpush2.msra.mxu0 0.0
    %951 = vmatprep.subr.mxu0 0.0
    %952 = vmatpush2.msra.mxu0 0.0
    %953 = vmatprep.subr.mxu0 0.0
    %954 = vmatpush2.msra.mxu0 0.0
    %955 = vmatprep.subr.mxu0 0.0
    %956 = vmatpush2.msra.mxu0 0.0
    %957 = vmatprep.subr.mxu0 0.0
    %958 = vmatpush2.msra.mxu0 0.0
    %959 = vmatprep.subr.mxu0 0.0
    %960 = vmatpush2.msra.mxu0 0.0
    %961 = vmatprep.subr.mxu0 0.0
    %962 = vmatpush2.msra.mxu0 0.0
    %963 = vmatprep.subr.mxu0 0.0
    %964 = vmatpush2.msra.mxu0 0.0
    %965 = vmatprep.subr.mxu0 0.0
    %966 = vmatpush2.msra.mxu0 0.0
    %967 = vmatprep.mubr.f32.mxu0 0.0
    %968 = vmatmul.mubr.f32.gmra.mxu0 %v901
    %v969 = vpop.f32.mrf.mxu0
    %v970 = vadd.f32 0.0, %v969
    %v971 = vpop.f32.mrf.mxu0
    %972 = vdwg.mxu0
    %v974 = vrot.slane %v970, 2
    %v976 = vadd.f32 %v123, %v974
    %977 = vrot.lane.b32.xlu0 %v746, 32
    %v978 = vpop.permute.xlu0 %977
    %v981 = vrot.slane %v770, 4
    %982 = vrot.lane.b32.xlu0 %v981, 64
    %v983 = vpop.permute.xlu0 %982
    %v985 = vsel %vm49, %v978, %v983
    %v987 = vrot.slane %v985, 4
    %v988 = vsel %vm349, %v987, 0
    %990 = vmatprep.subr.mxu0 0.0
    %991 = vmatpush1.msra.mxu0 0.0
    %992 = vmatprep.subr.mxu0 0.0
    %993 = vmatpush1.msra.mxu0 0.0
    %994 = vmatprep.subr.mxu0 0.0
    %995 = vmatpush1.msra.mxu0 0.0
    %996 = vmatprep.subr.mxu0 0.0
    %997 = vmatpush1.msra.mxu0 0.0
    %998 = vmatprep.subr.mxu0 0.0
    %999 = vmatpush1.msra.mxu0 0.0
    %1000 = vmatprep.subr.mxu0 0.0
    %1001 = vmatpush1.msra.mxu0 0.0
    %1002 = vmatprep.subr.mxu0 0.0
    %1003 = vmatpush1.msra.mxu0 0.0
    %1004 = vmatprep.subr.mxu0 0.0
    %1005 = vmatpush1.msra.mxu0 0.0
    %1006 = vmatprep.subr.mxu0 0.0
    %1007 = vmatpush1.msra.mxu0 %v142
    %1008 = vmatprep.subr.mxu0 0.0
    %1009 = vmatpush1.msra.mxu0 %v141
    %1010 = vmatprep.subr.mxu0 0.0
    %1011 = vmatpush1.msra.mxu0 %v140
    %1012 = vmatprep.subr.mxu0 0.0
    %1013 = vmatpush1.msra.mxu0 %v139
    %1014 = vmatprep.subr.mxu0 0.0
    %1015 = vmatpush1.msra.mxu0 %v138
    %1016 = vmatprep.subr.mxu0 0.0
    %1017 = vmatpush1.msra.mxu0 %v137
    %1018 = vmatprep.subr.mxu0 0.0
    %1019 = vmatpush1.msra.mxu0 %v136
    %1020 = vmatprep.subr.mxu0 0.0
    %1021 = vmatpush1.msra.mxu0 %v135
    %1022 = vmatprep.subr.mxu0 0.0
    %1023 = vmatpush2.msra.mxu0 0.0
    %1024 = vmatprep.subr.mxu0 0.0
    %1025 = vmatpush2.msra.mxu0 0.0
    %1026 = vmatprep.subr.mxu0 0.0
    %1027 = vmatpush2.msra.mxu0 0.0
    %1028 = vmatprep.subr.mxu0 0.0
    %1029 = vmatpush2.msra.mxu0 0.0
    %1030 = vmatprep.subr.mxu0 0.0
    %1031 = vmatpush2.msra.mxu0 0.0
    %1032 = vmatprep.subr.mxu0 0.0
    %1033 = vmatpush2.msra.mxu0 0.0
    %1034 = vmatprep.subr.mxu0 0.0
    %1035 = vmatpush2.msra.mxu0 0.0
    %1036 = vmatprep.subr.mxu0 0.0
    %1037 = vmatpush2.msra.mxu0 0.0
    %1038 = vmatprep.subr.mxu0 0.0
    %1039 = vmatpush2.msra.mxu0 0.0
    %1040 = vmatprep.subr.mxu0 0.0
    %1041 = vmatpush2.msra.mxu0 0.0
    %1042 = vmatprep.subr.mxu0 0.0
    %1043 = vmatpush2.msra.mxu0 0.0
    %1044 = vmatprep.subr.mxu0 0.0
    %1045 = vmatpush2.msra.mxu0 0.0
    %1046 = vmatprep.subr.mxu0 0.0
    %1047 = vmatpush2.msra.mxu0 0.0
    %1048 = vmatprep.subr.mxu0 0.0
    %1049 = vmatpush2.msra.mxu0 0.0
    %1050 = vmatprep.subr.mxu0 0.0
    %1051 = vmatpush2.msra.mxu0 0.0
    %1052 = vmatprep.subr.mxu0 0.0
    %1053 = vmatpush2.msra.mxu0 0.0
    %1054 = vmatprep.mubr.f32.mxu0 0.0
    %1055 = vmatmul.mubr.f32.gmra.mxu0 %v988
    %v1056 = vpop.f32.mrf.mxu0
    %v1057 = vadd.f32 %v347, %v1056
    %v1058 = vpop.f32.mrf.mxu0
    %1059 = vdwg.mxu0
    %1060 = vrot.lane.b32.xlu0 %v770, 32
    %v1061 = vpop.permute.xlu0 %1060
    %1063 = vrot.lane.b32.xlu0 %v794, 64
    %v1064 = vpop.permute.xlu0 %1063
    %v1066 = vsel %vm49, %v1061, %v1064
    %v1068 = vsel %vm349, %v1066, 0
    %1070 = vmatprep.subr.mxu0 0.0
    %1071 = vmatpush1.msra.mxu0 0.0
    %1072 = vmatprep.subr.mxu0 0.0
    %1073 = vmatpush1.msra.mxu0 0.0
    %1074 = vmatprep.subr.mxu0 0.0
    %1075 = vmatpush1.msra.mxu0 0.0
    %1076 = vmatprep.subr.mxu0 0.0
    %1077 = vmatpush1.msra.mxu0 0.0
    %1078 = vmatprep.subr.mxu0 0.0
    %1079 = vmatpush1.msra.mxu0 0.0
    %1080 = vmatprep.subr.mxu0 0.0
    %1081 = vmatpush1.msra.mxu0 0.0
    %1082 = vmatprep.subr.mxu0 0.0
    %1083 = vmatpush1.msra.mxu0 0.0
    %1084 = vmatprep.subr.mxu0 0.0
    %1085 = vmatpush1.msra.mxu0 0.0
    %1086 = vmatprep.subr.mxu0 0.0
    %1087 = vmatpush1.msra.mxu0 %v151
    %1088 = vmatprep.subr.mxu0 0.0
    %1089 = vmatpush1.msra.mxu0 %v150
    %1090 = vmatprep.subr.mxu0 0.0
    %1091 = vmatpush1.msra.mxu0 %v149
    %1092 = vmatprep.subr.mxu0 0.0
    %1093 = vmatpush1.msra.mxu0 %v148
    %1094 = vmatprep.subr.mxu0 0.0
    %1095 = vmatpush1.msra.mxu0 %v147
    %1096 = vmatprep.subr.mxu0 0.0
    %1097 = vmatpush1.msra.mxu0 %v146
    %1098 = vmatprep.subr.mxu0 0.0
    %1099 = vmatpush1.msra.mxu0 %v145
    %1100 = vmatprep.subr.mxu0 0.0
    %1101 = vmatpush1.msra.mxu0 %v144
    %1102 = vmatprep.subr.mxu0 0.0
    %1103 = vmatpush2.msra.mxu0 0.0
    %1104 = vmatprep.subr.mxu0 0.0
    %1105 = vmatpush2.msra.mxu0 0.0
    %1106 = vmatprep.subr.mxu0 0.0
    %1107 = vmatpush2.msra.mxu0 0.0
    %1108 = vmatprep.subr.mxu0 0.0
    %1109 = vmatpush2.msra.mxu0 0.0
    %1110 = vmatprep.subr.mxu0 0.0
    %1111 = vmatpush2.msra.mxu0 0.0
    %1112 = vmatprep.subr.mxu0 0.0
    %1113 = vmatpush2.msra.mxu0 0.0
    %1114 = vmatprep.subr.mxu0 0.0
    %1115 = vmatpush2.msra.mxu0 0.0
    %1116 = vmatprep.subr.mxu0 0.0
    %1117 = vmatpush2.msra.mxu0 0.0
    %1118 = vmatprep.subr.mxu0 0.0
    %1119 = vmatpush2.msra.mxu0 0.0
    %1120 = vmatprep.subr.mxu0 0.0
    %1121 = vmatpush2.msra.mxu0 0.0
    %1122 = vmatprep.subr.mxu0 0.0
    %1123 = vmatpush2.msra.mxu0 0.0
    %1124 = vmatprep.subr.mxu0 0.0
    %1125 = vmatpush2.msra.mxu0 0.0
    %1126 = vmatprep.subr.mxu0 0.0
    %1127 = vmatpush2.msra.mxu0 0.0
    %1128 = vmatprep.subr.mxu0 0.0
    %1129 = vmatpush2.msra.mxu0 0.0
    %1130 = vmatprep.subr.mxu0 0.0
    %1131 = vmatpush2.msra.mxu0 0.0
    %1132 = vmatprep.subr.mxu0 0.0
    %1133 = vmatpush2.msra.mxu0 0.0
    %1134 = vmatprep.mubr.f32.mxu0 0.0
    %1135 = vmatmul.mubr.f32.gmra.mxu0 %v1068
    %v1136 = vpop.f32.mrf.mxu0
    %v1137 = vadd.f32 %v645, %v1136
    %v1138 = vpop.f32.mrf.mxu0
    %1139 = vdwg.mxu0
    %v1140 = vxor.u32 %v976, 2147483648
    %v1141 = vmul.f32 %v1140, 1.442695
    %v1142 = vpow.pop %v1141
    %v1143 = vadd.f32 %v1142, 1.0
    %v1144 = vrcp.pop %v1143
    %v1145 = vmul.f32 1.0, %v1144
    %v1146 = vtanh.pop %v976
    %v1148 = vrot.slane %v740, 6
    %v1150 = vmul.f32 %v1145, %v1148
    %1152 = vrot.lane.b32.xlu0 %v1146, 64
    %v1153 = vpop.permute.xlu0 %1152
    %v1155 = vmul.f32 %v1145, %v1153
    %1157 = vrot.lane.b32.xlu0 %v1155, 32
    %v1158 = vpop.permute.xlu0 %1157
    %v1160 = vadd.f32 %v1150, %v1158
    %v1161 = vtanh.pop %v1160
    %1163 = vrot.lane.b32.xlu0 %v1161, 64
    %v1164 = vpop.permute.xlu0 %1163
    %v1166 = vmul.f32 %v1145, %v1164
    %v1167 = vxor.u32 %v1057, 2147483648
    %v1168 = vmul.f32 %v1167, 1.442695
    %v1169 = vpow.pop %v1168
    %v1170 = vadd.f32 %v1169, 1.0
    %v1171 = vrcp.pop %v1170
    %v1172 = vmul.f32 1.0, %v1171
    %v1173 = vtanh.pop %v1057
    %v1174 = vmul.f32 %v1172, %v764
    %1176 = vrot.lane.b32.xlu0 %v1173, 64
    %v1177 = vpop.permute.xlu0 %1176
    %v1179 = vmul.f32 %v1172, %v1177
    %1181 = vrot.lane.b32.xlu0 %v1179, 32
    %v1182 = vpop.permute.xlu0 %1181
    %v1184 = vadd.f32 %v1174, %v1182
    %v1185 = vtanh.pop %v1184
    %1187 = vrot.lane.b32.xlu0 %v1185, 64
    %v1188 = vpop.permute.xlu0 %1187
    %v1190 = vmul.f32 %v1172, %v1188
    %v1191 = vxor.u32 %v1137, 2147483648
    %v1192 = vmul.f32 %v1191, 1.442695
    %v1193 = vpow.pop %v1192
    %v1194 = vadd.f32 %v1193, 1.0
    %v1195 = vrcp.pop %v1194
    %v1196 = vmul.f32 1.0, %v1195
    %v1197 = vtanh.pop %v1137
    %v1198 = vmul.f32 %v1196, %v788
    %1200 = vrot.lane.b32.xlu0 %v1197, 64
    %v1201 = vpop.permute.xlu0 %1200
    %v1203 = vmul.f32 %v1196, %v1201
    %1205 = vrot.lane.b32.xlu0 %v1203, 32
    %v1206 = vpop.permute.xlu0 %1205
    %v1208 = vadd.f32 %v1198, %v1206
    %v1209 = vtanh.pop %v1208
    %1211 = vrot.lane.b32.xlu0 %v1209, 64
    %v1212 = vpop.permute.xlu0 %1211
    %v1214 = vmul.f32 %v1196, %v1212
    %1216 = vrot.lane.b32.xlu0 %v1214, 32
    %v1217 = vpop.permute.xlu0 %1216
    %v1218 = vsel %vm49, %v1217, 0
    %1220 = vmatprep.subr.mxu0 0.0
    %1221 = vmatpush1.msra.mxu0 0.0
    %1222 = vmatprep.subr.mxu0 0.0
    %1223 = vmatpush1.msra.mxu0 0.0
    %1224 = vmatprep.subr.mxu0 0.0
    %1225 = vmatpush1.msra.mxu0 0.0
    %1226 = vmatprep.subr.mxu0 0.0
    %1227 = vmatpush1.msra.mxu0 0.0
    %1228 = vmatprep.subr.mxu0 0.0
    %1229 = vmatpush1.msra.mxu0 0.0
    %1230 = vmatprep.subr.mxu0 0.0
    %1231 = vmatpush1.msra.mxu0 0.0
    %1232 = vmatprep.subr.mxu0 0.0
    %1233 = vmatpush1.msra.mxu0 0.0
    %1234 = vmatprep.subr.mxu0 0.0
    %1235 = vmatpush1.msra.mxu0 0.0
    %1236 = vmatprep.subr.mxu0 0.0
    %1237 = vmatpush1.msra.mxu0 0.0
    %1238 = vmatprep.subr.mxu0 0.0
    %1239 = vmatpush1.msra.mxu0 0.0
    %1240 = vmatprep.subr.mxu0 0.0
    %1241 = vmatpush1.msra.mxu0 0.0
    %1242 = vmatprep.subr.mxu0 0.0
    %1243 = vmatpush1.msra.mxu0 0.0
    %1244 = vmatprep.subr.mxu0 0.0
    %1245 = vmatpush1.msra.mxu0 %v156
    %1246 = vmatprep.subr.mxu0 0.0
    %1247 = vmatpush1.msra.mxu0 %v155
    %1248 = vmatprep.subr.mxu0 0.0
    %1249 = vmatpush1.msra.mxu0 %v154
    %1250 = vmatprep.subr.mxu0 0.0
    %1251 = vmatpush1.msra.mxu0 %v153
    %1252 = vmatprep.subr.mxu0 0.0
    %1253 = vmatpush2.msra.mxu0 0.0
    %1254 = vmatprep.subr.mxu0 0.0
    %1255 = vmatpush2.msra.mxu0 0.0
    %1256 = vmatprep.subr.mxu0 0.0
    %1257 = vmatpush2.msra.mxu0 0.0
    %1258 = vmatprep.subr.mxu0 0.0
    %1259 = vmatpush2.msra.mxu0 0.0
    %1260 = vmatprep.subr.mxu0 0.0
    %1261 = vmatpush2.msra.mxu0 0.0
    %1262 = vmatprep.subr.mxu0 0.0
    %1263 = vmatpush2.msra.mxu0 0.0
    %1264 = vmatprep.subr.mxu0 0.0
    %1265 = vmatpush2.msra.mxu0 0.0
    %1266 = vmatprep.subr.mxu0 0.0
    %1267 = vmatpush2.msra.mxu0 0.0
    %1268 = vmatprep.subr.mxu0 0.0
    %1269 = vmatpush2.msra.mxu0 0.0
    %1270 = vmatprep.subr.mxu0 0.0
    %1271 = vmatpush2.msra.mxu0 0.0
    %1272 = vmatprep.subr.mxu0 0.0
    %1273 = vmatpush2.msra.mxu0 0.0
    %1274 = vmatprep.subr.mxu0 0.0
    %1275 = vmatpush2.msra.mxu0 0.0
    %1276 = vmatprep.subr.mxu0 0.0
    %1277 = vmatpush2.msra.mxu0 0.0
    %1278 = vmatprep.subr.mxu0 0.0
    %1279 = vmatpush2.msra.mxu0 0.0
    %1280 = vmatprep.subr.mxu0 0.0
    %1281 = vmatpush2.msra.mxu0 0.0
    %1282 = vmatprep.subr.mxu0 0.0
    %1283 = vmatpush2.msra.mxu0 0.0
    %1284 = vmatprep.mubr.f32.mxu0 0.0
    %1285 = vmatmul.mubr.f32.gmra.mxu0 %v1218
    %v1286 = vpop.f32.mrf.mxu0
    %v1287 = vadd.f32 %v162, %v1286
    %v1288 = vpop.f32.mrf.mxu0
    %1289 = vdwg.mxu0
    %v1292 = vunpack.c.l.s4 1966171168
    %v1293 = vunpack.c.0.s8 %v1292
    %v1294 = vlaneseq
    %v1295 = vshrl.u32 %v1294, 7
    %v1296 = vsub.s32 %v1293, %v1295
    %v1297 = vrot.slane %v1287, %v1296
    %v1298 = vcombine.high %v1297, %v1297
    %v1300 = vunpack.c.l.s4 1966171168
    %v1301 = vunpack.c.0.s8 %v1300
    %v1302 = vlaneseq
    %v1303 = vshrl.u32 %v1302, 7
    %v1304 = vsub.s32 %v1301, %v1303
    %v1305 = vrot.slane %v1297, %v1304
    %v1307 = vunpack.c.l.s4 1966171168
    %v1308 = vunpack.c.0.s8 %v1307
    %v1309 = vlaneseq
    %v1310 = vshrl.u32 %v1309, 7
    %v1311 = vsub.s32 %v1308, %v1310
    %v1312 = vrot.slane %v1298, %v1311
    %1315 = vst [vmem:[#allocation2 + $0x1] sm:$0x1] %v1305
    %1316 = vst [vmem:[#allocation2 + $0x9] sm:$0x1] %v1312
    %v1318 = vrot.slane %v1166, 6
    %1319 = vrot.lane.b32.xlu0 %v1318, 32
    %v1320 = vpop.permute.xlu0 %1319
    %v1321 = vsel %vm49, %v1320, 0
    %1323 = vmatprep.subr.mxu0 0.0
    %1324 = vmatpush1.msra.mxu0 0.0
    %1325 = vmatprep.subr.mxu0 0.0
    %1326 = vmatpush1.msra.mxu0 0.0
    %1327 = vmatprep.subr.mxu0 0.0
    %1328 = vmatpush1.msra.mxu0 0.0
    %1329 = vmatprep.subr.mxu0 0.0
    %1330 = vmatpush1.msra.mxu0 0.0
    %1331 = vmatprep.subr.mxu0 0.0
    %1332 = vmatpush1.msra.mxu0 0.0
    %1333 = vmatprep.subr.mxu0 0.0
    %1334 = vmatpush1.msra.mxu0 0.0
    %1335 = vmatprep.subr.mxu0 0.0
    %1336 = vmatpush1.msra.mxu0 0.0
    %1337 = vmatprep.subr.mxu0 0.0
    %1338 = vmatpush1.msra.mxu0 0.0
    %1339 = vmatprep.subr.mxu0 0.0
    %1340 = vmatpush1.msra.mxu0 0.0
    %1341 = vmatprep.subr.mxu0 0.0
    %1342 = vmatpush1.msra.mxu0 0.0
    %1343 = vmatprep.subr.mxu0 0.0
    %1344 = vmatpush1.msra.mxu0 0.0
    %1345 = vmatprep.subr.mxu0 0.0
    %1346 = vmatpush1.msra.mxu0 0.0
    %1347 = vmatprep.subr.mxu0 0.0
    %1348 = vmatpush1.msra.mxu0 %v134
    %1349 = vmatprep.subr.mxu0 0.0
    %1350 = vmatpush1.msra.mxu0 %v133
    %1351 = vmatprep.subr.mxu0 0.0
    %1352 = vmatpush1.msra.mxu0 %v132
    %1353 = vmatprep.subr.mxu0 0.0
    %1354 = vmatpush1.msra.mxu0 %v131
    %1355 = vmatprep.subr.mxu0 0.0
    %1356 = vmatpush2.msra.mxu0 0.0
    %1357 = vmatprep.subr.mxu0 0.0
    %1358 = vmatpush2.msra.mxu0 0.0
    %1359 = vmatprep.subr.mxu0 0.0
    %1360 = vmatpush2.msra.mxu0 0.0
    %1361 = vmatprep.subr.mxu0 0.0
    %1362 = vmatpush2.msra.mxu0 0.0
    %1363 = vmatprep.subr.mxu0 0.0
    %1364 = vmatpush2.msra.mxu0 0.0
    %1365 = vmatprep.subr.mxu0 0.0
    %1366 = vmatpush2.msra.mxu0 0.0
    %1367 = vmatprep.subr.mxu0 0.0
    %1368 = vmatpush2.msra.mxu0 0.0
    %1369 = vmatprep.subr.mxu0 0.0
    %1370 = vmatpush2.msra.mxu0 0.0
    %1371 = vmatprep.subr.mxu0 0.0
    %1372 = vmatpush2.msra.mxu0 0.0
    %1373 = vmatprep.subr.mxu0 0.0
    %1374 = vmatpush2.msra.mxu0 0.0
    %1375 = vmatprep.subr.mxu0 0.0
    %1376 = vmatpush2.msra.mxu0 0.0
    %1377 = vmatprep.subr.mxu0 0.0
    %1378 = vmatpush2.msra.mxu0 0.0
    %1379 = vmatprep.subr.mxu0 0.0
    %1380 = vmatpush2.msra.mxu0 0.0
    %1381 = vmatprep.subr.mxu0 0.0
    %1382 = vmatpush2.msra.mxu0 0.0
    %1383 = vmatprep.subr.mxu0 0.0
    %1384 = vmatpush2.msra.mxu0 0.0
    %1385 = vmatprep.subr.mxu0 0.0
    %1386 = vmatpush2.msra.mxu0 0.0
    %1387 = vmatprep.mubr.f32.mxu0 0.0
    %1388 = vmatmul.mubr.f32.gmra.mxu0 %v1321
    %v1389 = vpop.f32.mrf.mxu0
    %v1390 = vadd.f32 0.0, %v1389
    %v1391 = vpop.f32.mrf.mxu0
    %1392 = vdwg.mxu0
    %v1393 = vadd.f32 %v128, %v1390
    %1394 = vrot.lane.b32.xlu0 %v1166, 32
    %v1395 = vpop.permute.xlu0 %1394
    %v1398 = vrot.slane %v1190, 2
    %1399 = vrot.lane.b32.xlu0 %v1398, 64
    %v1400 = vpop.permute.xlu0 %1399
    %v1402 = vsel %vm49, %v1395, %v1400
    %v1404 = vrot.slane %v1402, 6
    %v1405 = vsel %vm349, %v1404, 0
    %1407 = vmatprep.subr.mxu0 0.0
    %1408 = vmatpush1.msra.mxu0 0.0
    %1409 = vmatprep.subr.mxu0 0.0
    %1410 = vmatpush1.msra.mxu0 0.0
    %1411 = vmatprep.subr.mxu0 0.0
    %1412 = vmatpush1.msra.mxu0 0.0
    %1413 = vmatprep.subr.mxu0 0.0
    %1414 = vmatpush1.msra.mxu0 0.0
    %1415 = vmatprep.subr.mxu0 0.0
    %1416 = vmatpush1.msra.mxu0 0.0
    %1417 = vmatprep.subr.mxu0 0.0
    %1418 = vmatpush1.msra.mxu0 0.0
    %1419 = vmatprep.subr.mxu0 0.0
    %1420 = vmatpush1.msra.mxu0 0.0
    %1421 = vmatprep.subr.mxu0 0.0
    %1422 = vmatpush1.msra.mxu0 0.0
    %1423 = vmatprep.subr.mxu0 0.0
    %1424 = vmatpush1.msra.mxu0 %v142
    %1425 = vmatprep.subr.mxu0 0.0
    %1426 = vmatpush1.msra.mxu0 %v141
    %1427 = vmatprep.subr.mxu0 0.0
    %1428 = vmatpush1.msra.mxu0 %v140
    %1429 = vmatprep.subr.mxu0 0.0
    %1430 = vmatpush1.msra.mxu0 %v139
    %1431 = vmatprep.subr.mxu0 0.0
    %1432 = vmatpush1.msra.mxu0 %v138
    %1433 = vmatprep.subr.mxu0 0.0
    %1434 = vmatpush1.msra.mxu0 %v137
    %1435 = vmatprep.subr.mxu0 0.0
    %1436 = vmatpush1.msra.mxu0 %v136
    %1437 = vmatprep.subr.mxu0 0.0
    %1438 = vmatpush1.msra.mxu0 %v135
    %1439 = vmatprep.subr.mxu0 0.0
    %1440 = vmatpush2.msra.mxu0 0.0
    %1441 = vmatprep.subr.mxu0 0.0
    %1442 = vmatpush2.msra.mxu0 0.0
    %1443 = vmatprep.subr.mxu0 0.0
    %1444 = vmatpush2.msra.mxu0 0.0
    %1445 = vmatprep.subr.mxu0 0.0
    %1446 = vmatpush2.msra.mxu0 0.0
    %1447 = vmatprep.subr.mxu0 0.0
    %1448 = vmatpush2.msra.mxu0 0.0
    %1449 = vmatprep.subr.mxu0 0.0
    %1450 = vmatpush2.msra.mxu0 0.0
    %1451 = vmatprep.subr.mxu0 0.0
    %1452 = vmatpush2.msra.mxu0 0.0
    %1453 = vmatprep.subr.mxu0 0.0
    %1454 = vmatpush2.msra.mxu0 0.0
    %1455 = vmatprep.subr.mxu0 0.0
    %1456 = vmatpush2.msra.mxu0 0.0
    %1457 = vmatprep.subr.mxu0 0.0
    %1458 = vmatpush2.msra.mxu0 0.0
    %1459 = vmatprep.subr.mxu0 0.0
    %1460 = vmatpush2.msra.mxu0 0.0
    %1461 = vmatprep.subr.mxu0 0.0
    %1462 = vmatpush2.msra.mxu0 0.0
    %1463 = vmatprep.subr.mxu0 0.0
    %1464 = vmatpush2.msra.mxu0 0.0
    %1465 = vmatprep.subr.mxu0 0.0
    %1466 = vmatpush2.msra.mxu0 0.0
    %1467 = vmatprep.subr.mxu0 0.0
    %1468 = vmatpush2.msra.mxu0 0.0
    %1469 = vmatprep.subr.mxu0 0.0
    %1470 = vmatpush2.msra.mxu0 0.0
    %1471 = vmatprep.mubr.f32.mxu0 0.0
    %1472 = vmatmul.mubr.f32.gmra.mxu0 %v1405
    %v1473 = vpop.f32.mrf.mxu0
    %v1474 = vadd.f32 %v347, %v1473
    %v1475 = vpop.f32.mrf.mxu0
    %1476 = vdwg.mxu0
    %1477 = vrot.lane.b32.xlu0 %v1190, 32
    %v1478 = vpop.permute.xlu0 %1477
    %1480 = vrot.lane.b32.xlu0 %v1214, 64
    %v1481 = vpop.permute.xlu0 %1480
    %v1483 = vsel %vm49, %v1478, %v1481
    %v1485 = vsel %vm349, %v1483, 0
    %1487 = vmatprep.subr.mxu0 0.0
    %1488 = vmatpush1.msra.mxu0 0.0
    %1489 = vmatprep.subr.mxu0 0.0
    %1490 = vmatpush1.msra.mxu0 0.0
    %1491 = vmatprep.subr.mxu0 0.0
    %1492 = vmatpush1.msra.mxu0 0.0
    %1493 = vmatprep.subr.mxu0 0.0
    %1494 = vmatpush1.msra.mxu0 0.0
    %1495 = vmatprep.subr.mxu0 0.0
    %1496 = vmatpush1.msra.mxu0 0.0
    %1497 = vmatprep.subr.mxu0 0.0
    %1498 = vmatpush1.msra.mxu0 0.0
    %1499 = vmatprep.subr.mxu0 0.0
    %1500 = vmatpush1.msra.mxu0 0.0
    %1501 = vmatprep.subr.mxu0 0.0
    %1502 = vmatpush1.msra.mxu0 0.0
    %1503 = vmatprep.subr.mxu0 0.0
    %1504 = vmatpush1.msra.mxu0 %v151
    %1505 = vmatprep.subr.mxu0 0.0
    %1506 = vmatpush1.msra.mxu0 %v150
    %1507 = vmatprep.subr.mxu0 0.0
    %1508 = vmatpush1.msra.mxu0 %v149
    %1509 = vmatprep.subr.mxu0 0.0
    %1510 = vmatpush1.msra.mxu0 %v148
    %1511 = vmatprep.subr.mxu0 0.0
    %1512 = vmatpush1.msra.mxu0 %v147
    %1513 = vmatprep.subr.mxu0 0.0
    %1514 = vmatpush1.msra.mxu0 %v146
    %1515 = vmatprep.subr.mxu0 0.0
    %1516 = vmatpush1.msra.mxu0 %v145
    %1517 = vmatprep.subr.mxu0 0.0
    %1518 = vmatpush1.msra.mxu0 %v144
    %1519 = vmatprep.subr.mxu0 0.0
    %1520 = vmatpush2.msra.mxu0 0.0
    %1521 = vmatprep.subr.mxu0 0.0
    %1522 = vmatpush2.msra.mxu0 0.0
    %1523 = vmatprep.subr.mxu0 0.0
    %1524 = vmatpush2.msra.mxu0 0.0
    %1525 = vmatprep.subr.mxu0 0.0
    %1526 = vmatpush2.msra.mxu0 0.0
    %1527 = vmatprep.subr.mxu0 0.0
    %1528 = vmatpush2.msra.mxu0 0.0
    %1529 = vmatprep.subr.mxu0 0.0
    %1530 = vmatpush2.msra.mxu0 0.0
    %1531 = vmatprep.subr.mxu0 0.0
    %1532 = vmatpush2.msra.mxu0 0.0
    %1533 = vmatprep.subr.mxu0 0.0
    %1534 = vmatpush2.msra.mxu0 0.0
    %1535 = vmatprep.subr.mxu0 0.0
    %1536 = vmatpush2.msra.mxu0 0.0
    %1537 = vmatprep.subr.mxu0 0.0
    %1538 = vmatpush2.msra.mxu0 0.0
    %1539 = vmatprep.subr.mxu0 0.0
    %1540 = vmatpush2.msra.mxu0 0.0
    %1541 = vmatprep.subr.mxu0 0.0
    %1542 = vmatpush2.msra.mxu0 0.0
    %1543 = vmatprep.subr.mxu0 0.0
    %1544 = vmatpush2.msra.mxu0 0.0
    %1545 = vmatprep.subr.mxu0 0.0
    %1546 = vmatpush2.msra.mxu0 0.0
    %1547 = vmatprep.subr.mxu0 0.0
    %1548 = vmatpush2.msra.mxu0 0.0
    %1549 = vmatprep.subr.mxu0 0.0
    %1550 = vmatpush2.msra.mxu0 0.0
    %1551 = vmatprep.mubr.f32.mxu0 0.0
    %1552 = vmatmul.mubr.f32.gmra.mxu0 %v1485
    %v1553 = vpop.f32.mrf.mxu0
    %v1554 = vadd.f32 %v645, %v1553
    %v1555 = vpop.f32.mrf.mxu0
    %1556 = vdwg.mxu0
    %v1557 = vxor.u32 %v1393, 2147483648
    %v1558 = vmul.f32 %v1557, 1.442695
    %v1559 = vpow.pop %v1558
    %v1560 = vadd.f32 %v1559, 1.0
    %v1561 = vrcp.pop %v1560
    %v1562 = vmul.f32 1.0, %v1561
    %v1563 = vtanh.pop %v1393
    %v1565 = vrot.slane %v1160, 6
    %v1567 = vmul.f32 %v1562, %v1565
    %1569 = vrot.lane.b32.xlu0 %v1563, 64
    %v1570 = vpop.permute.xlu0 %1569
    %v1572 = vmul.f32 %v1562, %v1570
    %1574 = vrot.lane.b32.xlu0 %v1572, 32
    %v1575 = vpop.permute.xlu0 %1574
    %v1577 = vadd.f32 %v1567, %v1575
    %v1578 = vtanh.pop %v1577
    %1580 = vrot.lane.b32.xlu0 %v1578, 64
    %v1581 = vpop.permute.xlu0 %1580
    %v1583 = vmul.f32 %v1562, %v1581
    %v1584 = vxor.u32 %v1474, 2147483648
    %v1585 = vmul.f32 %v1584, 1.442695
    %v1586 = vpow.pop %v1585
    %v1587 = vadd.f32 %v1586, 1.0
    %v1588 = vrcp.pop %v1587
    %v1589 = vmul.f32 1.0, %v1588
    %v1590 = vtanh.pop %v1474
    %v1591 = vmul.f32 %v1589, %v1184
    %1593 = vrot.lane.b32.xlu0 %v1590, 64
    %v1594 = vpop.permute.xlu0 %1593
    %v1596 = vmul.f32 %v1589, %v1594
    %1598 = vrot.lane.b32.xlu0 %v1596, 32
    %v1599 = vpop.permute.xlu0 %1598
    %v1601 = vadd.f32 %v1591, %v1599
    %v1602 = vtanh.pop %v1601
    %1604 = vrot.lane.b32.xlu0 %v1602, 64
    %v1605 = vpop.permute.xlu0 %1604
    %v1607 = vmul.f32 %v1589, %v1605
    %v1608 = vxor.u32 %v1554, 2147483648
    %v1609 = vmul.f32 %v1608, 1.442695
    %v1610 = vpow.pop %v1609
    %v1611 = vadd.f32 %v1610, 1.0
    %v1612 = vrcp.pop %v1611
    %v1613 = vmul.f32 1.0, %v1612
    %v1614 = vtanh.pop %v1554
    %v1615 = vmul.f32 %v1613, %v1208
    %1617 = vrot.lane.b32.xlu0 %v1614, 64
    %v1618 = vpop.permute.xlu0 %1617
    %v1620 = vmul.f32 %v1613, %v1618
    %1622 = vrot.lane.b32.xlu0 %v1620, 32
    %v1623 = vpop.permute.xlu0 %1622
    %v1625 = vadd.f32 %v1615, %v1623
    %v1626 = vtanh.pop %v1625
    %1628 = vrot.lane.b32.xlu0 %v1626, 64
    %v1629 = vpop.permute.xlu0 %1628
    %v1631 = vmul.f32 %v1613, %v1629
    %1633 = vrot.lane.b32.xlu0 %v1631, 32
    %v1634 = vpop.permute.xlu0 %1633
    %v1635 = vsel %vm49, %v1634, 0
    %1637 = vmatprep.subr.mxu0 0.0
    %1638 = vmatpush1.msra.mxu0 0.0
    %1639 = vmatprep.subr.mxu0 0.0
    %1640 = vmatpush1.msra.mxu0 0.0
    %1641 = vmatprep.subr.mxu0 0.0
    %1642 = vmatpush1.msra.mxu0 0.0
    %1643 = vmatprep.subr.mxu0 0.0
    %1644 = vmatpush1.msra.mxu0 0.0
    %1645 = vmatprep.subr.mxu0 0.0
    %1646 = vmatpush1.msra.mxu0 0.0
    %1647 = vmatprep.subr.mxu0 0.0
    %1648 = vmatpush1.msra.mxu0 0.0
    %1649 = vmatprep.subr.mxu0 0.0
    %1650 = vmatpush1.msra.mxu0 0.0
    %1651 = vmatprep.subr.mxu0 0.0
    %1652 = vmatpush1.msra.mxu0 0.0
    %1653 = vmatprep.subr.mxu0 0.0
    %1654 = vmatpush1.msra.mxu0 0.0
    %1655 = vmatprep.subr.mxu0 0.0
    %1656 = vmatpush1.msra.mxu0 0.0
    %1657 = vmatprep.subr.mxu0 0.0
    %1658 = vmatpush1.msra.mxu0 0.0
    %1659 = vmatprep.subr.mxu0 0.0
    %1660 = vmatpush1.msra.mxu0 0.0
    %1661 = vmatprep.subr.mxu0 0.0
    %1662 = vmatpush1.msra.mxu0 %v156
    %1663 = vmatprep.subr.mxu0 0.0
    %1664 = vmatpush1.msra.mxu0 %v155
    %1665 = vmatprep.subr.mxu0 0.0
    %1666 = vmatpush1.msra.mxu0 %v154
    %1667 = vmatprep.subr.mxu0 0.0
    %1668 = vmatpush1.msra.mxu0 %v153
    %1669 = vmatprep.subr.mxu0 0.0
    %1670 = vmatpush2.msra.mxu0 0.0
    %1671 = vmatprep.subr.mxu0 0.0
    %1672 = vmatpush2.msra.mxu0 0.0
    %1673 = vmatprep.subr.mxu0 0.0
    %1674 = vmatpush2.msra.mxu0 0.0
    %1675 = vmatprep.subr.mxu0 0.0
    %1676 = vmatpush2.msra.mxu0 0.0
    %1677 = vmatprep.subr.mxu0 0.0
    %1678 = vmatpush2.msra.mxu0 0.0
    %1679 = vmatprep.subr.mxu0 0.0
    %1680 = vmatpush2.msra.mxu0 0.0
    %1681 = vmatprep.subr.mxu0 0.0
    %1682 = vmatpush2.msra.mxu0 0.0
    %1683 = vmatprep.subr.mxu0 0.0
    %1684 = vmatpush2.msra.mxu0 0.0
    %1685 = vmatprep.subr.mxu0 0.0
    %1686 = vmatpush2.msra.mxu0 0.0
    %1687 = vmatprep.subr.mxu0 0.0
    %1688 = vmatpush2.msra.mxu0 0.0
    %1689 = vmatprep.subr.mxu0 0.0
    %1690 = vmatpush2.msra.mxu0 0.0
    %1691 = vmatprep.subr.mxu0 0.0
    %1692 = vmatpush2.msra.mxu0 0.0
    %1693 = vmatprep.subr.mxu0 0.0
    %1694 = vmatpush2.msra.mxu0 0.0
    %1695 = vmatprep.subr.mxu0 0.0
    %1696 = vmatpush2.msra.mxu0 0.0
    %1697 = vmatprep.subr.mxu0 0.0
    %1698 = vmatpush2.msra.mxu0 0.0
    %1699 = vmatprep.subr.mxu0 0.0
    %1700 = vmatpush2.msra.mxu0 0.0
    %1701 = vmatprep.mubr.f32.mxu0 0.0
    %1702 = vmatmul.mubr.f32.gmra.mxu0 %v1635
    %v1703 = vpop.f32.mrf.mxu0
    %v1704 = vadd.f32 %v162, %v1703
    %v1705 = vpop.f32.mrf.mxu0
    %1706 = vdwg.mxu0
    %v1709 = vunpack.c.l.s4 1966171168
    %v1710 = vunpack.c.0.s8 %v1709
    %v1711 = vlaneseq
    %v1712 = vshrl.u32 %v1711, 7
    %v1713 = vsub.s32 %v1710, %v1712
    %v1714 = vrot.slane %v1704, %v1713
    %v1715 = vcombine.high %v1714, %v1714
    %v1717 = vunpack.c.l.s4 1966171168
    %v1718 = vunpack.c.0.s8 %v1717
    %v1719 = vlaneseq
    %v1720 = vshrl.u32 %v1719, 7
    %v1721 = vsub.s32 %v1718, %v1720
    %v1722 = vrot.slane %v1714, %v1721
    %v1724 = vunpack.c.l.s4 1966171168
    %v1725 = vunpack.c.0.s8 %v1724
    %v1726 = vlaneseq
    %v1727 = vshrl.u32 %v1726, 7
    %v1728 = vsub.s32 %v1725, %v1727
    %v1729 = vrot.slane %v1715, %v1728
    %1732 = vst [vmem:[#allocation2 + $0x2] sm:$0x1] %v1722
    %1733 = vst [vmem:[#allocation2 + $0xa] sm:$0x1] %v1729
    %1735 = vrot.lane.b32.xlu0 %v1583, 32
    %v1736 = vpop.permute.xlu0 %1735
    %v1737 = vsel %vm49, %v1736, 0
    %1739 = vmatprep.subr.mxu0 0.0
    %1740 = vmatpush1.msra.mxu0 0.0
    %1741 = vmatprep.subr.mxu0 0.0
    %1742 = vmatpush1.msra.mxu0 0.0
    %1743 = vmatprep.subr.mxu0 0.0
    %1744 = vmatpush1.msra.mxu0 0.0
    %1745 = vmatprep.subr.mxu0 0.0
    %1746 = vmatpush1.msra.mxu0 0.0
    %1747 = vmatprep.subr.mxu0 0.0
    %1748 = vmatpush1.msra.mxu0 0.0
    %1749 = vmatprep.subr.mxu0 0.0
    %1750 = vmatpush1.msra.mxu0 0.0
    %1751 = vmatprep.subr.mxu0 0.0
    %1752 = vmatpush1.msra.mxu0 0.0
    %1753 = vmatprep.subr.mxu0 0.0
    %1754 = vmatpush1.msra.mxu0 0.0
    %1755 = vmatprep.subr.mxu0 0.0
    %1756 = vmatpush1.msra.mxu0 0.0
    %1757 = vmatprep.subr.mxu0 0.0
    %1758 = vmatpush1.msra.mxu0 0.0
    %1759 = vmatprep.subr.mxu0 0.0
    %1760 = vmatpush1.msra.mxu0 0.0
    %1761 = vmatprep.subr.mxu0 0.0
    %1762 = vmatpush1.msra.mxu0 0.0
    %1763 = vmatprep.subr.mxu0 0.0
    %1764 = vmatpush1.msra.mxu0 %v134
    %1765 = vmatprep.subr.mxu0 0.0
    %1766 = vmatpush1.msra.mxu0 %v133
    %1767 = vmatprep.subr.mxu0 0.0
    %1768 = vmatpush1.msra.mxu0 %v132
    %1769 = vmatprep.subr.mxu0 0.0
    %1770 = vmatpush1.msra.mxu0 %v131
    %1771 = vmatprep.subr.mxu0 0.0
    %1772 = vmatpush2.msra.mxu0 0.0
    %1773 = vmatprep.subr.mxu0 0.0
    %1774 = vmatpush2.msra.mxu0 0.0
    %1775 = vmatprep.subr.mxu0 0.0
    %1776 = vmatpush2.msra.mxu0 0.0
    %1777 = vmatprep.subr.mxu0 0.0
    %1778 = vmatpush2.msra.mxu0 0.0
    %1779 = vmatprep.subr.mxu0 0.0
    %1780 = vmatpush2.msra.mxu0 0.0
    %1781 = vmatprep.subr.mxu0 0.0
    %1782 = vmatpush2.msra.mxu0 0.0
    %1783 = vmatprep.subr.mxu0 0.0
    %1784 = vmatpush2.msra.mxu0 0.0
    %1785 = vmatprep.subr.mxu0 0.0
    %1786 = vmatpush2.msra.mxu0 0.0
    %1787 = vmatprep.subr.mxu0 0.0
    %1788 = vmatpush2.msra.mxu0 0.0
    %1789 = vmatprep.subr.mxu0 0.0
    %1790 = vmatpush2.msra.mxu0 0.0
    %1791 = vmatprep.subr.mxu0 0.0
    %1792 = vmatpush2.msra.mxu0 0.0
    %1793 = vmatprep.subr.mxu0 0.0
    %1794 = vmatpush2.msra.mxu0 0.0
    %1795 = vmatprep.subr.mxu0 0.0
    %1796 = vmatpush2.msra.mxu0 0.0
    %1797 = vmatprep.subr.mxu0 0.0
    %1798 = vmatpush2.msra.mxu0 0.0
    %1799 = vmatprep.subr.mxu0 0.0
    %1800 = vmatpush2.msra.mxu0 0.0
    %1801 = vmatprep.subr.mxu0 0.0
    %1802 = vmatpush2.msra.mxu0 0.0
    %1803 = vmatprep.mubr.f32.mxu0 0.0
    %1804 = vmatmul.mubr.f32.gmra.mxu0 %v1737
    %v1805 = vpop.f32.mrf.mxu0
    %v1806 = vadd.f32 0.0, %v1805
    %v1807 = vpop.f32.mrf.mxu0
    %1808 = vdwg.mxu0
    %v1810 = vrot.slane %v1806, 6
    %v1812 = vadd.f32 %v128, %v1810
    %1815 = vrot.lane.b32.xlu0 %v1607, 64
    %v1816 = vpop.permute.xlu0 %1815
    %v1818 = vsel %vm49, %v1736, %v1816
    %v1820 = vsel %vm349, %v1818, 0
    %1822 = vmatprep.subr.mxu0 0.0
    %1823 = vmatpush1.msra.mxu0 0.0
    %1824 = vmatprep.subr.mxu0 0.0
    %1825 = vmatpush1.msra.mxu0 0.0
    %1826 = vmatprep.subr.mxu0 0.0
    %1827 = vmatpush1.msra.mxu0 0.0
    %1828 = vmatprep.subr.mxu0 0.0
    %1829 = vmatpush1.msra.mxu0 0.0
    %1830 = vmatprep.subr.mxu0 0.0
    %1831 = vmatpush1.msra.mxu0 0.0
    %1832 = vmatprep.subr.mxu0 0.0
    %1833 = vmatpush1.msra.mxu0 0.0
    %1834 = vmatprep.subr.mxu0 0.0
    %1835 = vmatpush1.msra.mxu0 0.0
    %1836 = vmatprep.subr.mxu0 0.0
    %1837 = vmatpush1.msra.mxu0 0.0
    %1838 = vmatprep.subr.mxu0 0.0
    %1839 = vmatpush1.msra.mxu0 %v142
    %1840 = vmatprep.subr.mxu0 0.0
    %1841 = vmatpush1.msra.mxu0 %v141
    %1842 = vmatprep.subr.mxu0 0.0
    %1843 = vmatpush1.msra.mxu0 %v140
    %1844 = vmatprep.subr.mxu0 0.0
    %1845 = vmatpush1.msra.mxu0 %v139
    %1846 = vmatprep.subr.mxu0 0.0
    %1847 = vmatpush1.msra.mxu0 %v138
    %1848 = vmatprep.subr.mxu0 0.0
    %1849 = vmatpush1.msra.mxu0 %v137
    %1850 = vmatprep.subr.mxu0 0.0
    %1851 = vmatpush1.msra.mxu0 %v136
    %1852 = vmatprep.subr.mxu0 0.0
    %1853 = vmatpush1.msra.mxu0 %v135
    %1854 = vmatprep.subr.mxu0 0.0
    %1855 = vmatpush2.msra.mxu0 0.0
    %1856 = vmatprep.subr.mxu0 0.0
    %1857 = vmatpush2.msra.mxu0 0.0
    %1858 = vmatprep.subr.mxu0 0.0
    %1859 = vmatpush2.msra.mxu0 0.0
    %1860 = vmatprep.subr.mxu0 0.0
    %1861 = vmatpush2.msra.mxu0 0.0
    %1862 = vmatprep.subr.mxu0 0.0
    %1863 = vmatpush2.msra.mxu0 0.0
    %1864 = vmatprep.subr.mxu0 0.0
    %1865 = vmatpush2.msra.mxu0 0.0
    %1866 = vmatprep.subr.mxu0 0.0
    %1867 = vmatpush2.msra.mxu0 0.0
    %1868 = vmatprep.subr.mxu0 0.0
    %1869 = vmatpush2.msra.mxu0 0.0
    %1870 = vmatprep.subr.mxu0 0.0
    %1871 = vmatpush2.msra.mxu0 0.0
    %1872 = vmatprep.subr.mxu0 0.0
    %1873 = vmatpush2.msra.mxu0 0.0
    %1874 = vmatprep.subr.mxu0 0.0
    %1875 = vmatpush2.msra.mxu0 0.0
    %1876 = vmatprep.subr.mxu0 0.0
    %1877 = vmatpush2.msra.mxu0 0.0
    %1878 = vmatprep.subr.mxu0 0.0
    %1879 = vmatpush2.msra.mxu0 0.0
    %1880 = vmatprep.subr.mxu0 0.0
    %1881 = vmatpush2.msra.mxu0 0.0
    %1882 = vmatprep.subr.mxu0 0.0
    %1883 = vmatpush2.msra.mxu0 0.0
    %1884 = vmatprep.subr.mxu0 0.0
    %1885 = vmatpush2.msra.mxu0 0.0
    %1886 = vmatprep.mubr.f32.mxu0 0.0
    %1887 = vmatmul.mubr.f32.gmra.mxu0 %v1820
    %v1888 = vpop.f32.mrf.mxu0
    %v1889 = vadd.f32 %v347, %v1888
    %v1890 = vpop.f32.mrf.mxu0
    %1891 = vdwg.mxu0
    %1892 = vrot.lane.b32.xlu0 %v1607, 32
    %v1893 = vpop.permute.xlu0 %1892
    %1895 = vrot.lane.b32.xlu0 %v1631, 64
    %v1896 = vpop.permute.xlu0 %1895
    %v1898 = vsel %vm49, %v1893, %v1896
    %v1900 = vsel %vm349, %v1898, 0
    %1902 = vmatprep.subr.mxu0 0.0
    %1903 = vmatpush1.msra.mxu0 0.0
    %1904 = vmatprep.subr.mxu0 0.0
    %1905 = vmatpush1.msra.mxu0 0.0
    %1906 = vmatprep.subr.mxu0 0.0
    %1907 = vmatpush1.msra.mxu0 0.0
    %1908 = vmatprep.subr.mxu0 0.0
    %1909 = vmatpush1.msra.mxu0 0.0
    %1910 = vmatprep.subr.mxu0 0.0
    %1911 = vmatpush1.msra.mxu0 0.0
    %1912 = vmatprep.subr.mxu0 0.0
    %1913 = vmatpush1.msra.mxu0 0.0
    %1914 = vmatprep.subr.mxu0 0.0
    %1915 = vmatpush1.msra.mxu0 0.0
    %1916 = vmatprep.subr.mxu0 0.0
    %1917 = vmatpush1.msra.mxu0 0.0
    %1918 = vmatprep.subr.mxu0 0.0
    %1919 = vmatpush1.msra.mxu0 %v151
    %1920 = vmatprep.subr.mxu0 0.0
    %1921 = vmatpush1.msra.mxu0 %v150
    %1922 = vmatprep.subr.mxu0 0.0
    %1923 = vmatpush1.msra.mxu0 %v149
    %1924 = vmatprep.subr.mxu0 0.0
    %1925 = vmatpush1.msra.mxu0 %v148
    %1926 = vmatprep.subr.mxu0 0.0
    %1927 = vmatpush1.msra.mxu0 %v147
    %1928 = vmatprep.subr.mxu0 0.0
    %1929 = vmatpush1.msra.mxu0 %v146
    %1930 = vmatprep.subr.mxu0 0.0
    %1931 = vmatpush1.msra.mxu0 %v145
    %1932 = vmatprep.subr.mxu0 0.0
    %1933 = vmatpush1.msra.mxu0 %v144
    %1934 = vmatprep.subr.mxu0 0.0
    %1935 = vmatpush2.msra.mxu0 0.0
    %1936 = vmatprep.subr.mxu0 0.0
    %1937 = vmatpush2.msra.mxu0 0.0
    %1938 = vmatprep.subr.mxu0 0.0
    %1939 = vmatpush2.msra.mxu0 0.0
    %1940 = vmatprep.subr.mxu0 0.0
    %1941 = vmatpush2.msra.mxu0 0.0
    %1942 = vmatprep.subr.mxu0 0.0
    %1943 = vmatpush2.msra.mxu0 0.0
    %1944 = vmatprep.subr.mxu0 0.0
    %1945 = vmatpush2.msra.mxu0 0.0
    %1946 = vmatprep.subr.mxu0 0.0
    %1947 = vmatpush2.msra.mxu0 0.0
    %1948 = vmatprep.subr.mxu0 0.0
    %1949 = vmatpush2.msra.mxu0 0.0
    %1950 = vmatprep.subr.mxu0 0.0
    %1951 = vmatpush2.msra.mxu0 0.0
    %1952 = vmatprep.subr.mxu0 0.0
    %1953 = vmatpush2.msra.mxu0 0.0
    %1954 = vmatprep.subr.mxu0 0.0
    %1955 = vmatpush2.msra.mxu0 0.0
    %1956 = vmatprep.subr.mxu0 0.0
    %1957 = vmatpush2.msra.mxu0 0.0
    %1958 = vmatprep.subr.mxu0 0.0
    %1959 = vmatpush2.msra.mxu0 0.0
    %1960 = vmatprep.subr.mxu0 0.0
    %1961 = vmatpush2.msra.mxu0 0.0
    %1962 = vmatprep.subr.mxu0 0.0
    %1963 = vmatpush2.msra.mxu0 0.0
    %1964 = vmatprep.subr.mxu0 0.0
    %1965 = vmatpush2.msra.mxu0 0.0
    %1966 = vmatprep.mubr.f32.mxu0 0.0
    %1967 = vmatmul.mubr.f32.gmra.mxu0 %v1900
    %v1968 = vpop.f32.mrf.mxu0
    %v1969 = vadd.f32 %v645, %v1968
    %v1970 = vpop.f32.mrf.mxu0
    %1971 = vdwg.mxu0
    %v1972 = vxor.u32 %v1812, 2147483648
    %v1973 = vmul.f32 %v1972, 1.442695
    %v1974 = vpow.pop %v1973
    %v1975 = vadd.f32 %v1974, 1.0
    %v1976 = vrcp.pop %v1975
    %v1977 = vmul.f32 1.0, %v1976
    %v1978 = vtanh.pop %v1812
    %v1980 = vrot.slane %v1577, 6
    %v1982 = vmul.f32 %v1977, %v1980
    %1984 = vrot.lane.b32.xlu0 %v1978, 64
    %v1985 = vpop.permute.xlu0 %1984
    %v1987 = vmul.f32 %v1977, %v1985
    %1989 = vrot.lane.b32.xlu0 %v1987, 32
    %v1990 = vpop.permute.xlu0 %1989
    %v1992 = vadd.f32 %v1982, %v1990
    %v1993 = vtanh.pop %v1992
    %1995 = vrot.lane.b32.xlu0 %v1993, 64
    %v1996 = vpop.permute.xlu0 %1995
    %v1998 = vmul.f32 %v1977, %v1996
    %v1999 = vxor.u32 %v1889, 2147483648
    %v2000 = vmul.f32 %v1999, 1.442695
    %v2001 = vpow.pop %v2000
    %v2002 = vadd.f32 %v2001, 1.0
    %v2003 = vrcp.pop %v2002
    %v2004 = vmul.f32 1.0, %v2003
    %v2005 = vtanh.pop %v1889
    %v2006 = vmul.f32 %v2004, %v1601
    %2008 = vrot.lane.b32.xlu0 %v2005, 64
    %v2009 = vpop.permute.xlu0 %2008
    %v2011 = vmul.f32 %v2004, %v2009
    %2013 = vrot.lane.b32.xlu0 %v2011, 32
    %v2014 = vpop.permute.xlu0 %2013
    %v2016 = vadd.f32 %v2006, %v2014
    %v2017 = vtanh.pop %v2016
    %2019 = vrot.lane.b32.xlu0 %v2017, 64
    %v2020 = vpop.permute.xlu0 %2019
    %v2022 = vmul.f32 %v2004, %v2020
    %v2023 = vxor.u32 %v1969, 2147483648
    %v2024 = vmul.f32 %v2023, 1.442695
    %v2025 = vpow.pop %v2024
    %v2026 = vadd.f32 %v2025, 1.0
    %v2027 = vrcp.pop %v2026
    %v2028 = vmul.f32 1.0, %v2027
    %v2029 = vtanh.pop %v1969
    %v2030 = vmul.f32 %v2028, %v1625
    %2032 = vrot.lane.b32.xlu0 %v2029, 64
    %v2033 = vpop.permute.xlu0 %2032
    %v2035 = vmul.f32 %v2028, %v2033
    %2037 = vrot.lane.b32.xlu0 %v2035, 32
    %v2038 = vpop.permute.xlu0 %2037
    %v2040 = vadd.f32 %v2030, %v2038
    %v2041 = vtanh.pop %v2040
    %2043 = vrot.lane.b32.xlu0 %v2041, 64
    %v2044 = vpop.permute.xlu0 %2043
    %v2046 = vmul.f32 %v2028, %v2044
    %2048 = vrot.lane.b32.xlu0 %v2046, 32
    %v2049 = vpop.permute.xlu0 %2048
    %v2050 = vsel %vm49, %v2049, 0
    %2052 = vmatprep.subr.mxu0 0.0
    %2053 = vmatpush1.msra.mxu0 0.0
    %2054 = vmatprep.subr.mxu0 0.0
    %2055 = vmatpush1.msra.mxu0 0.0
    %2056 = vmatprep.subr.mxu0 0.0
    %2057 = vmatpush1.msra.mxu0 0.0
    %2058 = vmatprep.subr.mxu0 0.0
    %2059 = vmatpush1.msra.mxu0 0.0
    %2060 = vmatprep.subr.mxu0 0.0
    %2061 = vmatpush1.msra.mxu0 0.0
    %2062 = vmatprep.subr.mxu0 0.0
    %2063 = vmatpush1.msra.mxu0 0.0
    %2064 = vmatprep.subr.mxu0 0.0
    %2065 = vmatpush1.msra.mxu0 0.0
    %2066 = vmatprep.subr.mxu0 0.0
    %2067 = vmatpush1.msra.mxu0 0.0
    %2068 = vmatprep.subr.mxu0 0.0
    %2069 = vmatpush1.msra.mxu0 0.0
    %2070 = vmatprep.subr.mxu0 0.0
    %2071 = vmatpush1.msra.mxu0 0.0
    %2072 = vmatprep.subr.mxu0 0.0
    %2073 = vmatpush1.msra.mxu0 0.0
    %2074 = vmatprep.subr.mxu0 0.0
    %2075 = vmatpush1.msra.mxu0 0.0
    %2076 = vmatprep.subr.mxu0 0.0
    %2077 = vmatpush1.msra.mxu0 %v156
    %2078 = vmatprep.subr.mxu0 0.0
    %2079 = vmatpush1.msra.mxu0 %v155
    %2080 = vmatprep.subr.mxu0 0.0
    %2081 = vmatpush1.msra.mxu0 %v154
    %2082 = vmatprep.subr.mxu0 0.0
    %2083 = vmatpush1.msra.mxu0 %v153
    %2084 = vmatprep.subr.mxu0 0.0
    %2085 = vmatpush2.msra.mxu0 0.0
    %2086 = vmatprep.subr.mxu0 0.0
    %2087 = vmatpush2.msra.mxu0 0.0
    %2088 = vmatprep.subr.mxu0 0.0
    %2089 = vmatpush2.msra.mxu0 0.0
    %2090 = vmatprep.subr.mxu0 0.0
    %2091 = vmatpush2.msra.mxu0 0.0
    %2092 = vmatprep.subr.mxu0 0.0
    %2093 = vmatpush2.msra.mxu0 0.0
    %2094 = vmatprep.subr.mxu0 0.0
    %2095 = vmatpush2.msra.mxu0 0.0
    %2096 = vmatprep.subr.mxu0 0.0
    %2097 = vmatpush2.msra.mxu0 0.0
    %2098 = vmatprep.subr.mxu0 0.0
    %2099 = vmatpush2.msra.mxu0 0.0
    %2100 = vmatprep.subr.mxu0 0.0
    %2101 = vmatpush2.msra.mxu0 0.0
    %2102 = vmatprep.subr.mxu0 0.0
    %2103 = vmatpush2.msra.mxu0 0.0
    %2104 = vmatprep.subr.mxu0 0.0
    %2105 = vmatpush2.msra.mxu0 0.0
    %2106 = vmatprep.subr.mxu0 0.0
    %2107 = vmatpush2.msra.mxu0 0.0
    %2108 = vmatprep.subr.mxu0 0.0
    %2109 = vmatpush2.msra.mxu0 0.0
    %2110 = vmatprep.subr.mxu0 0.0
    %2111 = vmatpush2.msra.mxu0 0.0
    %2112 = vmatprep.subr.mxu0 0.0
    %2113 = vmatpush2.msra.mxu0 0.0
    %2114 = vmatprep.subr.mxu0 0.0
    %2115 = vmatpush2.msra.mxu0 0.0
    %2116 = vmatprep.mubr.f32.mxu0 0.0
    %2117 = vmatmul.mubr.f32.gmra.mxu0 %v2050
    %v2118 = vpop.f32.mrf.mxu0
    %v2119 = vadd.f32 %v162, %v2118
    %v2120 = vpop.f32.mrf.mxu0
    %2121 = vdwg.mxu0
    %v2124 = vunpack.c.l.s4 1966171168
    %v2125 = vunpack.c.0.s8 %v2124
    %v2126 = vlaneseq
    %v2127 = vshrl.u32 %v2126, 7
    %v2128 = vsub.s32 %v2125, %v2127
    %v2129 = vrot.slane %v2119, %v2128
    %v2130 = vcombine.high %v2129, %v2129
    %v2132 = vunpack.c.l.s4 1966171168
    %v2133 = vunpack.c.0.s8 %v2132
    %v2134 = vlaneseq
    %v2135 = vshrl.u32 %v2134, 7
    %v2136 = vsub.s32 %v2133, %v2135
    %v2137 = vrot.slane %v2129, %v2136
    %v2139 = vunpack.c.l.s4 1966171168
    %v2140 = vunpack.c.0.s8 %v2139
    %v2141 = vlaneseq
    %v2142 = vshrl.u32 %v2141, 7
    %v2143 = vsub.s32 %v2140, %v2142
    %v2144 = vrot.slane %v2130, %v2143
    %2147 = vst [vmem:[#allocation2 + $0x3] sm:$0x1] %v2137
    %2148 = vst [vmem:[#allocation2 + $0xb] sm:$0x1] %v2144
    %v2150 = vrot.slane %v1998, 2
    %2151 = vrot.lane.b32.xlu0 %v2150, 32
    %v2152 = vpop.permute.xlu0 %2151
    %v2153 = vsel %vm49, %v2152, 0
    %2155 = vmatprep.subr.mxu0 0.0
    %2156 = vmatpush1.msra.mxu0 0.0
    %2157 = vmatprep.subr.mxu0 0.0
    %2158 = vmatpush1.msra.mxu0 0.0
    %2159 = vmatprep.subr.mxu0 0.0
    %2160 = vmatpush1.msra.mxu0 0.0
    %2161 = vmatprep.subr.mxu0 0.0
    %2162 = vmatpush1.msra.mxu0 0.0
    %2163 = vmatprep.subr.mxu0 0.0
    %2164 = vmatpush1.msra.mxu0 0.0
    %2165 = vmatprep.subr.mxu0 0.0
    %2166 = vmatpush1.msra.mxu0 0.0
    %2167 = vmatprep.subr.mxu0 0.0
    %2168 = vmatpush1.msra.mxu0 0.0
    %2169 = vmatprep.subr.mxu0 0.0
    %2170 = vmatpush1.msra.mxu0 0.0
    %2171 = vmatprep.subr.mxu0 0.0
    %2172 = vmatpush1.msra.mxu0 0.0
    %2173 = vmatprep.subr.mxu0 0.0
    %2174 = vmatpush1.msra.mxu0 0.0
    %2175 = vmatprep.subr.mxu0 0.0
    %2176 = vmatpush1.msra.mxu0 0.0
    %2177 = vmatprep.subr.mxu0 0.0
    %2178 = vmatpush1.msra.mxu0 0.0
    %2179 = vmatprep.subr.mxu0 0.0
    %2180 = vmatpush1.msra.mxu0 %v134
    %2181 = vmatprep.subr.mxu0 0.0
    %2182 = vmatpush1.msra.mxu0 %v133
    %2183 = vmatprep.subr.mxu0 0.0
    %2184 = vmatpush1.msra.mxu0 %v132
    %2185 = vmatprep.subr.mxu0 0.0
    %2186 = vmatpush1.msra.mxu0 %v131
    %2187 = vmatprep.subr.mxu0 0.0
    %2188 = vmatpush2.msra.mxu0 0.0
    %2189 = vmatprep.subr.mxu0 0.0
    %2190 = vmatpush2.msra.mxu0 0.0
    %2191 = vmatprep.subr.mxu0 0.0
    %2192 = vmatpush2.msra.mxu0 0.0
    %2193 = vmatprep.subr.mxu0 0.0
    %2194 = vmatpush2.msra.mxu0 0.0
    %2195 = vmatprep.subr.mxu0 0.0
    %2196 = vmatpush2.msra.mxu0 0.0
    %2197 = vmatprep.subr.mxu0 0.0
    %2198 = vmatpush2.msra.mxu0 0.0
    %2199 = vmatprep.subr.mxu0 0.0
    %2200 = vmatpush2.msra.mxu0 0.0
    %2201 = vmatprep.subr.mxu0 0.0
    %2202 = vmatpush2.msra.mxu0 0.0
    %2203 = vmatprep.subr.mxu0 0.0
    %2204 = vmatpush2.msra.mxu0 0.0
    %2205 = vmatprep.subr.mxu0 0.0
    %2206 = vmatpush2.msra.mxu0 0.0
    %2207 = vmatprep.subr.mxu0 0.0
    %2208 = vmatpush2.msra.mxu0 0.0
    %2209 = vmatprep.subr.mxu0 0.0
    %2210 = vmatpush2.msra.mxu0 0.0
    %2211 = vmatprep.subr.mxu0 0.0
    %2212 = vmatpush2.msra.mxu0 0.0
    %2213 = vmatprep.subr.mxu0 0.0
    %2214 = vmatpush2.msra.mxu0 0.0
    %2215 = vmatprep.subr.mxu0 0.0
    %2216 = vmatpush2.msra.mxu0 0.0
    %2217 = vmatprep.subr.mxu0 0.0
    %2218 = vmatpush2.msra.mxu0 0.0
    %2219 = vmatprep.mubr.f32.mxu0 0.0
    %2220 = vmatmul.mubr.f32.gmra.mxu0 %v2153
    %v2221 = vpop.f32.mrf.mxu0
    %v2222 = vadd.f32 0.0, %v2221
    %v2223 = vpop.f32.mrf.mxu0
    %2224 = vdwg.mxu0
    %v2226 = vrot.slane %v2222, 4
    %v2228 = vadd.f32 %v128, %v2226
    %2229 = vrot.lane.b32.xlu0 %v1998, 32
    %v2230 = vpop.permute.xlu0 %2229
    %v2233 = vrot.slane %v2022, 6
    %2234 = vrot.lane.b32.xlu0 %v2233, 64
    %v2235 = vpop.permute.xlu0 %2234
    %v2237 = vsel %vm49, %v2230, %v2235
    %v2239 = vrot.slane %v2237, 2
    %v2240 = vsel %vm349, %v2239, 0
    %2242 = vmatprep.subr.mxu0 0.0
    %2243 = vmatpush1.msra.mxu0 0.0
    %2244 = vmatprep.subr.mxu0 0.0
    %2245 = vmatpush1.msra.mxu0 0.0
    %2246 = vmatprep.subr.mxu0 0.0
    %2247 = vmatpush1.msra.mxu0 0.0
    %2248 = vmatprep.subr.mxu0 0.0
    %2249 = vmatpush1.msra.mxu0 0.0
    %2250 = vmatprep.subr.mxu0 0.0
    %2251 = vmatpush1.msra.mxu0 0.0
    %2252 = vmatprep.subr.mxu0 0.0
    %2253 = vmatpush1.msra.mxu0 0.0
    %2254 = vmatprep.subr.mxu0 0.0
    %2255 = vmatpush1.msra.mxu0 0.0
    %2256 = vmatprep.subr.mxu0 0.0
    %2257 = vmatpush1.msra.mxu0 0.0
    %2258 = vmatprep.subr.mxu0 0.0
    %2259 = vmatpush1.msra.mxu0 %v142
    %2260 = vmatprep.subr.mxu0 0.0
    %2261 = vmatpush1.msra.mxu0 %v141
    %2262 = vmatprep.subr.mxu0 0.0
    %2263 = vmatpush1.msra.mxu0 %v140
    %2264 = vmatprep.subr.mxu0 0.0
    %2265 = vmatpush1.msra.mxu0 %v139
    %2266 = vmatprep.subr.mxu0 0.0
    %2267 = vmatpush1.msra.mxu0 %v138
    %2268 = vmatprep.subr.mxu0 0.0
    %2269 = vmatpush1.msra.mxu0 %v137
    %2270 = vmatprep.subr.mxu0 0.0
    %2271 = vmatpush1.msra.mxu0 %v136
    %2272 = vmatprep.subr.mxu0 0.0
    %2273 = vmatpush1.msra.mxu0 %v135
    %2274 = vmatprep.subr.mxu0 0.0
    %2275 = vmatpush2.msra.mxu0 0.0
    %2276 = vmatprep.subr.mxu0 0.0
    %2277 = vmatpush2.msra.mxu0 0.0
    %2278 = vmatprep.subr.mxu0 0.0
    %2279 = vmatpush2.msra.mxu0 0.0
    %2280 = vmatprep.subr.mxu0 0.0
    %2281 = vmatpush2.msra.mxu0 0.0
    %2282 = vmatprep.subr.mxu0 0.0
    %2283 = vmatpush2.msra.mxu0 0.0
    %2284 = vmatprep.subr.mxu0 0.0
    %2285 = vmatpush2.msra.mxu0 0.0
    %2286 = vmatprep.subr.mxu0 0.0
    %2287 = vmatpush2.msra.mxu0 0.0
    %2288 = vmatprep.subr.mxu0 0.0
    %2289 = vmatpush2.msra.mxu0 0.0
    %2290 = vmatprep.subr.mxu0 0.0
    %2291 = vmatpush2.msra.mxu0 0.0
    %2292 = vmatprep.subr.mxu0 0.0
    %2293 = vmatpush2.msra.mxu0 0.0
    %2294 = vmatprep.subr.mxu0 0.0
    %2295 = vmatpush2.msra.mxu0 0.0
    %2296 = vmatprep.subr.mxu0 0.0
    %2297 = vmatpush2.msra.mxu0 0.0
    %2298 = vmatprep.subr.mxu0 0.0
    %2299 = vmatpush2.msra.mxu0 0.0
    %2300 = vmatprep.subr.mxu0 0.0
    %2301 = vmatpush2.msra.mxu0 0.0
    %2302 = vmatprep.subr.mxu0 0.0
    %2303 = vmatpush2.msra.mxu0 0.0
    %2304 = vmatprep.subr.mxu0 0.0
    %2305 = vmatpush2.msra.mxu0 0.0
    %2306 = vmatprep.mubr.f32.mxu0 0.0
    %2307 = vmatmul.mubr.f32.gmra.mxu0 %v2240
    %v2308 = vpop.f32.mrf.mxu0
    %v2309 = vadd.f32 %v347, %v2308
    %v2310 = vpop.f32.mrf.mxu0
    %2311 = vdwg.mxu0
    %2312 = vrot.lane.b32.xlu0 %v2022, 32
    %v2313 = vpop.permute.xlu0 %2312
    %2315 = vrot.lane.b32.xlu0 %v2046, 64
    %v2316 = vpop.permute.xlu0 %2315
    %v2318 = vsel %vm49, %v2313, %v2316
    %v2320 = vsel %vm349, %v2318, 0
    %2322 = vmatprep.subr.mxu0 0.0
    %2323 = vmatpush1.msra.mxu0 0.0
    %2324 = vmatprep.subr.mxu0 0.0
    %2325 = vmatpush1.msra.mxu0 0.0
    %2326 = vmatprep.subr.mxu0 0.0
    %2327 = vmatpush1.msra.mxu0 0.0
    %2328 = vmatprep.subr.mxu0 0.0
    %2329 = vmatpush1.msra.mxu0 0.0
    %2330 = vmatprep.subr.mxu0 0.0
    %2331 = vmatpush1.msra.mxu0 0.0
    %2332 = vmatprep.subr.mxu0 0.0
    %2333 = vmatpush1.msra.mxu0 0.0
    %2334 = vmatprep.subr.mxu0 0.0
    %2335 = vmatpush1.msra.mxu0 0.0
    %2336 = vmatprep.subr.mxu0 0.0
    %2337 = vmatpush1.msra.mxu0 0.0
    %2338 = vmatprep.subr.mxu0 0.0
    %2339 = vmatpush1.msra.mxu0 %v151
    %2340 = vmatprep.subr.mxu0 0.0
    %2341 = vmatpush1.msra.mxu0 %v150
    %2342 = vmatprep.subr.mxu0 0.0
    %2343 = vmatpush1.msra.mxu0 %v149
    %2344 = vmatprep.subr.mxu0 0.0
    %2345 = vmatpush1.msra.mxu0 %v148
    %2346 = vmatprep.subr.mxu0 0.0
    %2347 = vmatpush1.msra.mxu0 %v147
    %2348 = vmatprep.subr.mxu0 0.0
    %2349 = vmatpush1.msra.mxu0 %v146
    %2350 = vmatprep.subr.mxu0 0.0
    %2351 = vmatpush1.msra.mxu0 %v145
    %2352 = vmatprep.subr.mxu0 0.0
    %2353 = vmatpush1.msra.mxu0 %v144
    %2354 = vmatprep.subr.mxu0 0.0
    %2355 = vmatpush2.msra.mxu0 0.0
    %2356 = vmatprep.subr.mxu0 0.0
    %2357 = vmatpush2.msra.mxu0 0.0
    %2358 = vmatprep.subr.mxu0 0.0
    %2359 = vmatpush2.msra.mxu0 0.0
    %2360 = vmatprep.subr.mxu0 0.0
    %2361 = vmatpush2.msra.mxu0 0.0
    %2362 = vmatprep.subr.mxu0 0.0
    %2363 = vmatpush2.msra.mxu0 0.0
    %2364 = vmatprep.subr.mxu0 0.0
    %2365 = vmatpush2.msra.mxu0 0.0
    %2366 = vmatprep.subr.mxu0 0.0
    %2367 = vmatpush2.msra.mxu0 0.0
    %2368 = vmatprep.subr.mxu0 0.0
    %2369 = vmatpush2.msra.mxu0 0.0
    %2370 = vmatprep.subr.mxu0 0.0
    %2371 = vmatpush2.msra.mxu0 0.0
    %2372 = vmatprep.subr.mxu0 0.0
    %2373 = vmatpush2.msra.mxu0 0.0
    %2374 = vmatprep.subr.mxu0 0.0
    %2375 = vmatpush2.msra.mxu0 0.0
    %2376 = vmatprep.subr.mxu0 0.0
    %2377 = vmatpush2.msra.mxu0 0.0
    %2378 = vmatprep.subr.mxu0 0.0
    %2379 = vmatpush2.msra.mxu0 0.0
    %2380 = vmatprep.subr.mxu0 0.0
    %2381 = vmatpush2.msra.mxu0 0.0
    %2382 = vmatprep.subr.mxu0 0.0
    %2383 = vmatpush2.msra.mxu0 0.0
    %2384 = vmatprep.subr.mxu0 0.0
    %2385 = vmatpush2.msra.mxu0 0.0
    %2386 = vmatprep.mubr.f32.mxu0 0.0
    %2387 = vmatmul.mubr.f32.gmra.mxu0 %v2320
    %v2388 = vpop.f32.mrf.mxu0
    %v2389 = vadd.f32 %v645, %v2388
    %v2390 = vpop.f32.mrf.mxu0
    %2391 = vdwg.mxu0
    %v2392 = vxor.u32 %v2228, 2147483648
    %v2393 = vmul.f32 %v2392, 1.442695
    %v2394 = vpow.pop %v2393
    %v2395 = vadd.f32 %v2394, 1.0
    %v2396 = vrcp.pop %v2395
    %v2397 = vmul.f32 1.0, %v2396
    %v2398 = vtanh.pop %v2228
    %v2400 = vrot.slane %v1992, 6
    %v2402 = vmul.f32 %v2397, %v2400
    %2404 = vrot.lane.b32.xlu0 %v2398, 64
    %v2405 = vpop.permute.xlu0 %2404
    %v2407 = vmul.f32 %v2397, %v2405
    %2409 = vrot.lane.b32.xlu0 %v2407, 32
    %v2410 = vpop.permute.xlu0 %2409
    %v2412 = vadd.f32 %v2402, %v2410
    %v2413 = vtanh.pop %v2412
    %2415 = vrot.lane.b32.xlu0 %v2413, 64
    %v2416 = vpop.permute.xlu0 %2415
    %v2418 = vmul.f32 %v2397, %v2416
    %v2419 = vxor.u32 %v2309, 2147483648
    %v2420 = vmul.f32 %v2419, 1.442695
    %v2421 = vpow.pop %v2420
    %v2422 = vadd.f32 %v2421, 1.0
    %v2423 = vrcp.pop %v2422
    %v2424 = vmul.f32 1.0, %v2423
    %v2425 = vtanh.pop %v2309
    %v2426 = vmul.f32 %v2424, %v2016
    %2428 = vrot.lane.b32.xlu0 %v2425, 64
    %v2429 = vpop.permute.xlu0 %2428
    %v2431 = vmul.f32 %v2424, %v2429
    %2433 = vrot.lane.b32.xlu0 %v2431, 32
    %v2434 = vpop.permute.xlu0 %2433
    %v2436 = vadd.f32 %v2426, %v2434
    %v2437 = vtanh.pop %v2436
    %2439 = vrot.lane.b32.xlu0 %v2437, 64
    %v2440 = vpop.permute.xlu0 %2439
    %v2442 = vmul.f32 %v2424, %v2440
    %v2443 = vxor.u32 %v2389, 2147483648
    %v2444 = vmul.f32 %v2443, 1.442695
    %v2445 = vpow.pop %v2444
    %v2446 = vadd.f32 %v2445, 1.0
    %v2447 = vrcp.pop %v2446
    %v2448 = vmul.f32 1.0, %v2447
    %v2449 = vtanh.pop %v2389
    %v2450 = vmul.f32 %v2448, %v2040
    %2452 = vrot.lane.b32.xlu0 %v2449, 64
    %v2453 = vpop.permute.xlu0 %2452
    %v2455 = vmul.f32 %v2448, %v2453
    %2457 = vrot.lane.b32.xlu0 %v2455, 32
    %v2458 = vpop.permute.xlu0 %2457
    %v2460 = vadd.f32 %v2450, %v2458
    %v2461 = vtanh.pop %v2460
    %2463 = vrot.lane.b32.xlu0 %v2461, 64
    %v2464 = vpop.permute.xlu0 %2463
    %v2466 = vmul.f32 %v2448, %v2464
    %2468 = vrot.lane.b32.xlu0 %v2466, 32
    %v2469 = vpop.permute.xlu0 %2468
    %v2470 = vsel %vm49, %v2469, 0
    %2472 = vmatprep.subr.mxu0 0.0
    %2473 = vmatpush1.msra.mxu0 0.0
    %2474 = vmatprep.subr.mxu0 0.0
    %2475 = vmatpush1.msra.mxu0 0.0
    %2476 = vmatprep.subr.mxu0 0.0
    %2477 = vmatpush1.msra.mxu0 0.0
    %2478 = vmatprep.subr.mxu0 0.0
    %2479 = vmatpush1.msra.mxu0 0.0
    %2480 = vmatprep.subr.mxu0 0.0
    %2481 = vmatpush1.msra.mxu0 0.0
    %2482 = vmatprep.subr.mxu0 0.0
    %2483 = vmatpush1.msra.mxu0 0.0
    %2484 = vmatprep.subr.mxu0 0.0
    %2485 = vmatpush1.msra.mxu0 0.0
    %2486 = vmatprep.subr.mxu0 0.0
    %2487 = vmatpush1.msra.mxu0 0.0
    %2488 = vmatprep.subr.mxu0 0.0
    %2489 = vmatpush1.msra.mxu0 0.0
    %2490 = vmatprep.subr.mxu0 0.0
    %2491 = vmatpush1.msra.mxu0 0.0
    %2492 = vmatprep.subr.mxu0 0.0
    %2493 = vmatpush1.msra.mxu0 0.0
    %2494 = vmatprep.subr.mxu0 0.0
    %2495 = vmatpush1.msra.mxu0 0.0
    %2496 = vmatprep.subr.mxu0 0.0
    %2497 = vmatpush1.msra.mxu0 %v156
    %2498 = vmatprep.subr.mxu0 0.0
    %2499 = vmatpush1.msra.mxu0 %v155
    %2500 = vmatprep.subr.mxu0 0.0
    %2501 = vmatpush1.msra.mxu0 %v154
    %2502 = vmatprep.subr.mxu0 0.0
    %2503 = vmatpush1.msra.mxu0 %v153
    %2504 = vmatprep.subr.mxu0 0.0
    %2505 = vmatpush2.msra.mxu0 0.0
    %2506 = vmatprep.subr.mxu0 0.0
    %2507 = vmatpush2.msra.mxu0 0.0
    %2508 = vmatprep.subr.mxu0 0.0
    %2509 = vmatpush2.msra.mxu0 0.0
    %2510 = vmatprep.subr.mxu0 0.0
    %2511 = vmatpush2.msra.mxu0 0.0
    %2512 = vmatprep.subr.mxu0 0.0
    %2513 = vmatpush2.msra.mxu0 0.0
    %2514 = vmatprep.subr.mxu0 0.0
    %2515 = vmatpush2.msra.mxu0 0.0
    %2516 = vmatprep.subr.mxu0 0.0
    %2517 = vmatpush2.msra.mxu0 0.0
    %2518 = vmatprep.subr.mxu0 0.0
    %2519 = vmatpush2.msra.mxu0 0.0
    %2520 = vmatprep.subr.mxu0 0.0
    %2521 = vmatpush2.msra.mxu0 0.0
    %2522 = vmatprep.subr.mxu0 0.0
    %2523 = vmatpush2.msra.mxu0 0.0
    %2524 = vmatprep.subr.mxu0 0.0
    %2525 = vmatpush2.msra.mxu0 0.0
    %2526 = vmatprep.subr.mxu0 0.0
    %2527 = vmatpush2.msra.mxu0 0.0
    %2528 = vmatprep.subr.mxu0 0.0
    %2529 = vmatpush2.msra.mxu0 0.0
    %2530 = vmatprep.subr.mxu0 0.0
    %2531 = vmatpush2.msra.mxu0 0.0
    %2532 = vmatprep.subr.mxu0 0.0
    %2533 = vmatpush2.msra.mxu0 0.0
    %2534 = vmatprep.subr.mxu0 0.0
    %2535 = vmatpush2.msra.mxu0 0.0
    %2536 = vmatprep.mubr.f32.mxu0 0.0
    %2537 = vmatmul.mubr.f32.gmra.mxu0 %v2470
    %v2538 = vpop.f32.mrf.mxu0
    %v2539 = vadd.f32 %v162, %v2538
    %v2540 = vpop.f32.mrf.mxu0
    %2541 = vdwg.mxu0
    %v2544 = vunpack.c.l.s4 1966171168
    %v2545 = vunpack.c.0.s8 %v2544
    %v2546 = vlaneseq
    %v2547 = vshrl.u32 %v2546, 7
    %v2548 = vsub.s32 %v2545, %v2547
    %v2549 = vrot.slane %v2539, %v2548
    %v2550 = vcombine.high %v2549, %v2549
    %v2552 = vunpack.c.l.s4 1966171168
    %v2553 = vunpack.c.0.s8 %v2552
    %v2554 = vlaneseq
    %v2555 = vshrl.u32 %v2554, 7
    %v2556 = vsub.s32 %v2553, %v2555
    %v2557 = vrot.slane %v2549, %v2556
    %v2559 = vunpack.c.l.s4 1966171168
    %v2560 = vunpack.c.0.s8 %v2559
    %v2561 = vlaneseq
    %v2562 = vshrl.u32 %v2561, 7
    %v2563 = vsub.s32 %v2560, %v2562
    %v2564 = vrot.slane %v2550, %v2563
    %2567 = vst [vmem:[#allocation2 + $0x4] sm:$0x1] %v2557
    %2568 = vst [vmem:[#allocation2 + $0xc] sm:$0x1] %v2564
    %v2570 = vrot.slane %v2418, 4
    %2571 = vrot.lane.b32.xlu0 %v2570, 32
    %v2572 = vpop.permute.xlu0 %2571
    %v2573 = vsel %vm49, %v2572, 0
    %2575 = vmatprep.subr.mxu0 0.0
    %2576 = vmatpush1.msra.mxu0 0.0
    %2577 = vmatprep.subr.mxu0 0.0
    %2578 = vmatpush1.msra.mxu0 0.0
    %2579 = vmatprep.subr.mxu0 0.0
    %2580 = vmatpush1.msra.mxu0 0.0
    %2581 = vmatprep.subr.mxu0 0.0
    %2582 = vmatpush1.msra.mxu0 0.0
    %2583 = vmatprep.subr.mxu0 0.0
    %2584 = vmatpush1.msra.mxu0 0.0
    %2585 = vmatprep.subr.mxu0 0.0
    %2586 = vmatpush1.msra.mxu0 0.0
    %2587 = vmatprep.subr.mxu0 0.0
    %2588 = vmatpush1.msra.mxu0 0.0
    %2589 = vmatprep.subr.mxu0 0.0
    %2590 = vmatpush1.msra.mxu0 0.0
    %2591 = vmatprep.subr.mxu0 0.0
    %2592 = vmatpush1.msra.mxu0 0.0
    %2593 = vmatprep.subr.mxu0 0.0
    %2594 = vmatpush1.msra.mxu0 0.0
    %2595 = vmatprep.subr.mxu0 0.0
    %2596 = vmatpush1.msra.mxu0 0.0
    %2597 = vmatprep.subr.mxu0 0.0
    %2598 = vmatpush1.msra.mxu0 0.0
    %2599 = vmatprep.subr.mxu0 0.0
    %2600 = vmatpush1.msra.mxu0 %v134
    %2601 = vmatprep.subr.mxu0 0.0
    %2602 = vmatpush1.msra.mxu0 %v133
    %2603 = vmatprep.subr.mxu0 0.0
    %2604 = vmatpush1.msra.mxu0 %v132
    %2605 = vmatprep.subr.mxu0 0.0
    %2606 = vmatpush1.msra.mxu0 %v131
    %2607 = vmatprep.subr.mxu0 0.0
    %2608 = vmatpush2.msra.mxu0 0.0
    %2609 = vmatprep.subr.mxu0 0.0
    %2610 = vmatpush2.msra.mxu0 0.0
    %2611 = vmatprep.subr.mxu0 0.0
    %2612 = vmatpush2.msra.mxu0 0.0
    %2613 = vmatprep.subr.mxu0 0.0
    %2614 = vmatpush2.msra.mxu0 0.0
    %2615 = vmatprep.subr.mxu0 0.0
    %2616 = vmatpush2.msra.mxu0 0.0
    %2617 = vmatprep.subr.mxu0 0.0
    %2618 = vmatpush2.msra.mxu0 0.0
    %2619 = vmatprep.subr.mxu0 0.0
    %2620 = vmatpush2.msra.mxu0 0.0
    %2621 = vmatprep.subr.mxu0 0.0
    %2622 = vmatpush2.msra.mxu0 0.0
    %2623 = vmatprep.subr.mxu0 0.0
    %2624 = vmatpush2.msra.mxu0 0.0
    %2625 = vmatprep.subr.mxu0 0.0
    %2626 = vmatpush2.msra.mxu0 0.0
    %2627 = vmatprep.subr.mxu0 0.0
    %2628 = vmatpush2.msra.mxu0 0.0
    %2629 = vmatprep.subr.mxu0 0.0
    %2630 = vmatpush2.msra.mxu0 0.0
    %2631 = vmatprep.subr.mxu0 0.0
    %2632 = vmatpush2.msra.mxu0 0.0
    %2633 = vmatprep.subr.mxu0 0.0
    %2634 = vmatpush2.msra.mxu0 0.0
    %2635 = vmatprep.subr.mxu0 0.0
    %2636 = vmatpush2.msra.mxu0 0.0
    %2637 = vmatprep.subr.mxu0 0.0
    %2638 = vmatpush2.msra.mxu0 0.0
    %2639 = vmatprep.mubr.f32.mxu0 0.0
    %2640 = vmatmul.mubr.f32.gmra.mxu0 %v2573
    %v2641 = vpop.f32.mrf.mxu0
    %v2642 = vadd.f32 0.0, %v2641
    %v2643 = vpop.f32.mrf.mxu0
    %2644 = vdwg.mxu0
    %v2646 = vrot.slane %v2642, 2
    %v2648 = vadd.f32 %v128, %v2646
    %2649 = vrot.lane.b32.xlu0 %v2418, 32
    %v2650 = vpop.permute.xlu0 %2649
    %v2653 = vrot.slane %v2442, 4
    %2654 = vrot.lane.b32.xlu0 %v2653, 64
    %v2655 = vpop.permute.xlu0 %2654
    %v2657 = vsel %vm49, %v2650, %v2655
    %v2659 = vrot.slane %v2657, 4
    %v2660 = vsel %vm349, %v2659, 0
    %2662 = vmatprep.subr.mxu0 0.0
    %2663 = vmatpush1.msra.mxu0 0.0
    %2664 = vmatprep.subr.mxu0 0.0
    %2665 = vmatpush1.msra.mxu0 0.0
    %2666 = vmatprep.subr.mxu0 0.0
    %2667 = vmatpush1.msra.mxu0 0.0
    %2668 = vmatprep.subr.mxu0 0.0
    %2669 = vmatpush1.msra.mxu0 0.0
    %2670 = vmatprep.subr.mxu0 0.0
    %2671 = vmatpush1.msra.mxu0 0.0
    %2672 = vmatprep.subr.mxu0 0.0
    %2673 = vmatpush1.msra.mxu0 0.0
    %2674 = vmatprep.subr.mxu0 0.0
    %2675 = vmatpush1.msra.mxu0 0.0
    %2676 = vmatprep.subr.mxu0 0.0
    %2677 = vmatpush1.msra.mxu0 0.0
    %2678 = vmatprep.subr.mxu0 0.0
    %2679 = vmatpush1.msra.mxu0 %v142
    %2680 = vmatprep.subr.mxu0 0.0
    %2681 = vmatpush1.msra.mxu0 %v141
    %2682 = vmatprep.subr.mxu0 0.0
    %2683 = vmatpush1.msra.mxu0 %v140
    %2684 = vmatprep.subr.mxu0 0.0
    %2685 = vmatpush1.msra.mxu0 %v139
    %2686 = vmatprep.subr.mxu0 0.0
    %2687 = vmatpush1.msra.mxu0 %v138
    %2688 = vmatprep.subr.mxu0 0.0
    %2689 = vmatpush1.msra.mxu0 %v137
    %2690 = vmatprep.subr.mxu0 0.0
    %2691 = vmatpush1.msra.mxu0 %v136
    %2692 = vmatprep.subr.mxu0 0.0
    %2693 = vmatpush1.msra.mxu0 %v135
    %2694 = vmatprep.subr.mxu0 0.0
    %2695 = vmatpush2.msra.mxu0 0.0
    %2696 = vmatprep.subr.mxu0 0.0
    %2697 = vmatpush2.msra.mxu0 0.0
    %2698 = vmatprep.subr.mxu0 0.0
    %2699 = vmatpush2.msra.mxu0 0.0
    %2700 = vmatprep.subr.mxu0 0.0
    %2701 = vmatpush2.msra.mxu0 0.0
    %2702 = vmatprep.subr.mxu0 0.0
    %2703 = vmatpush2.msra.mxu0 0.0
    %2704 = vmatprep.subr.mxu0 0.0
    %2705 = vmatpush2.msra.mxu0 0.0
    %2706 = vmatprep.subr.mxu0 0.0
    %2707 = vmatpush2.msra.mxu0 0.0
    %2708 = vmatprep.subr.mxu0 0.0
    %2709 = vmatpush2.msra.mxu0 0.0
    %2710 = vmatprep.subr.mxu0 0.0
    %2711 = vmatpush2.msra.mxu0 0.0
    %2712 = vmatprep.subr.mxu0 0.0
    %2713 = vmatpush2.msra.mxu0 0.0
    %2714 = vmatprep.subr.mxu0 0.0
    %2715 = vmatpush2.msra.mxu0 0.0
    %2716 = vmatprep.subr.mxu0 0.0
    %2717 = vmatpush2.msra.mxu0 0.0
    %2718 = vmatprep.subr.mxu0 0.0
    %2719 = vmatpush2.msra.mxu0 0.0
    %2720 = vmatprep.subr.mxu0 0.0
    %2721 = vmatpush2.msra.mxu0 0.0
    %2722 = vmatprep.subr.mxu0 0.0
    %2723 = vmatpush2.msra.mxu0 0.0
    %2724 = vmatprep.subr.mxu0 0.0
    %2725 = vmatpush2.msra.mxu0 0.0
    %2726 = vmatprep.mubr.f32.mxu0 0.0
    %2727 = vmatmul.mubr.f32.gmra.mxu0 %v2660
    %v2728 = vpop.f32.mrf.mxu0
    %v2729 = vadd.f32 %v347, %v2728
    %v2730 = vpop.f32.mrf.mxu0
    %2731 = vdwg.mxu0
    %2732 = vrot.lane.b32.xlu0 %v2442, 32
    %v2733 = vpop.permute.xlu0 %2732
    %2735 = vrot.lane.b32.xlu0 %v2466, 64
    %v2736 = vpop.permute.xlu0 %2735
    %v2738 = vsel %vm49, %v2733, %v2736
    %v2740 = vsel %vm349, %v2738, 0
    %2742 = vmatprep.subr.mxu0 0.0
    %2743 = vmatpush1.msra.mxu0 0.0
    %2744 = vmatprep.subr.mxu0 0.0
    %2745 = vmatpush1.msra.mxu0 0.0
    %2746 = vmatprep.subr.mxu0 0.0
    %2747 = vmatpush1.msra.mxu0 0.0
    %2748 = vmatprep.subr.mxu0 0.0
    %2749 = vmatpush1.msra.mxu0 0.0
    %2750 = vmatprep.subr.mxu0 0.0
    %2751 = vmatpush1.msra.mxu0 0.0
    %2752 = vmatprep.subr.mxu0 0.0
    %2753 = vmatpush1.msra.mxu0 0.0
    %2754 = vmatprep.subr.mxu0 0.0
    %2755 = vmatpush1.msra.mxu0 0.0
    %2756 = vmatprep.subr.mxu0 0.0
    %2757 = vmatpush1.msra.mxu0 0.0
    %2758 = vmatprep.subr.mxu0 0.0
    %2759 = vmatpush1.msra.mxu0 %v151
    %2760 = vmatprep.subr.mxu0 0.0
    %2761 = vmatpush1.msra.mxu0 %v150
    %2762 = vmatprep.subr.mxu0 0.0
    %2763 = vmatpush1.msra.mxu0 %v149
    %2764 = vmatprep.subr.mxu0 0.0
    %2765 = vmatpush1.msra.mxu0 %v148
    %2766 = vmatprep.subr.mxu0 0.0
    %2767 = vmatpush1.msra.mxu0 %v147
    %2768 = vmatprep.subr.mxu0 0.0
    %2769 = vmatpush1.msra.mxu0 %v146
    %2770 = vmatprep.subr.mxu0 0.0
    %2771 = vmatpush1.msra.mxu0 %v145
    %2772 = vmatprep.subr.mxu0 0.0
    %2773 = vmatpush1.msra.mxu0 %v144
    %2774 = vmatprep.subr.mxu0 0.0
    %2775 = vmatpush2.msra.mxu0 0.0
    %2776 = vmatprep.subr.mxu0 0.0
    %2777 = vmatpush2.msra.mxu0 0.0
    %2778 = vmatprep.subr.mxu0 0.0
    %2779 = vmatpush2.msra.mxu0 0.0
    %2780 = vmatprep.subr.mxu0 0.0
    %2781 = vmatpush2.msra.mxu0 0.0
    %2782 = vmatprep.subr.mxu0 0.0
    %2783 = vmatpush2.msra.mxu0 0.0
    %2784 = vmatprep.subr.mxu0 0.0
    %2785 = vmatpush2.msra.mxu0 0.0
    %2786 = vmatprep.subr.mxu0 0.0
    %2787 = vmatpush2.msra.mxu0 0.0
    %2788 = vmatprep.subr.mxu0 0.0
    %2789 = vmatpush2.msra.mxu0 0.0
    %2790 = vmatprep.subr.mxu0 0.0
    %2791 = vmatpush2.msra.mxu0 0.0
    %2792 = vmatprep.subr.mxu0 0.0
    %2793 = vmatpush2.msra.mxu0 0.0
    %2794 = vmatprep.subr.mxu0 0.0
    %2795 = vmatpush2.msra.mxu0 0.0
    %2796 = vmatprep.subr.mxu0 0.0
    %2797 = vmatpush2.msra.mxu0 0.0
    %2798 = vmatprep.subr.mxu0 0.0
    %2799 = vmatpush2.msra.mxu0 0.0
    %2800 = vmatprep.subr.mxu0 0.0
    %2801 = vmatpush2.msra.mxu0 0.0
    %2802 = vmatprep.subr.mxu0 0.0
    %2803 = vmatpush2.msra.mxu0 0.0
    %2804 = vmatprep.subr.mxu0 0.0
    %2805 = vmatpush2.msra.mxu0 0.0
    %2806 = vmatprep.mubr.f32.mxu0 0.0
    %2807 = vmatmul.mubr.f32.gmra.mxu0 %v2740
    %v2808 = vpop.f32.mrf.mxu0
    %v2809 = vadd.f32 %v645, %v2808
    %v2810 = vpop.f32.mrf.mxu0
    %2811 = vdwg.mxu0
    %v2812 = vxor.u32 %v2648, 2147483648
    %v2813 = vmul.f32 %v2812, 1.442695
    %v2814 = vpow.pop %v2813
    %v2815 = vadd.f32 %v2814, 1.0
    %v2816 = vrcp.pop %v2815
    %v2817 = vmul.f32 1.0, %v2816
    %v2818 = vtanh.pop %v2648
    %v2820 = vrot.slane %v2412, 6
    %v2822 = vmul.f32 %v2817, %v2820
    %2824 = vrot.lane.b32.xlu0 %v2818, 64
    %v2825 = vpop.permute.xlu0 %2824
    %v2827 = vmul.f32 %v2817, %v2825
    %2829 = vrot.lane.b32.xlu0 %v2827, 32
    %v2830 = vpop.permute.xlu0 %2829
    %v2832 = vadd.f32 %v2822, %v2830
    %v2833 = vtanh.pop %v2832
    %2835 = vrot.lane.b32.xlu0 %v2833, 64
    %v2836 = vpop.permute.xlu0 %2835
    %v2838 = vmul.f32 %v2817, %v2836
    %v2839 = vxor.u32 %v2729, 2147483648
    %v2840 = vmul.f32 %v2839, 1.442695
    %v2841 = vpow.pop %v2840
    %v2842 = vadd.f32 %v2841, 1.0
    %v2843 = vrcp.pop %v2842
    %v2844 = vmul.f32 1.0, %v2843
    %v2845 = vtanh.pop %v2729
    %v2846 = vmul.f32 %v2844, %v2436
    %2848 = vrot.lane.b32.xlu0 %v2845, 64
    %v2849 = vpop.permute.xlu0 %2848
    %v2851 = vmul.f32 %v2844, %v2849
    %2853 = vrot.lane.b32.xlu0 %v2851, 32
    %v2854 = vpop.permute.xlu0 %2853
    %v2856 = vadd.f32 %v2846, %v2854
    %v2857 = vtanh.pop %v2856
    %2859 = vrot.lane.b32.xlu0 %v2857, 64
    %v2860 = vpop.permute.xlu0 %2859
    %v2862 = vmul.f32 %v2844, %v2860
    %v2863 = vxor.u32 %v2809, 2147483648
    %v2864 = vmul.f32 %v2863, 1.442695
    %v2865 = vpow.pop %v2864
    %v2866 = vadd.f32 %v2865, 1.0
    %v2867 = vrcp.pop %v2866
    %v2868 = vmul.f32 1.0, %v2867
    %v2869 = vtanh.pop %v2809
    %v2870 = vmul.f32 %v2868, %v2460
    %2872 = vrot.lane.b32.xlu0 %v2869, 64
    %v2873 = vpop.permute.xlu0 %2872
    %v2875 = vmul.f32 %v2868, %v2873
    %2877 = vrot.lane.b32.xlu0 %v2875, 32
    %v2878 = vpop.permute.xlu0 %2877
    %v2880 = vadd.f32 %v2870, %v2878
    %v2881 = vtanh.pop %v2880
    %2883 = vrot.lane.b32.xlu0 %v2881, 64
    %v2884 = vpop.permute.xlu0 %2883
    %v2886 = vmul.f32 %v2868, %v2884
    %2888 = vrot.lane.b32.xlu0 %v2886, 32
    %v2889 = vpop.permute.xlu0 %2888
    %v2890 = vsel %vm49, %v2889, 0
    %2892 = vmatprep.subr.mxu0 0.0
    %2893 = vmatpush1.msra.mxu0 0.0
    %2894 = vmatprep.subr.mxu0 0.0
    %2895 = vmatpush1.msra.mxu0 0.0
    %2896 = vmatprep.subr.mxu0 0.0
    %2897 = vmatpush1.msra.mxu0 0.0
    %2898 = vmatprep.subr.mxu0 0.0
    %2899 = vmatpush1.msra.mxu0 0.0
    %2900 = vmatprep.subr.mxu0 0.0
    %2901 = vmatpush1.msra.mxu0 0.0
    %2902 = vmatprep.subr.mxu0 0.0
    %2903 = vmatpush1.msra.mxu0 0.0
    %2904 = vmatprep.subr.mxu0 0.0
    %2905 = vmatpush1.msra.mxu0 0.0
    %2906 = vmatprep.subr.mxu0 0.0
    %2907 = vmatpush1.msra.mxu0 0.0
    %2908 = vmatprep.subr.mxu0 0.0
    %2909 = vmatpush1.msra.mxu0 0.0
    %2910 = vmatprep.subr.mxu0 0.0
    %2911 = vmatpush1.msra.mxu0 0.0
    %2912 = vmatprep.subr.mxu0 0.0
    %2913 = vmatpush1.msra.mxu0 0.0
    %2914 = vmatprep.subr.mxu0 0.0
    %2915 = vmatpush1.msra.mxu0 0.0
    %2916 = vmatprep.subr.mxu0 0.0
    %2917 = vmatpush1.msra.mxu0 %v156
    %2918 = vmatprep.subr.mxu0 0.0
    %2919 = vmatpush1.msra.mxu0 %v155
    %2920 = vmatprep.subr.mxu0 0.0
    %2921 = vmatpush1.msra.mxu0 %v154
    %2922 = vmatprep.subr.mxu0 0.0
    %2923 = vmatpush1.msra.mxu0 %v153
    %2924 = vmatprep.subr.mxu0 0.0
    %2925 = vmatpush2.msra.mxu0 0.0
    %2926 = vmatprep.subr.mxu0 0.0
    %2927 = vmatpush2.msra.mxu0 0.0
    %2928 = vmatprep.subr.mxu0 0.0
    %2929 = vmatpush2.msra.mxu0 0.0
    %2930 = vmatprep.subr.mxu0 0.0
    %2931 = vmatpush2.msra.mxu0 0.0
    %2932 = vmatprep.subr.mxu0 0.0
    %2933 = vmatpush2.msra.mxu0 0.0
    %2934 = vmatprep.subr.mxu0 0.0
    %2935 = vmatpush2.msra.mxu0 0.0
    %2936 = vmatprep.subr.mxu0 0.0
    %2937 = vmatpush2.msra.mxu0 0.0
    %2938 = vmatprep.subr.mxu0 0.0
    %2939 = vmatpush2.msra.mxu0 0.0
    %2940 = vmatprep.subr.mxu0 0.0
    %2941 = vmatpush2.msra.mxu0 0.0
    %2942 = vmatprep.subr.mxu0 0.0
    %2943 = vmatpush2.msra.mxu0 0.0
    %2944 = vmatprep.subr.mxu0 0.0
    %2945 = vmatpush2.msra.mxu0 0.0
    %2946 = vmatprep.subr.mxu0 0.0
    %2947 = vmatpush2.msra.mxu0 0.0
    %2948 = vmatprep.subr.mxu0 0.0
    %2949 = vmatpush2.msra.mxu0 0.0
    %2950 = vmatprep.subr.mxu0 0.0
    %2951 = vmatpush2.msra.mxu0 0.0
    %2952 = vmatprep.subr.mxu0 0.0
    %2953 = vmatpush2.msra.mxu0 0.0
    %2954 = vmatprep.subr.mxu0 0.0
    %2955 = vmatpush2.msra.mxu0 0.0
    %2956 = vmatprep.mubr.f32.mxu0 0.0
    %2957 = vmatmul.mubr.f32.gmra.mxu0 %v2890
    %v2958 = vpop.f32.mrf.mxu0
    %v2959 = vadd.f32 %v162, %v2958
    %v2960 = vpop.f32.mrf.mxu0
    %2961 = vdwg.mxu0
    %v2964 = vunpack.c.l.s4 1966171168
    %v2965 = vunpack.c.0.s8 %v2964
    %v2966 = vlaneseq
    %v2967 = vshrl.u32 %v2966, 7
    %v2968 = vsub.s32 %v2965, %v2967
    %v2969 = vrot.slane %v2959, %v2968
    %v2970 = vcombine.high %v2969, %v2969
    %v2972 = vunpack.c.l.s4 1966171168
    %v2973 = vunpack.c.0.s8 %v2972
    %v2974 = vlaneseq
    %v2975 = vshrl.u32 %v2974, 7
    %v2976 = vsub.s32 %v2973, %v2975
    %v2977 = vrot.slane %v2969, %v2976
    %v2979 = vunpack.c.l.s4 1966171168
    %v2980 = vunpack.c.0.s8 %v2979
    %v2981 = vlaneseq
    %v2982 = vshrl.u32 %v2981, 7
    %v2983 = vsub.s32 %v2980, %v2982
    %v2984 = vrot.slane %v2970, %v2983
    %2987 = vst [vmem:[#allocation2 + $0x5] sm:$0x1] %v2977
    %2988 = vst [vmem:[#allocation2 + $0xd] sm:$0x1] %v2984
    %2990 = vrot.lane.b32.xlu0 %v2838, 32
    %v2991 = vpop.permute.xlu0 %2990
    %v2994 = vrot.slane %v2862, 2
    %2995 = vrot.lane.b32.xlu0 %v2994, 64
    %v2996 = vpop.permute.xlu0 %2995
    %v2998 = vsel %vm49, %v2991, %v2996
    %v3000 = vrot.slane %v2998, 6
    %v3001 = vsel %vm349, %v3000, 0
    %3003 = vmatprep.subr.mxu0 0.0
    %3004 = vmatpush1.msra.mxu0 0.0
    %3005 = vmatprep.subr.mxu0 0.0
    %3006 = vmatpush1.msra.mxu0 0.0
    %3007 = vmatprep.subr.mxu0 0.0
    %3008 = vmatpush1.msra.mxu0 0.0
    %3009 = vmatprep.subr.mxu0 0.0
    %3010 = vmatpush1.msra.mxu0 0.0
    %3011 = vmatprep.subr.mxu0 0.0
    %3012 = vmatpush1.msra.mxu0 0.0
    %3013 = vmatprep.subr.mxu0 0.0
    %3014 = vmatpush1.msra.mxu0 0.0
    %3015 = vmatprep.subr.mxu0 0.0
    %3016 = vmatpush1.msra.mxu0 0.0
    %3017 = vmatprep.subr.mxu0 0.0
    %3018 = vmatpush1.msra.mxu0 0.0
    %3019 = vmatprep.subr.mxu0 0.0
    %3020 = vmatpush1.msra.mxu0 %v142
    %3021 = vmatprep.subr.mxu0 0.0
    %3022 = vmatpush1.msra.mxu0 %v141
    %3023 = vmatprep.subr.mxu0 0.0
    %3024 = vmatpush1.msra.mxu0 %v140
    %3025 = vmatprep.subr.mxu0 0.0
    %3026 = vmatpush1.msra.mxu0 %v139
    %3027 = vmatprep.subr.mxu0 0.0
    %3028 = vmatpush1.msra.mxu0 %v138
    %3029 = vmatprep.subr.mxu0 0.0
    %3030 = vmatpush1.msra.mxu0 %v137
    %3031 = vmatprep.subr.mxu0 0.0
    %3032 = vmatpush1.msra.mxu0 %v136
    %3033 = vmatprep.subr.mxu0 0.0
    %3034 = vmatpush1.msra.mxu0 %v135
    %3035 = vmatprep.subr.mxu0 0.0
    %3036 = vmatpush2.msra.mxu0 0.0
    %3037 = vmatprep.subr.mxu0 0.0
    %3038 = vmatpush2.msra.mxu0 0.0
    %3039 = vmatprep.subr.mxu0 0.0
    %3040 = vmatpush2.msra.mxu0 0.0
    %3041 = vmatprep.subr.mxu0 0.0
    %3042 = vmatpush2.msra.mxu0 0.0
    %3043 = vmatprep.subr.mxu0 0.0
    %3044 = vmatpush2.msra.mxu0 0.0
    %3045 = vmatprep.subr.mxu0 0.0
    %3046 = vmatpush2.msra.mxu0 0.0
    %3047 = vmatprep.subr.mxu0 0.0
    %3048 = vmatpush2.msra.mxu0 0.0
    %3049 = vmatprep.subr.mxu0 0.0
    %3050 = vmatpush2.msra.mxu0 0.0
    %3051 = vmatprep.subr.mxu0 0.0
    %3052 = vmatpush2.msra.mxu0 0.0
    %3053 = vmatprep.subr.mxu0 0.0
    %3054 = vmatpush2.msra.mxu0 0.0
    %3055 = vmatprep.subr.mxu0 0.0
    %3056 = vmatpush2.msra.mxu0 0.0
    %3057 = vmatprep.subr.mxu0 0.0
    %3058 = vmatpush2.msra.mxu0 0.0
    %3059 = vmatprep.subr.mxu0 0.0
    %3060 = vmatpush2.msra.mxu0 0.0
    %3061 = vmatprep.subr.mxu0 0.0
    %3062 = vmatpush2.msra.mxu0 0.0
    %3063 = vmatprep.subr.mxu0 0.0
    %3064 = vmatpush2.msra.mxu0 0.0
    %3065 = vmatprep.subr.mxu0 0.0
    %3066 = vmatpush2.msra.mxu0 0.0
    %3067 = vmatprep.mubr.f32.mxu0 0.0
    %3068 = vmatmul.mubr.f32.gmra.mxu0 %v3001
    %v3069 = vpop.f32.mrf.mxu0
    %v3070 = vadd.f32 %v347, %v3069
    %v3071 = vpop.f32.mrf.mxu0
    %3072 = vdwg.mxu0
    %3073 = vrot.lane.b32.xlu0 %v2862, 32
    %v3074 = vpop.permute.xlu0 %3073
    %3076 = vrot.lane.b32.xlu0 %v2886, 64
    %v3077 = vpop.permute.xlu0 %3076
    %v3079 = vsel %vm49, %v3074, %v3077
    %v3081 = vsel %vm349, %v3079, 0
    %3083 = vmatprep.subr.mxu0 0.0
    %3084 = vmatpush1.msra.mxu0 0.0
    %3085 = vmatprep.subr.mxu0 0.0
    %3086 = vmatpush1.msra.mxu0 0.0
    %3087 = vmatprep.subr.mxu0 0.0
    %3088 = vmatpush1.msra.mxu0 0.0
    %3089 = vmatprep.subr.mxu0 0.0
    %3090 = vmatpush1.msra.mxu0 0.0
    %3091 = vmatprep.subr.mxu0 0.0
    %3092 = vmatpush1.msra.mxu0 0.0
    %3093 = vmatprep.subr.mxu0 0.0
    %3094 = vmatpush1.msra.mxu0 0.0
    %3095 = vmatprep.subr.mxu0 0.0
    %3096 = vmatpush1.msra.mxu0 0.0
    %3097 = vmatprep.subr.mxu0 0.0
    %3098 = vmatpush1.msra.mxu0 0.0
    %3099 = vmatprep.subr.mxu0 0.0
    %3100 = vmatpush1.msra.mxu0 %v151
    %3101 = vmatprep.subr.mxu0 0.0
    %3102 = vmatpush1.msra.mxu0 %v150
    %3103 = vmatprep.subr.mxu0 0.0
    %3104 = vmatpush1.msra.mxu0 %v149
    %3105 = vmatprep.subr.mxu0 0.0
    %3106 = vmatpush1.msra.mxu0 %v148
    %3107 = vmatprep.subr.mxu0 0.0
    %3108 = vmatpush1.msra.mxu0 %v147
    %3109 = vmatprep.subr.mxu0 0.0
    %3110 = vmatpush1.msra.mxu0 %v146
    %3111 = vmatprep.subr.mxu0 0.0
    %3112 = vmatpush1.msra.mxu0 %v145
    %3113 = vmatprep.subr.mxu0 0.0
    %3114 = vmatpush1.msra.mxu0 %v144
    %3115 = vmatprep.subr.mxu0 0.0
    %3116 = vmatpush2.msra.mxu0 0.0
    %3117 = vmatprep.subr.mxu0 0.0
    %3118 = vmatpush2.msra.mxu0 0.0
    %3119 = vmatprep.subr.mxu0 0.0
    %3120 = vmatpush2.msra.mxu0 0.0
    %3121 = vmatprep.subr.mxu0 0.0
    %3122 = vmatpush2.msra.mxu0 0.0
    %3123 = vmatprep.subr.mxu0 0.0
    %3124 = vmatpush2.msra.mxu0 0.0
    %3125 = vmatprep.subr.mxu0 0.0
    %3126 = vmatpush2.msra.mxu0 0.0
    %3127 = vmatprep.subr.mxu0 0.0
    %3128 = vmatpush2.msra.mxu0 0.0
    %3129 = vmatprep.subr.mxu0 0.0
    %3130 = vmatpush2.msra.mxu0 0.0
    %3131 = vmatprep.subr.mxu0 0.0
    %3132 = vmatpush2.msra.mxu0 0.0
    %3133 = vmatprep.subr.mxu0 0.0
    %3134 = vmatpush2.msra.mxu0 0.0
    %3135 = vmatprep.subr.mxu0 0.0
    %3136 = vmatpush2.msra.mxu0 0.0
    %3137 = vmatprep.subr.mxu0 0.0
    %3138 = vmatpush2.msra.mxu0 0.0
    %3139 = vmatprep.subr.mxu0 0.0
    %3140 = vmatpush2.msra.mxu0 0.0
    %3141 = vmatprep.subr.mxu0 0.0
    %3142 = vmatpush2.msra.mxu0 0.0
    %3143 = vmatprep.subr.mxu0 0.0
    %3144 = vmatpush2.msra.mxu0 0.0
    %3145 = vmatprep.subr.mxu0 0.0
    %3146 = vmatpush2.msra.mxu0 0.0
    %3147 = vmatprep.mubr.f32.mxu0 0.0
    %3148 = vmatmul.mubr.f32.gmra.mxu0 %v3081
    %v3149 = vpop.f32.mrf.mxu0
    %v3150 = vadd.f32 %v645, %v3149
    %v3151 = vpop.f32.mrf.mxu0
    %3152 = vdwg.mxu0
    %v3153 = vxor.u32 %v3070, 2147483648
    %v3154 = vmul.f32 %v3153, 1.442695
    %v3155 = vpow.pop %v3154
    %v3156 = vadd.f32 %v3155, 1.0
    %v3157 = vrcp.pop %v3156
    %v3158 = vmul.f32 1.0, %v3157
    %v3159 = vtanh.pop %v3070
    %v3160 = vmul.f32 %v3158, %v2856
    %3162 = vrot.lane.b32.xlu0 %v3159, 64
    %v3163 = vpop.permute.xlu0 %3162
    %v3165 = vmul.f32 %v3158, %v3163
    %3167 = vrot.lane.b32.xlu0 %v3165, 32
    %v3168 = vpop.permute.xlu0 %3167
    %v3170 = vadd.f32 %v3160, %v3168
    %v3171 = vtanh.pop %v3170
    %3173 = vrot.lane.b32.xlu0 %v3171, 64
    %v3174 = vpop.permute.xlu0 %3173
    %v3176 = vmul.f32 %v3158, %v3174
    %v3177 = vxor.u32 %v3150, 2147483648
    %v3178 = vmul.f32 %v3177, 1.442695
    %v3179 = vpow.pop %v3178
    %v3180 = vadd.f32 %v3179, 1.0
    %v3181 = vrcp.pop %v3180
    %v3182 = vmul.f32 1.0, %v3181
    %v3183 = vtanh.pop %v3150
    %v3184 = vmul.f32 %v3182, %v2880
    %3186 = vrot.lane.b32.xlu0 %v3183, 64
    %v3187 = vpop.permute.xlu0 %3186
    %v3189 = vmul.f32 %v3182, %v3187
    %3191 = vrot.lane.b32.xlu0 %v3189, 32
    %v3192 = vpop.permute.xlu0 %3191
    %v3194 = vadd.f32 %v3184, %v3192
    %v3195 = vtanh.pop %v3194
    %3197 = vrot.lane.b32.xlu0 %v3195, 64
    %v3198 = vpop.permute.xlu0 %3197
    %v3200 = vmul.f32 %v3182, %v3198
    %3202 = vrot.lane.b32.xlu0 %v3200, 32
    %v3203 = vpop.permute.xlu0 %3202
    %v3204 = vsel %vm49, %v3203, 0
    %3206 = vmatprep.subr.mxu0 0.0
    %3207 = vmatpush1.msra.mxu0 0.0
    %3208 = vmatprep.subr.mxu0 0.0
    %3209 = vmatpush1.msra.mxu0 0.0
    %3210 = vmatprep.subr.mxu0 0.0
    %3211 = vmatpush1.msra.mxu0 0.0
    %3212 = vmatprep.subr.mxu0 0.0
    %3213 = vmatpush1.msra.mxu0 0.0
    %3214 = vmatprep.subr.mxu0 0.0
    %3215 = vmatpush1.msra.mxu0 0.0
    %3216 = vmatprep.subr.mxu0 0.0
    %3217 = vmatpush1.msra.mxu0 0.0
    %3218 = vmatprep.subr.mxu0 0.0
    %3219 = vmatpush1.msra.mxu0 0.0
    %3220 = vmatprep.subr.mxu0 0.0
    %3221 = vmatpush1.msra.mxu0 0.0
    %3222 = vmatprep.subr.mxu0 0.0
    %3223 = vmatpush1.msra.mxu0 0.0
    %3224 = vmatprep.subr.mxu0 0.0
    %3225 = vmatpush1.msra.mxu0 0.0
    %3226 = vmatprep.subr.mxu0 0.0
    %3227 = vmatpush1.msra.mxu0 0.0
    %3228 = vmatprep.subr.mxu0 0.0
    %3229 = vmatpush1.msra.mxu0 0.0
    %3230 = vmatprep.subr.mxu0 0.0
    %3231 = vmatpush1.msra.mxu0 %v156
    %3232 = vmatprep.subr.mxu0 0.0
    %3233 = vmatpush1.msra.mxu0 %v155
    %3234 = vmatprep.subr.mxu0 0.0
    %3235 = vmatpush1.msra.mxu0 %v154
    %3236 = vmatprep.subr.mxu0 0.0
    %3237 = vmatpush1.msra.mxu0 %v153
    %3238 = vmatprep.subr.mxu0 0.0
    %3239 = vmatpush2.msra.mxu0 0.0
    %3240 = vmatprep.subr.mxu0 0.0
    %3241 = vmatpush2.msra.mxu0 0.0
    %3242 = vmatprep.subr.mxu0 0.0
    %3243 = vmatpush2.msra.mxu0 0.0
    %3244 = vmatprep.subr.mxu0 0.0
    %3245 = vmatpush2.msra.mxu0 0.0
    %3246 = vmatprep.subr.mxu0 0.0
    %3247 = vmatpush2.msra.mxu0 0.0
    %3248 = vmatprep.subr.mxu0 0.0
    %3249 = vmatpush2.msra.mxu0 0.0
    %3250 = vmatprep.subr.mxu0 0.0
    %3251 = vmatpush2.msra.mxu0 0.0
    %3252 = vmatprep.subr.mxu0 0.0
    %3253 = vmatpush2.msra.mxu0 0.0
    %3254 = vmatprep.subr.mxu0 0.0
    %3255 = vmatpush2.msra.mxu0 0.0
    %3256 = vmatprep.subr.mxu0 0.0
    %3257 = vmatpush2.msra.mxu0 0.0
    %3258 = vmatprep.subr.mxu0 0.0
    %3259 = vmatpush2.msra.mxu0 0.0
    %3260 = vmatprep.subr.mxu0 0.0
    %3261 = vmatpush2.msra.mxu0 0.0
    %3262 = vmatprep.subr.mxu0 0.0
    %3263 = vmatpush2.msra.mxu0 0.0
    %3264 = vmatprep.subr.mxu0 0.0
    %3265 = vmatpush2.msra.mxu0 0.0
    %3266 = vmatprep.subr.mxu0 0.0
    %3267 = vmatpush2.msra.mxu0 0.0
    %3268 = vmatprep.subr.mxu0 0.0
    %3269 = vmatpush2.msra.mxu0 0.0
    %3270 = vmatprep.mubr.f32.mxu0 0.0
    %3271 = vmatmul.mubr.f32.gmra.mxu0 %v3204
    %v3272 = vpop.f32.mrf.mxu0
    %v3273 = vadd.f32 %v162, %v3272
    %v3274 = vpop.f32.mrf.mxu0
    %3275 = vdwg.mxu0
    %v3278 = vunpack.c.l.s4 1966171168
    %v3279 = vunpack.c.0.s8 %v3278
    %v3280 = vlaneseq
    %v3281 = vshrl.u32 %v3280, 7
    %v3282 = vsub.s32 %v3279, %v3281
    %v3283 = vrot.slane %v3273, %v3282
    %v3284 = vcombine.high %v3283, %v3283
    %v3286 = vunpack.c.l.s4 1966171168
    %v3287 = vunpack.c.0.s8 %v3286
    %v3288 = vlaneseq
    %v3289 = vshrl.u32 %v3288, 7
    %v3290 = vsub.s32 %v3287, %v3289
    %v3291 = vrot.slane %v3283, %v3290
    %v3293 = vunpack.c.l.s4 1966171168
    %v3294 = vunpack.c.0.s8 %v3293
    %v3295 = vlaneseq
    %v3296 = vshrl.u32 %v3295, 7
    %v3297 = vsub.s32 %v3294, %v3296
    %v3298 = vrot.slane %v3284, %v3297
    %3301 = vst [vmem:[#allocation2 + $0x6] sm:$0x1] %v3291
    %3302 = vst [vmem:[#allocation2 + $0xe] sm:$0x1] %v3298
    %3304 = vrot.lane.b32.xlu0 %v3176, 32
    %v3305 = vpop.permute.xlu0 %3304
    %3307 = vrot.lane.b32.xlu0 %v3200, 64
    %v3308 = vpop.permute.xlu0 %3307
    %v3310 = vsel %vm49, %v3305, %v3308
    %v3312 = vsel %vm349, %v3310, 0
    %3314 = vmatprep.subr.mxu0 0.0
    %3315 = vmatpush1.msra.mxu0 0.0
    %3316 = vmatprep.subr.mxu0 0.0
    %3317 = vmatpush1.msra.mxu0 0.0
    %3318 = vmatprep.subr.mxu0 0.0
    %3319 = vmatpush1.msra.mxu0 0.0
    %3320 = vmatprep.subr.mxu0 0.0
    %3321 = vmatpush1.msra.mxu0 0.0
    %3322 = vmatprep.subr.mxu0 0.0
    %3323 = vmatpush1.msra.mxu0 0.0
    %3324 = vmatprep.subr.mxu0 0.0
    %3325 = vmatpush1.msra.mxu0 0.0
    %3326 = vmatprep.subr.mxu0 0.0
    %3327 = vmatpush1.msra.mxu0 0.0
    %3328 = vmatprep.subr.mxu0 0.0
    %3329 = vmatpush1.msra.mxu0 0.0
    %3330 = vmatprep.subr.mxu0 0.0
    %3331 = vmatpush1.msra.mxu0 %v151
    %3332 = vmatprep.subr.mxu0 0.0
    %3333 = vmatpush1.msra.mxu0 %v150
    %3334 = vmatprep.subr.mxu0 0.0
    %3335 = vmatpush1.msra.mxu0 %v149
    %3336 = vmatprep.subr.mxu0 0.0
    %3337 = vmatpush1.msra.mxu0 %v148
    %3338 = vmatprep.subr.mxu0 0.0
    %3339 = vmatpush1.msra.mxu0 %v147
    %3340 = vmatprep.subr.mxu0 0.0
    %3341 = vmatpush1.msra.mxu0 %v146
    %3342 = vmatprep.subr.mxu0 0.0
    %3343 = vmatpush1.msra.mxu0 %v145
    %3344 = vmatprep.subr.mxu0 0.0
    %3345 = vmatpush1.msra.mxu0 %v144
    %3346 = vmatprep.subr.mxu0 0.0
    %3347 = vmatpush2.msra.mxu0 0.0
    %3348 = vmatprep.subr.mxu0 0.0
    %3349 = vmatpush2.msra.mxu0 0.0
    %3350 = vmatprep.subr.mxu0 0.0
    %3351 = vmatpush2.msra.mxu0 0.0
    %3352 = vmatprep.subr.mxu0 0.0
    %3353 = vmatpush2.msra.mxu0 0.0
    %3354 = vmatprep.subr.mxu0 0.0
    %3355 = vmatpush2.msra.mxu0 0.0
    %3356 = vmatprep.subr.mxu0 0.0
    %3357 = vmatpush2.msra.mxu0 0.0
    %3358 = vmatprep.subr.mxu0 0.0
    %3359 = vmatpush2.msra.mxu0 0.0
    %3360 = vmatprep.subr.mxu0 0.0
    %3361 = vmatpush2.msra.mxu0 0.0
    %3362 = vmatprep.subr.mxu0 0.0
    %3363 = vmatpush2.msra.mxu0 0.0
    %3364 = vmatprep.subr.mxu0 0.0
    %3365 = vmatpush2.msra.mxu0 0.0
    %3366 = vmatprep.subr.mxu0 0.0
    %3367 = vmatpush2.msra.mxu0 0.0
    %3368 = vmatprep.subr.mxu0 0.0
    %3369 = vmatpush2.msra.mxu0 0.0
    %3370 = vmatprep.subr.mxu0 0.0
    %3371 = vmatpush2.msra.mxu0 0.0
    %3372 = vmatprep.subr.mxu0 0.0
    %3373 = vmatpush2.msra.mxu0 0.0
    %3374 = vmatprep.subr.mxu0 0.0
    %3375 = vmatpush2.msra.mxu0 0.0
    %3376 = vmatprep.subr.mxu0 0.0
    %3377 = vmatpush2.msra.mxu0 0.0
    %3378 = vmatprep.mubr.f32.mxu0 0.0
    %3379 = vmatmul.mubr.f32.gmra.mxu0 %v3312
    %v3380 = vpop.f32.mrf.mxu0
    %v3381 = vadd.f32 %v645, %v3380
    %v3382 = vpop.f32.mrf.mxu0
    %3383 = vdwg.mxu0
    %v3384 = vxor.u32 %v3381, 2147483648
    %v3385 = vmul.f32 %v3384, 1.442695
    %v3386 = vpow.pop %v3385
    %v3387 = vadd.f32 %v3386, 1.0
    %v3388 = vrcp.pop %v3387
    %v3389 = vmul.f32 1.0, %v3388
    %v3390 = vtanh.pop %v3381
    %v3391 = vmul.f32 %v3389, %v3194
    %3393 = vrot.lane.b32.xlu0 %v3390, 64
    %v3394 = vpop.permute.xlu0 %3393
    %v3396 = vmul.f32 %v3389, %v3394
    %3398 = vrot.lane.b32.xlu0 %v3396, 32
    %v3399 = vpop.permute.xlu0 %3398
    %v3401 = vadd.f32 %v3391, %v3399
    %v3402 = vtanh.pop %v3401
    %3404 = vrot.lane.b32.xlu0 %v3402, 64
    %v3405 = vpop.permute.xlu0 %3404
    %v3407 = vmul.f32 %v3389, %v3405
    %3409 = vrot.lane.b32.xlu0 %v3407, 32
    %v3410 = vpop.permute.xlu0 %3409
    %v3411 = vsel %vm49, %v3410, 0
    %3413 = vmatprep.subr.mxu0 0.0
    %3414 = vmatpush1.msra.mxu0 0.0
    %3415 = vmatprep.subr.mxu0 0.0
    %3416 = vmatpush1.msra.mxu0 0.0
    %3417 = vmatprep.subr.mxu0 0.0
    %3418 = vmatpush1.msra.mxu0 0.0
    %3419 = vmatprep.subr.mxu0 0.0
    %3420 = vmatpush1.msra.mxu0 0.0
    %3421 = vmatprep.subr.mxu0 0.0
    %3422 = vmatpush1.msra.mxu0 0.0
    %3423 = vmatprep.subr.mxu0 0.0
    %3424 = vmatpush1.msra.mxu0 0.0
    %3425 = vmatprep.subr.mxu0 0.0
    %3426 = vmatpush1.msra.mxu0 0.0
    %3427 = vmatprep.subr.mxu0 0.0
    %3428 = vmatpush1.msra.mxu0 0.0
    %3429 = vmatprep.subr.mxu0 0.0
    %3430 = vmatpush1.msra.mxu0 0.0
    %3431 = vmatprep.subr.mxu0 0.0
    %3432 = vmatpush1.msra.mxu0 0.0
    %3433 = vmatprep.subr.mxu0 0.0
    %3434 = vmatpush1.msra.mxu0 0.0
    %3435 = vmatprep.subr.mxu0 0.0
    %3436 = vmatpush1.msra.mxu0 0.0
    %3437 = vmatprep.subr.mxu0 0.0
    %3438 = vmatpush1.msra.mxu0 %v156
    %3439 = vmatprep.subr.mxu0 0.0
    %3440 = vmatpush1.msra.mxu0 %v155
    %3441 = vmatprep.subr.mxu0 0.0
    %3442 = vmatpush1.msra.mxu0 %v154
    %3443 = vmatprep.subr.mxu0 0.0
    %3444 = vmatpush1.msra.mxu0 %v153
    %3445 = vmatprep.subr.mxu0 0.0
    %3446 = vmatpush2.msra.mxu0 0.0
    %3447 = vmatprep.subr.mxu0 0.0
    %3448 = vmatpush2.msra.mxu0 0.0
    %3449 = vmatprep.subr.mxu0 0.0
    %3450 = vmatpush2.msra.mxu0 0.0
    %3451 = vmatprep.subr.mxu0 0.0
    %3452 = vmatpush2.msra.mxu0 0.0
    %3453 = vmatprep.subr.mxu0 0.0
    %3454 = vmatpush2.msra.mxu0 0.0
    %3455 = vmatprep.subr.mxu0 0.0
    %3456 = vmatpush2.msra.mxu0 0.0
    %3457 = vmatprep.subr.mxu0 0.0
    %3458 = vmatpush2.msra.mxu0 0.0
    %3459 = vmatprep.subr.mxu0 0.0
    %3460 = vmatpush2.msra.mxu0 0.0
    %3461 = vmatprep.subr.mxu0 0.0
    %3462 = vmatpush2.msra.mxu0 0.0
    %3463 = vmatprep.subr.mxu0 0.0
    %3464 = vmatpush2.msra.mxu0 0.0
    %3465 = vmatprep.subr.mxu0 0.0
    %3466 = vmatpush2.msra.mxu0 0.0
    %3467 = vmatprep.subr.mxu0 0.0
    %3468 = vmatpush2.msra.mxu0 0.0
    %3469 = vmatprep.subr.mxu0 0.0
    %3470 = vmatpush2.msra.mxu0 0.0
    %3471 = vmatprep.subr.mxu0 0.0
    %3472 = vmatpush2.msra.mxu0 0.0
    %3473 = vmatprep.subr.mxu0 0.0
    %3474 = vmatpush2.msra.mxu0 0.0
    %3475 = vmatprep.subr.mxu0 0.0
    %3476 = vmatpush2.msra.mxu0 0.0
    %3477 = vmatprep.mubr.f32.mxu0 0.0
    %3478 = vmatmul.mubr.f32.gmra.mxu0 %v3411
    %v3479 = vpop.f32.mrf.mxu0
    %v3480 = vadd.f32 %v162, %v3479
    %v3481 = vpop.f32.mrf.mxu0
    %3482 = vdwg.mxu0
    %v3485 = vunpack.c.l.s4 1966171168
    %v3486 = vunpack.c.0.s8 %v3485
    %v3487 = vlaneseq
    %v3488 = vshrl.u32 %v3487, 7
    %v3489 = vsub.s32 %v3486, %v3488
    %v3490 = vrot.slane %v3480, %v3489
    %v3491 = vcombine.high %v3490, %v3490
    %v3493 = vunpack.c.l.s4 1966171168
    %v3494 = vunpack.c.0.s8 %v3493
    %v3495 = vlaneseq
    %v3496 = vshrl.u32 %v3495, 7
    %v3497 = vsub.s32 %v3494, %v3496
    %v3498 = vrot.slane %v3490, %v3497
    %v3500 = vunpack.c.l.s4 1966171168
    %v3501 = vunpack.c.0.s8 %v3500
    %v3502 = vlaneseq
    %v3503 = vshrl.u32 %v3502, 7
    %v3504 = vsub.s32 %v3501, %v3503
    %v3505 = vrot.slane %v3491, %v3504
    %3508 = vst [vmem:[#allocation2 + $0x7] sm:$0x1] %v3498
    %3509 = vst [vmem:[#allocation2 + $0xf] sm:$0x1] %v3505
    // Predicated region
    $region42: #{lstm_model_forward.1} parent=1 // pred_check
      _
    $region43: #{lstm_model_forward.1} parent=1 // pred_check_branch
      %3511 = sbr.rel (0) target = $region45
    $region44: #{lstm_model_forward.1} parent=1 // pred_region
      %s3513 = ssub.s32 256, 256
      %3514 = vsyncadd [#allocation3], %s3513
      %s3515 = sshll.u32 [#allocation2], 4
      %s3516 = int_to_ptr.vmem [resolvable:$true] %s3515
      %3521 = dma.vmem_to_hbm [thread:$0]  %s3516, 256, %s10, [#allocation3], 128, 128, 8
    $region45: #{lstm_model_forward.1} parent=1 // pred_fallthru
      _
    // Predicated region
    $region46: #{lstm_model_forward.1} parent=1 // pred_check
      _
    $region47: #{lstm_model_forward.1} parent=1 // pred_check_branch
      %3523 = sbr.rel (0) target = $region49
    $region48: #{lstm_model_forward.1} parent=1 // pred_region
      %3524 = dma.done [#allocation3], 256
    $region49: #{lstm_model_forward.1} parent=1 // pred_fallthru
      _
    %3525 = vsyncpa [#allocation3], 1

</llo_original>
